<compile_context>
chip_gen: v7x
topology: tpu7x:2x2x1
jax: 0.10.0
libtpu: 0.0.40
codegen_flags: <defaults>
</compile_context>

<pallas_src>
import functools
import math

import jax
import jax.numpy as jnp
from jax.experimental import pallas as pl
from jax.experimental.pallas import tpu as pltpu


def _round_up(x, m):
    return ((x + m - 1) // m) * m


_MAX_SINGLE_K = 2048   # whole-(padded)K resident if K_pad <= this
_STREAM_TK = 2048      # streamed W1 tile width otherwise (>= 2 MiB bf16 / tile)
_MAX_TB = 256          # batch-tile rows for the leading "parallel" axis


def _k_tiling(K):
    """Return (K_pad, tk, n_k) for the fc1 reduction dimension."""
    k128 = _round_up(K, 128)
    if k128 <= _MAX_SINGLE_K:
        return k128, k128, 1
    k_pad = _round_up(k128, _STREAM_TK)
    return k_pad, _STREAM_TK, k_pad // _STREAM_TK


# ----------------------------------------------------------------------------
# Kernel bodies
# ----------------------------------------------------------------------------
def _linear(h, w_ref, b_ref, relu):
    """bf16 matmul, f32 accumulate, f32 bias add (+ optional ReLU)."""
    y = jnp.dot(h.astype(jnp.bfloat16), w_ref[...],
                preferred_element_type=jnp.float32) + b_ref[...]
    return jnp.maximum(y, 0.0) if relu else y


def _fused_mlp_single_kernel(*refs, has_head):
    """Whole fc1 reduction in one grid step: no accumulator scratch."""
    if has_head:
        (x_ref, w1, b1, w2, b2, w3, b3, w4, b4, w5, b5, o_ref) = refs
    else:
        (x_ref, w1, b1, w2, b2, w3, b3, o_ref) = refs

    h = _linear(x_ref[...], w1, b1, relu=True)     # relu(fc1); dropout = id
    h = _linear(h, w2, b2, relu=True)              # relu(fc2); dropout = id
    h = _linear(h, w3, b3, relu=True)              # relu(fc3)
    if has_head:
        h = _linear(h, w4, b4, relu=True)          # head Linear+ReLU; dropout = id
        h = _linear(h, w5, b5, relu=False)         # head final Linear (logits)
    o_ref[...] = h.astype(o_ref.dtype)


def _fused_mlp_streamed_kernel(*refs, has_head):
    """fc1 K-streamed over trailing grid axis, f32 accumulation in VMEM."""
    if has_head:
        (x_ref, w1, b1, w2, b2, w3, b3, w4, b4, w5, b5, o_ref, acc_ref) = refs
    else:
        (x_ref, w1, b1, w2, b2, w3, b3, o_ref, acc_ref) = refs

    k = pl.program_id(1)

    @pl.when(k == 0)
    def _():
        acc_ref[...] = jnp.zeros_like(acc_ref)

    acc_ref[...] += jnp.dot(x_ref[...], w1[...],
                            preferred_element_type=jnp.float32)

    @pl.when(k == pl.num_programs(1) - 1)
    def _():
        h = jnp.maximum(acc_ref[...] + b1[...], 0.0)   # relu(fc1); dropout = id
        h = _linear(h, w2, b2, relu=True)              # relu(fc2); dropout = id
        h = _linear(h, w3, b3, relu=True)              # relu(fc3)
        if has_head:
            h = _linear(h, w4, b4, relu=True)
            h = _linear(h, w5, b5, relu=False)
        o_ref[...] = h.astype(o_ref.dtype)


# ----------------------------------------------------------------------------
# Parameter init (PyTorch-style uniform(-1/sqrt(fan_in), +1/sqrt(fan_in)))
# ----------------------------------------------------------------------------
def _init_linear(key, fan_in, fan_out, *, pad_in_to=None, pad_out_to=None):
    kw, kb = jax.random.split(key)
    bound = 1.0 / math.sqrt(fan_in)
    w_t = jax.random.uniform(kw, (fan_in, fan_out), jnp.float32, -bound, bound)
    b = jax.random.uniform(kb, (fan_out,), jnp.float32, -bound, bound)
    if pad_in_to is not None and pad_in_to > fan_in:
        w_t = jnp.pad(w_t, ((0, pad_in_to - fan_in), (0, 0)))   # zero rows
    if pad_out_to is not None and pad_out_to > fan_out:
        w_t = jnp.pad(w_t, ((0, 0), (0, pad_out_to - fan_out)))  # zero cols
        b = jnp.pad(b, (0, pad_out_to - fan_out))
    # Weights stored pre-transposed (fan_in, fan_out) bf16; biases (1, N) f32.
    return w_t.astype(jnp.bfloat16), b.reshape(1, -1)


def init_params(key, input_size, n_bands, n_class):
    in_dim = input_size * input_size * n_bands
    k_pad, _, _ = _k_tiling(in_dim)                  # zero-pad fc1 rows to K_pad
    keys = jax.random.split(key, 5)
    params = {
        "fc1": _init_linear(keys[0], in_dim, 512, pad_in_to=k_pad),
        "fc2": _init_linear(keys[1], 512, 512),
        "fc3": _init_linear(keys[2], 512, 512),
    }
    if n_class:
        params["head0"] = _init_linear(keys[3], 512, 1024)
        n_pad = _round_up(max(n_class, 128), 128)    # lane-dense final store
        params["head1"] = _init_linear(keys[4], 1024, n_class, pad_out_to=n_pad)
    return params


# ----------------------------------------------------------------------------
# Forward pass (mirrors FullyConnectedNetwork.forward) — one fused pallas_call
# ----------------------------------------------------------------------------
def fully_connected_network_forward(params, x_dict, modality, n_class):
    x = x_dict[modality]                                 # (B, C, H, W)
    _, c, h, w = x.shape
    K = c * h * w
    x2 = x.reshape(-1, K).astype(jnp.bfloat16)           # x.view(-1, c*h*w), bf16
    B = x2.shape[0]

    K_pad, tk, n_k = _k_tiling(K)

    # Batch tiling: pad rows to a sublane-full multiple of 8 (or of the tile).
    if B <= _MAX_TB:
        tb = _round_up(max(B, 8), 8)
        B_pad = tb
    else:
        tb = _MAX_TB
        B_pad = _round_up(B, tb)
    n_b = B_pad // tb

    pad_b, pad_k = B_pad - B, K_pad - K
    if pad_b or pad_k:
        x2 = jnp.pad(x2, ((0, pad_b), (0, pad_k)))       # zeros: no effect on dot

    w1, b1 = params["fc1"]
    w2, b2 = params["fc2"]
    w3, b3 = params["fc3"]

    inputs = [x2, w1, b1, w2, b2, w3, b3]
    has_head = bool(n_class)
    if has_head:
        w4, b4 = params["head0"]
        w5, b5 = params["head1"]
        inputs += [w4, b4, w5, b5]
        out_dim = w5.shape[1]                            # lane-padded n_class
    else:
        out_dim = 512

    if n_k == 1:
        # ---- fc1 collapsed: whole (padded) K in one step, no accumulator. ----
        def resident(arr):
            return pl.BlockSpec(arr.shape, lambda b: (0, 0))
        in_specs = [pl.BlockSpec((tb, K_pad), lambda b: (b, 0)),     # x: B-tiled
                    pl.BlockSpec((K_pad, 512), lambda b: (0, 0))]    # W1^T whole
        in_specs += [resident(a) for a in inputs[2:]]
        out_specs = pl.BlockSpec((tb, out_dim), lambda b: (b, 0))
        kernel = functools.partial(_fused_mlp_single_kernel, has_head=has_head)
        grid = (n_b,)
        scratch = []
        dims = ("parallel",)
    else:
        # ---- fc1 streamed: K tiled on trailing "arbitrary" axis. ----
        def resident(arr):
            # Constant index -> DMA'd once; single buffer (default 2nd buffer
            # never re-fills and only wastes VMEM — matters on v7x's 64 MiB).
            return pl.BlockSpec(arr.shape, lambda b, k: (0, 0),
                                pipeline_mode=pl.Buffered(1))
        in_specs = [pl.BlockSpec((tb, tk), lambda b, k: (b, k)),     # x stream
                    pl.BlockSpec((tk, 512), lambda b, k: (k, 0))]    # W1^T stream
        in_specs += [resident(a) for a in inputs[2:]]
        out_specs = pl.BlockSpec((tb, out_dim), lambda b, k: (b, 0))
        kernel = functools.partial(_fused_mlp_streamed_kernel, has_head=has_head)
        grid = (n_b, n_k)
        scratch = [pltpu.VMEM((tb, 512), jnp.float32)]   # fc1 f32 accumulator
        dims = ("parallel", "arbitrary")

    out = pl.pallas_call(
        kernel,
        out_shape=jax.ShapeDtypeStruct((B_pad, out_dim), jnp.float32),
        grid=grid,
        in_specs=in_specs,
        out_specs=out_specs,
        scratch_shapes=scratch,
        compiler_params=pltpu.CompilerParams(
            dimension_semantics=dims,
            vmem_limit_bytes=48 * 1024 * 1024,   # safe on v7x, ample on v5e/v6e
        ),
    )(*inputs)

    out = out[:B]                        # drop batch padding rows
    if has_head:
        out = out[:, :n_class]           # drop lane-padded logit columns
    return out


# ----------------------------------------------------------------------------
# Reference (plain JAX, mirrors the kernel's bf16/f32 numerics) for sanity check
# ----------------------------------------------------------------------------
def reference_forward(params, x_dict, modality, n_class):
    x = x_dict[modality]
    _, c, h, w = x.shape
    K = c * h * w
    x = x.reshape(-1, K).astype(jnp.bfloat16)
    w1t, _ = params["fc1"]
    if w1t.shape[0] > K:                                  # fc1 rows were padded
        x = jnp.pad(x, ((0, 0), (0, w1t.shape[0] - K)))

    def lin(h_in, name, relu):
        w_t, b = params[name]
        y = jnp.dot(h_in.astype(jnp.bfloat16), w_t,
                    preferred_element_type=jnp.float32) + b
        return jnp.maximum(y, 0.0) if relu else y

    hdd = lin(x, "fc1", True)
    hdd = lin(hdd, "fc2", True)
    hdd = lin(hdd, "fc3", True)
    if n_class:
        hdd = lin(hdd, "head0", True)
        hdd = lin(hdd, "head1", False)
        hdd = hdd[:, :n_class]
    return hdd


if __name__ == "__main__":
    # Small, module-consistent shapes: input_size=16, n_bands=4, batch=2.
    input_size, n_bands, batch = 16, 4, 2
    n_class = 10
    modality = "s2"

    key = jax.random.PRNGKey(0)
    k_params, k_x = jax.random.split(key)

    params = init_params(k_params, input_size, n_bands, n_class)
    x = jax.random.normal(k_x, (batch, n_bands, input_size, input_size),
                          dtype=jnp.float32)
    x_dict = {modality: x}

    out = fully_connected_network_forward(params, x_dict, modality, n_class)
    out = jax.block_until_ready(out)

    ref = reference_forward(params, x_dict, modality, n_class)
    assert out.shape == (batch, n_class), out.shape
    max_err = float(jnp.max(jnp.abs(out - ref)))
    assert jnp.allclose(out, ref, atol=2e-2, rtol=2e-2), f"mismatch: {max_err}"

    print("KERNEL_OK")
</pallas_src>

<mosaic_0001>
module attributes {stable_mosaic.version = 11 : i64} {
  func.func @_fused_mlp_single_kernel(%arg0: i32, %arg1: memref<8x1024xbf16, #tpu.memory_space<vmem>>, %arg2: memref<1024x512xbf16, #tpu.memory_space<vmem>>, %arg3: memref<1x512xf32, #tpu.memory_space<vmem>>, %arg4: memref<512x512xbf16, #tpu.memory_space<vmem>>, %arg5: memref<1x512xf32, #tpu.memory_space<vmem>>, %arg6: memref<512x512xbf16, #tpu.memory_space<vmem>>, %arg7: memref<1x512xf32, #tpu.memory_space<vmem>>, %arg8: memref<512x1024xbf16, #tpu.memory_space<vmem>>, %arg9: memref<1x1024xf32, #tpu.memory_space<vmem>>, %arg10: memref<1024x128xbf16, #tpu.memory_space<vmem>>, %arg11: memref<1x128xf32, #tpu.memory_space<vmem>>, %arg12: memref<8x128xf32, #tpu.memory_space<vmem>>) attributes {dimension_semantics = [#tpu.dimension_semantics<parallel>], iteration_bounds = array<i64: 1>, scalar_prefetch = 0 : i64, scratch_operands = 0 : i64, tpu.core_type = #tpu.core_type<tc>, window_params = [{transform_indices = @transform_0, window_bounds = array<i64: 8, 1024>}, {pipeline_mode = #tpu.pipeline_mode<synchronous>, transform_indices = @transform_1, window_bounds = array<i64: 1024, 512>}, {pipeline_mode = #tpu.pipeline_mode<synchronous>, transform_indices = @transform_2, window_bounds = array<i64: 1, 512>}, {pipeline_mode = #tpu.pipeline_mode<synchronous>, transform_indices = @transform_3, window_bounds = array<i64: 512, 512>}, {pipeline_mode = #tpu.pipeline_mode<synchronous>, transform_indices = @transform_4, window_bounds = array<i64: 1, 512>}, {pipeline_mode = #tpu.pipeline_mode<synchronous>, transform_indices = @transform_5, window_bounds = array<i64: 512, 512>}, {pipeline_mode = #tpu.pipeline_mode<synchronous>, transform_indices = @transform_6, window_bounds = array<i64: 1, 512>}, {pipeline_mode = #tpu.pipeline_mode<synchronous>, transform_indices = @transform_7, window_bounds = array<i64: 512, 1024>}, {pipeline_mode = #tpu.pipeline_mode<synchronous>, transform_indices = @transform_8, window_bounds = array<i64: 1, 1024>}, {pipeline_mode = #tpu.pipeline_mode<synchronous>, transform_indices = @transform_9, window_bounds = array<i64: 1024, 128>}, {pipeline_mode = #tpu.pipeline_mode<synchronous>, transform_indices = @transform_10, window_bounds = array<i64: 1, 128>}, {transform_indices = @transform_11, window_bounds = array<i64: 8, 128>}]} {
    %c0 = arith.constant 0 : index
    %c0_0 = arith.constant 0 : index
    %0 = vector.load %arg1[%c0, %c0_0] : memref<8x1024xbf16, #tpu.memory_space<vmem>>, vector<8x1024xbf16>
    %c0_1 = arith.constant 0 : index
    %c0_2 = arith.constant 0 : index
    %1 = vector.load %arg2[%c0_1, %c0_2] : memref<1024x512xbf16, #tpu.memory_space<vmem>>, vector<1024x512xbf16>
    %cst = arith.constant dense<0.000000e+00> : vector<8x512xf32>
    %2 = tpu.matmul %0, %1, %cst {dimension_numbers = #tpu.dot_dimension_numbers<[1], [0], [0], [1], [0, 0, 1, 1], [], []>} : vector<8x1024xbf16>, vector<1024x512xbf16>, vector<8x512xf32> -> vector<8x512xf32>
    %c0_3 = arith.constant 0 : index
    %c0_4 = arith.constant 0 : index
    %3 = vector.load %arg3[%c0_3, %c0_4] : memref<1x512xf32, #tpu.memory_space<vmem>>, vector<1x512xf32>
    %4 = vector.broadcast %3 : vector<1x512xf32> to vector<8x512xf32>
    %5 = arith.addf %2, %4 : vector<8x512xf32>
    %cst_5 = arith.constant 0.000000e+00 : f32
    %6 = vector.broadcast %cst_5 : f32 to vector<8x512xf32>
    %7 = arith.maximumf %5, %6 : vector<8x512xf32>
    %8 = arith.truncf %7 : vector<8x512xf32> to vector<8x512xbf16>
    %c0_6 = arith.constant 0 : index
    %c0_7 = arith.constant 0 : index
    %9 = vector.load %arg4[%c0_6, %c0_7] : memref<512x512xbf16, #tpu.memory_space<vmem>>, vector<512x512xbf16>
    %cst_8 = arith.constant dense<0.000000e+00> : vector<8x512xf32>
    %10 = tpu.matmul %8, %9, %cst_8 {dimension_numbers = #tpu.dot_dimension_numbers<[1], [0], [0], [1], [0, 0, 1, 1], [], []>} : vector<8x512xbf16>, vector<512x512xbf16>, vector<8x512xf32> -> vector<8x512xf32>
    %c0_9 = arith.constant 0 : index
    %c0_10 = arith.constant 0 : index
    %11 = vector.load %arg5[%c0_9, %c0_10] : memref<1x512xf32, #tpu.memory_space<vmem>>, vector<1x512xf32>
    %12 = vector.broadcast %11 : vector<1x512xf32> to vector<8x512xf32>
    %13 = arith.addf %10, %12 : vector<8x512xf32>
    %cst_11 = arith.constant 0.000000e+00 : f32
    %14 = vector.broadcast %cst_11 : f32 to vector<8x512xf32>
    %15 = arith.maximumf %13, %14 : vector<8x512xf32>
    %16 = arith.truncf %15 : vector<8x512xf32> to vector<8x512xbf16>
    %c0_12 = arith.constant 0 : index
    %c0_13 = arith.constant 0 : index
    %17 = vector.load %arg6[%c0_12, %c0_13] : memref<512x512xbf16, #tpu.memory_space<vmem>>, vector<512x512xbf16>
    %cst_14 = arith.constant dense<0.000000e+00> : vector<8x512xf32>
    %18 = tpu.matmul %16, %17, %cst_14 {dimension_numbers = #tpu.dot_dimension_numbers<[1], [0], [0], [1], [0, 0, 1, 1], [], []>} : vector<8x512xbf16>, vector<512x512xbf16>, vector<8x512xf32> -> vector<8x512xf32>
    %c0_15 = arith.constant 0 : index
    %c0_16 = arith.constant 0 : index
    %19 = vector.load %arg7[%c0_15, %c0_16] : memref<1x512xf32, #tpu.memory_space<vmem>>, vector<1x512xf32>
    %20 = vector.broadcast %19 : vector<1x512xf32> to vector<8x512xf32>
    %21 = arith.addf %18, %20 : vector<8x512xf32>
    %cst_17 = arith.constant 0.000000e+00 : f32
    %22 = vector.broadcast %cst_17 : f32 to vector<8x512xf32>
    %23 = arith.maximumf %21, %22 : vector<8x512xf32>
    %24 = arith.truncf %23 : vector<8x512xf32> to vector<8x512xbf16>
    %c0_18 = arith.constant 0 : index
    %c0_19 = arith.constant 0 : index
    %25 = vector.load %arg8[%c0_18, %c0_19] : memref<512x1024xbf16, #tpu.memory_space<vmem>>, vector<512x1024xbf16>
    %cst_20 = arith.constant dense<0.000000e+00> : vector<8x1024xf32>
    %26 = tpu.matmul %24, %25, %cst_20 {dimension_numbers = #tpu.dot_dimension_numbers<[1], [0], [0], [1], [0, 0, 1, 1], [], []>} : vector<8x512xbf16>, vector<512x1024xbf16>, vector<8x1024xf32> -> vector<8x1024xf32>
    %c0_21 = arith.constant 0 : index
    %c0_22 = arith.constant 0 : index
    %27 = vector.load %arg9[%c0_21, %c0_22] : memref<1x1024xf32, #tpu.memory_space<vmem>>, vector<1x1024xf32>
    %28 = vector.broadcast %27 : vector<1x1024xf32> to vector<8x1024xf32>
    %29 = arith.addf %26, %28 : vector<8x1024xf32>
    %cst_23 = arith.constant 0.000000e+00 : f32
    %30 = vector.broadcast %cst_23 : f32 to vector<8x1024xf32>
    %31 = arith.maximumf %29, %30 : vector<8x1024xf32>
    %32 = arith.truncf %31 : vector<8x1024xf32> to vector<8x1024xbf16>
    %c0_24 = arith.constant 0 : index
    %c0_25 = arith.constant 0 : index
    %33 = vector.load %arg10[%c0_24, %c0_25] : memref<1024x128xbf16, #tpu.memory_space<vmem>>, vector<1024x128xbf16>
    %cst_26 = arith.constant dense<0.000000e+00> : vector<8x128xf32>
    %34 = tpu.matmul %32, %33, %cst_26 {dimension_numbers = #tpu.dot_dimension_numbers<[1], [0], [0], [1], [0, 0, 1, 1], [], []>} : vector<8x1024xbf16>, vector<1024x128xbf16>, vector<8x128xf32> -> vector<8x128xf32>
    %c0_27 = arith.constant 0 : index
    %c0_28 = arith.constant 0 : index
    %35 = vector.load %arg11[%c0_27, %c0_28] : memref<1x128xf32, #tpu.memory_space<vmem>>, vector<1x128xf32>
    %36 = vector.broadcast %35 : vector<1x128xf32> to vector<8x128xf32>
    %37 = arith.addf %34, %36 : vector<8x128xf32>
    %c0_29 = arith.constant 0 : index
    %c0_30 = arith.constant 0 : index
    %38 = vector.load %arg12[%c0_29, %c0_30] : memref<8x128xf32, #tpu.memory_space<vmem>>, vector<8x128xf32>
    tpu.vector_store %arg12[%c0_29, %c0_30], %37 {strides = array<i32>} : memref<8x128xf32, #tpu.memory_space<vmem>>, vector<8x128xf32>,
    return
  }
  func.func @transform_0(%arg0: i32) -> (i32, i32) {
    %c0_i32 = arith.constant 0 : i32
    %c0_i32_0 = arith.constant 0 : i32
    return %arg0, %c0_i32 : i32, i32
  }
  func.func @transform_1(%arg0: i32) -> (i32, i32) {
    %c0_i32 = arith.constant 0 : i32
    %c0_i32_0 = arith.constant 0 : i32
    %c0_i32_1 = arith.constant 0 : i32
    return %c0_i32, %c0_i32_0 : i32, i32
  }
  func.func @transform_2(%arg0: i32) -> (i32, i32) {
    %c0_i32 = arith.constant 0 : i32
    %c0_i32_0 = arith.constant 0 : i32
    %c0_i32_1 = arith.constant 0 : i32
    return %c0_i32, %c0_i32_0 : i32, i32
  }
  func.func @transform_3(%arg0: i32) -> (i32, i32) {
    %c0_i32 = arith.constant 0 : i32
    %c0_i32_0 = arith.constant 0 : i32
    %c0_i32_1 = arith.constant 0 : i32
    return %c0_i32, %c0_i32_0 : i32, i32
  }
  func.func @transform_4(%arg0: i32) -> (i32, i32) {
    %c0_i32 = arith.constant 0 : i32
    %c0_i32_0 = arith.constant 0 : i32
    %c0_i32_1 = arith.constant 0 : i32
    return %c0_i32, %c0_i32_0 : i32, i32
  }
  func.func @transform_5(%arg0: i32) -> (i32, i32) {
    %c0_i32 = arith.constant 0 : i32
    %c0_i32_0 = arith.constant 0 : i32
    %c0_i32_1 = arith.constant 0 : i32
    return %c0_i32, %c0_i32_0 : i32, i32
  }
  func.func @transform_6(%arg0: i32) -> (i32, i32) {
    %c0_i32 = arith.constant 0 : i32
    %c0_i32_0 = arith.constant 0 : i32
    %c0_i32_1 = arith.constant 0 : i32
    return %c0_i32, %c0_i32_0 : i32, i32
  }
  func.func @transform_7(%arg0: i32) -> (i32, i32) {
    %c0_i32 = arith.constant 0 : i32
    %c0_i32_0 = arith.constant 0 : i32
    %c0_i32_1 = arith.constant 0 : i32
    return %c0_i32, %c0_i32_0 : i32, i32
  }
  func.func @transform_8(%arg0: i32) -> (i32, i32) {
    %c0_i32 = arith.constant 0 : i32
    %c0_i32_0 = arith.constant 0 : i32
    %c0_i32_1 = arith.constant 0 : i32
    return %c0_i32, %c0_i32_0 : i32, i32
  }
  func.func @transform_9(%arg0: i32) -> (i32, i32) {
    %c0_i32 = arith.constant 0 : i32
    %c0_i32_0 = arith.constant 0 : i32
    %c0_i32_1 = arith.constant 0 : i32
    return %c0_i32, %c0_i32_0 : i32, i32
  }
  func.func @transform_10(%arg0: i32) -> (i32, i32) {
    %c0_i32 = arith.constant 0 : i32
    %c0_i32_0 = arith.constant 0 : i32
    %c0_i32_1 = arith.constant 0 : i32
    return %c0_i32, %c0_i32_0 : i32, i32
  }
  func.func @transform_11(%arg0: i32) -> (i32, i32) {
    %c0_i32 = arith.constant 0 : i32
    %c0_i32_0 = arith.constant 0 : i32
    return %arg0, %c0_i32 : i32, i32
  }
}

</mosaic_0001>

<llo_original>
// kernel: tpu_custom_call.1
$region0: #{tpu_custom_call.1}
  #allocation0 [shape = 'u32[]', space=smem, size = 0x4, offset = 0x4, fixed_abs, tag = 'smem constant byte address 0x4 - core index']
  #allocation1 [shape = 'u32[144,128]{1,0:T(1,128)}', space=vmem, size = 0x12000, scoped, tag = 'internal scratch']
  %s0 = inlined_call_operand.hbm [shape: bf16[8,1024], index: 0, kind: input, shape index: {}]
  %s1 = inlined_call_operand.hbm [shape: bf16[1024,512], index: 1, kind: input, shape index: {}]
  %s2 = inlined_call_operand.vmem [shape: f32[1,512], index: 2, kind: input, shape index: {}]
  %s3 = inlined_call_operand.hbm [shape: bf16[512,512], index: 3, kind: input, shape index: {}]
  %s4 = inlined_call_operand.hbm [shape: f32[1,512], index: 4, kind: input, shape index: {}]
  %s5 = inlined_call_operand.hbm [shape: bf16[512,512], index: 5, kind: input, shape index: {}]
  %s6 = inlined_call_operand.vmem [shape: f32[1,512], index: 6, kind: input, shape index: {}]
  %s7 = inlined_call_operand.hbm [shape: bf16[512,1024], index: 7, kind: input, shape index: {}]
  %s8 = inlined_call_operand.vmem [shape: f32[1,1024], index: 8, kind: input, shape index: {}]
  %s9 = inlined_call_operand.hbm [shape: bf16[1024,128], index: 9, kind: input, shape index: {}]
  %s10 = inlined_call_operand.vmem [shape: f32[1,128], index: 10, kind: input, shape index: {}]
  %s11 = inlined_call_operand.hbm [shape: f32[8,128], index: 11, kind: output, shape index: {}]
  %s12 = sld [smem:[#allocation0]]
  $region82: #{tpu_custom_call.1} parent=0
    _
  %s14 = ssub.s32 1, %s12
  %s15 = scalar_select 0, %s14, %s12
  $region1: #{tpu_custom_call.1} parent=0
    #allocation2 [shape = 'u8[16384]{0}', space=vmem, size = 0x4000, scoped, tag = 'input window, operand 0, single buffered']
    #allocation3 [shape = 's32[1]{0}', space=sflag, size = 0x4, scoped, tag = 'scoped memory for tpu_custom_call.1']
    #allocation4 [shape = 's32[1]{0}', space=sflag, size = 0x4, scoped, tag = 'scoped memory for tpu_custom_call.1']
    #allocation5 [shape = 'u8[1048576]{0}', space=vmem, size = 0x100000, scoped, tag = 'input window, operand 1, single buffered']
    #allocation6 [shape = 's32[1]{0}', space=sflag, size = 0x4, scoped, tag = 'scoped memory for tpu_custom_call.1']
    #allocation7 [shape = 'u8[524288]{0}', space=vmem, size = 0x80000, scoped, tag = 'input window, operand 3, single buffered']
    #allocation8 [shape = 'u8[2048]{0}', space=vmem, size = 0x800, scoped, tag = 'input window, operand 4, single buffered']
    #allocation9 [shape = 's32[1]{0}', space=sflag, size = 0x4, scoped, tag = 'scoped memory for tpu_custom_call.1']
    #allocation10 [shape = 'u8[524288]{0}', space=vmem, size = 0x80000, scoped, tag = 'input window, operand 5, single buffered']
    #allocation11 [shape = 'u8[1048576]{0}', space=vmem, size = 0x100000, scoped, tag = 'input window, operand 7, single buffered']
    #allocation12 [shape = 's32[1]{0}', space=sflag, size = 0x4, scoped, tag = 'scoped memory for tpu_custom_call.1']
    #allocation13 [shape = 'u8[262144]{0}', space=vmem, size = 0x40000, scoped, tag = 'input window, operand 9, single buffered']
    #allocation14 [shape = 'u8[4096]{0}', space=vmem, size = 0x1000, scoped, tag = 'output window, operand 0, single buffered']
    %16 = vsyncpa [#allocation3], 0
    %17 = vsyncpa [#allocation6], 0
    %18 = vsyncpa [#allocation9], 0
    %19 = vsyncpa [#allocation12], 0
    %20 = vsyncpa [#allocation4], 0
    // Predicated region
    $region2: #{tpu_custom_call.1} parent=1 // pred_check
      _
    $region3: #{tpu_custom_call.1} parent=1 // pred_check_branch
      %22 = sbr.rel (0) target = $region5
    $region4: #{tpu_custom_call.1} parent=1 // pred_region
      %s24 = ssub.s32 512, 512
      %25 = vsyncadd [#allocation3], %s24
      %s27 = sshll.u32 [#allocation2], 4
      %s28 = int_to_ptr.vmem [resolvable:$true] %s27
      %30 = dma.hbm_to_vmem [thread:$0]  %s0, 512, %s28, [#allocation3]
    $region5: #{tpu_custom_call.1} parent=1 // pred_fallthru
      _
    // Predicated region
    $region6: #{tpu_custom_call.1} parent=1 // pred_check
      _
    $region7: #{tpu_custom_call.1} parent=1 // pred_check_branch
      %32 = sbr.rel (0) target = $region9
    $region8: #{tpu_custom_call.1} parent=1 // pred_region
      %s34 = ssub.s32 32768, 32768
      %35 = vsyncadd [#allocation6], %s34
      %s36 = sshll.u32 [#allocation5], 4
      %s37 = int_to_ptr.vmem [resolvable:$true] %s36
      %42 = dma.hbm_to_vmem [thread:$0]  %s1, 32768, %s37, [#allocation6], 256, 256, 16
    $region9: #{tpu_custom_call.1} parent=1 // pred_fallthru
      _
    // Predicated region
    $region10: #{tpu_custom_call.1} parent=1 // pred_check
      _
    $region11: #{tpu_custom_call.1} parent=1 // pred_check_branch
      %44 = sbr.rel (0) target = $region13
    $region12: #{tpu_custom_call.1} parent=1 // pred_region
      _
    $region13: #{tpu_custom_call.1} parent=1 // pred_fallthru
      _
    // Predicated region
    $region14: #{tpu_custom_call.1} parent=1 // pred_check
      _
    $region15: #{tpu_custom_call.1} parent=1 // pred_check_branch
      %46 = sbr.rel (0) target = $region17
    $region16: #{tpu_custom_call.1} parent=1 // pred_region
      %s48 = ssub.s32 16384, 16384
      %49 = vsyncadd [#allocation6], %s48
      %s50 = sshll.u32 [#allocation7], 4
      %s51 = int_to_ptr.vmem [resolvable:$true] %s50
      %56 = dma.hbm_to_vmem [thread:$0]  %s3, 16384, %s51, [#allocation6], 256, 256, 16
    $region17: #{tpu_custom_call.1} parent=1 // pred_fallthru
      _
    // Predicated region
    $region18: #{tpu_custom_call.1} parent=1 // pred_check
      _
    $region19: #{tpu_custom_call.1} parent=1 // pred_check_branch
      %58 = sbr.rel (0) target = $region21
    $region20: #{tpu_custom_call.1} parent=1 // pred_region
      %s60 = ssub.s32 64, 64
      %61 = vsyncadd [#allocation9], %s60
      %s63 = sshll.u32 [#allocation8], 4
      %s64 = int_to_ptr.vmem [resolvable:$true] %s63
      %66 = dma.hbm_to_vmem [thread:$0]  %s4, 64, %s64, [#allocation9]
    $region21: #{tpu_custom_call.1} parent=1 // pred_fallthru
      _
    // Predicated region
    $region22: #{tpu_custom_call.1} parent=1 // pred_check
      _
    $region23: #{tpu_custom_call.1} parent=1 // pred_check_branch
      %68 = sbr.rel (0) target = $region25
    $region24: #{tpu_custom_call.1} parent=1 // pred_region
      %s70 = ssub.s32 16384, 16384
      %71 = vsyncadd [#allocation9], %s70
      %s72 = sshll.u32 [#allocation10], 4
      %s73 = int_to_ptr.vmem [resolvable:$true] %s72
      %78 = dma.hbm_to_vmem [thread:$0]  %s5, 16384, %s73, [#allocation9], 256, 256, 16
    $region25: #{tpu_custom_call.1} parent=1 // pred_fallthru
      _
    // Predicated region
    $region26: #{tpu_custom_call.1} parent=1 // pred_check
      _
    $region27: #{tpu_custom_call.1} parent=1 // pred_check_branch
      %80 = sbr.rel (0) target = $region29
    $region28: #{tpu_custom_call.1} parent=1 // pred_region
      _
    $region29: #{tpu_custom_call.1} parent=1 // pred_fallthru
      _
    // Predicated region
    $region30: #{tpu_custom_call.1} parent=1 // pred_check
      _
    $region31: #{tpu_custom_call.1} parent=1 // pred_check_branch
      %82 = sbr.rel (0) target = $region33
    $region32: #{tpu_custom_call.1} parent=1 // pred_region
      %s84 = ssub.s32 32768, 32768
      %85 = vsyncadd [#allocation12], %s84
      %s86 = sshll.u32 [#allocation11], 4
      %s87 = int_to_ptr.vmem [resolvable:$true] %s86
      %92 = dma.hbm_to_vmem [thread:$0]  %s7, 32768, %s87, [#allocation12], 512, 512, 32
    $region33: #{tpu_custom_call.1} parent=1 // pred_fallthru
      _
    // Predicated region
    $region34: #{tpu_custom_call.1} parent=1 // pred_check
      _
    $region35: #{tpu_custom_call.1} parent=1 // pred_check_branch
      %94 = sbr.rel (0) target = $region37
    $region36: #{tpu_custom_call.1} parent=1 // pred_region
      _
    $region37: #{tpu_custom_call.1} parent=1 // pred_fallthru
      _
    // Predicated region
    $region38: #{tpu_custom_call.1} parent=1 // pred_check
      _
    $region39: #{tpu_custom_call.1} parent=1 // pred_check_branch
      %96 = sbr.rel (0) target = $region41
    $region40: #{tpu_custom_call.1} parent=1 // pred_region
      %s98 = ssub.s32 8192, 8192
      %99 = vsyncadd [#allocation12], %s98
      %s100 = sshll.u32 [#allocation13], 4
      %s101 = int_to_ptr.vmem [resolvable:$true] %s100
      %106 = dma.hbm_to_vmem [thread:$0]  %s9, 8192, %s101, [#allocation12], 64, 64, 4
    $region41: #{tpu_custom_call.1} parent=1 // pred_fallthru
      _
    // Predicated region
    $region42: #{tpu_custom_call.1} parent=1 // pred_check
      _
    $region43: #{tpu_custom_call.1} parent=1 // pred_check_branch
      %108 = sbr.rel (0) target = $region45
    $region44: #{tpu_custom_call.1} parent=1 // pred_region
      _
    $region45: #{tpu_custom_call.1} parent=1 // pred_fallthru
      _
    // Predicated region
    $region46: #{tpu_custom_call.1} parent=1 // pred_check
      _
    $region47: #{tpu_custom_call.1} parent=1 // pred_check_branch
      %110 = sbr.rel (0) target = $region49
    $region48: #{tpu_custom_call.1} parent=1 // pred_region
      %111 = dma.done [#allocation3], 512
    $region49: #{tpu_custom_call.1} parent=1 // pred_fallthru
      _
    // Predicated region
    $region50: #{tpu_custom_call.1} parent=1 // pred_check
      _
    $region51: #{tpu_custom_call.1} parent=1 // pred_check_branch
      %113 = sbr.rel (0) target = $region53
    $region52: #{tpu_custom_call.1} parent=1 // pred_region
      %114 = dma.done [#allocation6], 32768
    $region53: #{tpu_custom_call.1} parent=1 // pred_fallthru
      _
    // Predicated region
    $region54: #{tpu_custom_call.1} parent=1 // pred_check
      _
    $region55: #{tpu_custom_call.1} parent=1 // pred_check_branch
      %116 = sbr.rel (0) target = $region57
    $region56: #{tpu_custom_call.1} parent=1 // pred_region
      %117 = dma.done [#allocation6], 16384
    $region57: #{tpu_custom_call.1} parent=1 // pred_fallthru
      _
    // Predicated region
    $region58: #{tpu_custom_call.1} parent=1 // pred_check
      _
    $region59: #{tpu_custom_call.1} parent=1 // pred_check_branch
      %119 = sbr.rel (0) target = $region61
    $region60: #{tpu_custom_call.1} parent=1 // pred_region
      %120 = dma.done [#allocation9], 64
    $region61: #{tpu_custom_call.1} parent=1 // pred_fallthru
      _
    // Predicated region
    $region62: #{tpu_custom_call.1} parent=1 // pred_check
      _
    $region63: #{tpu_custom_call.1} parent=1 // pred_check_branch
      %122 = sbr.rel (0) target = $region65
    $region64: #{tpu_custom_call.1} parent=1 // pred_region
      %123 = dma.done [#allocation9], 16384
    $region65: #{tpu_custom_call.1} parent=1 // pred_fallthru
      _
    // Predicated region
    $region66: #{tpu_custom_call.1} parent=1 // pred_check
      _
    $region67: #{tpu_custom_call.1} parent=1 // pred_check_branch
      %125 = sbr.rel (0) target = $region69
    $region68: #{tpu_custom_call.1} parent=1 // pred_region
      %126 = dma.done [#allocation12], 32768
    $region69: #{tpu_custom_call.1} parent=1 // pred_fallthru
      _
    // Predicated region
    $region70: #{tpu_custom_call.1} parent=1 // pred_check
      _
    $region71: #{tpu_custom_call.1} parent=1 // pred_check_branch
      %128 = sbr.rel (0) target = $region73
    $region72: #{tpu_custom_call.1} parent=1 // pred_region
      %129 = dma.done [#allocation12], 8192
    $region73: #{tpu_custom_call.1} parent=1 // pred_fallthru
      _
    %v131 = vld [vmem:[#allocation2] sm:$0xff]
    %v132 = vld [vmem:[#allocation2 + $0x8] sm:$0xff]
    %v133 = vld [vmem:[#allocation2 + $0x10] sm:$0xff]
    %v134 = vld [vmem:[#allocation2 + $0x18] sm:$0xff]
    %v135 = vld [vmem:[#allocation5] sm:$0xff]
    %v136 = vld [vmem:[#allocation5 + $0x8] sm:$0xff]
    %v137 = vld [vmem:[#allocation5 + $0x10] sm:$0xff]
    %v138 = vld [vmem:[#allocation5 + $0x18] sm:$0xff]
    %v139 = vld [vmem:[#allocation5 + $0x20] sm:$0xff]
    %v140 = vld [vmem:[#allocation5 + $0x28] sm:$0xff]
    %v141 = vld [vmem:[#allocation5 + $0x30] sm:$0xff]
    %v142 = vld [vmem:[#allocation5 + $0x38] sm:$0xff]
    %v143 = vld [vmem:[#allocation5 + $0x40] sm:$0xff]
    %v144 = vld [vmem:[#allocation5 + $0x48] sm:$0xff]
    %v145 = vld [vmem:[#allocation5 + $0x50] sm:$0xff]
    %v146 = vld [vmem:[#allocation5 + $0x58] sm:$0xff]
    %v147 = vld [vmem:[#allocation5 + $0x60] sm:$0xff]
    %v148 = vld [vmem:[#allocation5 + $0x68] sm:$0xff]
    %v149 = vld [vmem:[#allocation5 + $0x70] sm:$0xff]
    %v150 = vld [vmem:[#allocation5 + $0x78] sm:$0xff]
    %v151 = vld [vmem:[#allocation5 + $0x80] sm:$0xff]
    %v152 = vld [vmem:[#allocation5 + $0x88] sm:$0xff]
    %v153 = vld [vmem:[#allocation5 + $0x90] sm:$0xff]
    %v154 = vld [vmem:[#allocation5 + $0x98] sm:$0xff]
    %v155 = vld [vmem:[#allocation5 + $0xa0] sm:$0xff]
    %v156 = vld [vmem:[#allocation5 + $0xa8] sm:$0xff]
    %v157 = vld [vmem:[#allocation5 + $0xb0] sm:$0xff]
    %v158 = vld [vmem:[#allocation5 + $0xb8] sm:$0xff]
    %v159 = vld [vmem:[#allocation5 + $0xc0] sm:$0xff]
    %v160 = vld [vmem:[#allocation5 + $0xc8] sm:$0xff]
    %v161 = vld [vmem:[#allocation5 + $0xd0] sm:$0xff]
    %v162 = vld [vmem:[#allocation5 + $0xd8] sm:$0xff]
    %v163 = vld [vmem:[#allocation5 + $0xe0] sm:$0xff]
    %v164 = vld [vmem:[#allocation5 + $0xe8] sm:$0xff]
    %v165 = vld [vmem:[#allocation5 + $0xf0] sm:$0xff]
    %v166 = vld [vmem:[#allocation5 + $0xf8] sm:$0xff]
    %v167 = vld [vmem:[#allocation5 + $0x100] sm:$0xff]
    %v168 = vld [vmem:[#allocation5 + $0x108] sm:$0xff]
    %v169 = vld [vmem:[#allocation5 + $0x110] sm:$0xff]
    %v170 = vld [vmem:[#allocation5 + $0x118] sm:$0xff]
    %v171 = vld [vmem:[#allocation5 + $0x120] sm:$0xff]
    %v172 = vld [vmem:[#allocation5 + $0x128] sm:$0xff]
    %v173 = vld [vmem:[#allocation5 + $0x130] sm:$0xff]
    %v174 = vld [vmem:[#allocation5 + $0x138] sm:$0xff]
    %v175 = vld [vmem:[#allocation5 + $0x140] sm:$0xff]
    %v176 = vld [vmem:[#allocation5 + $0x148] sm:$0xff]
    %v177 = vld [vmem:[#allocation5 + $0x150] sm:$0xff]
    %v178 = vld [vmem:[#allocation5 + $0x158] sm:$0xff]
    %v179 = vld [vmem:[#allocation5 + $0x160] sm:$0xff]
    %v180 = vld [vmem:[#allocation5 + $0x168] sm:$0xff]
    %v181 = vld [vmem:[#allocation5 + $0x170] sm:$0xff]
    %v182 = vld [vmem:[#allocation5 + $0x178] sm:$0xff]
    %v183 = vld [vmem:[#allocation5 + $0x180] sm:$0xff]
    %v184 = vld [vmem:[#allocation5 + $0x188] sm:$0xff]
    %v185 = vld [vmem:[#allocation5 + $0x190] sm:$0xff]
    %v186 = vld [vmem:[#allocation5 + $0x198] sm:$0xff]
    %v187 = vld [vmem:[#allocation5 + $0x1a0] sm:$0xff]
    %v188 = vld [vmem:[#allocation5 + $0x1a8] sm:$0xff]
    %v189 = vld [vmem:[#allocation5 + $0x1b0] sm:$0xff]
    %v190 = vld [vmem:[#allocation5 + $0x1b8] sm:$0xff]
    %v191 = vld [vmem:[#allocation5 + $0x1c0] sm:$0xff]
    %v192 = vld [vmem:[#allocation5 + $0x1c8] sm:$0xff]
    %v193 = vld [vmem:[#allocation5 + $0x1d0] sm:$0xff]
    %v194 = vld [vmem:[#allocation5 + $0x1d8] sm:$0xff]
    %v195 = vld [vmem:[#allocation5 + $0x1e0] sm:$0xff]
    %v196 = vld [vmem:[#allocation5 + $0x1e8] sm:$0xff]
    %v197 = vld [vmem:[#allocation5 + $0x1f0] sm:$0xff]
    %v198 = vld [vmem:[#allocation5 + $0x1f8] sm:$0xff]
    %v199 = vld [vmem:[#allocation5 + $0x200] sm:$0xff]
    %v200 = vld [vmem:[#allocation5 + $0x208] sm:$0xff]
    %v201 = vld [vmem:[#allocation5 + $0x210] sm:$0xff]
    %v202 = vld [vmem:[#allocation5 + $0x218] sm:$0xff]
    %v203 = vld [vmem:[#allocation5 + $0x220] sm:$0xff]
    %v204 = vld [vmem:[#allocation5 + $0x228] sm:$0xff]
    %v205 = vld [vmem:[#allocation5 + $0x230] sm:$0xff]
    %v206 = vld [vmem:[#allocation5 + $0x238] sm:$0xff]
    %v207 = vld [vmem:[#allocation5 + $0x240] sm:$0xff]
    %v208 = vld [vmem:[#allocation5 + $0x248] sm:$0xff]
    %v209 = vld [vmem:[#allocation5 + $0x250] sm:$0xff]
    %v210 = vld [vmem:[#allocation5 + $0x258] sm:$0xff]
    %v211 = vld [vmem:[#allocation5 + $0x260] sm:$0xff]
    %v212 = vld [vmem:[#allocation5 + $0x268] sm:$0xff]
    %v213 = vld [vmem:[#allocation5 + $0x270] sm:$0xff]
    %v214 = vld [vmem:[#allocation5 + $0x278] sm:$0xff]
    %v215 = vld [vmem:[#allocation5 + $0x280] sm:$0xff]
    %v216 = vld [vmem:[#allocation5 + $0x288] sm:$0xff]
    %v217 = vld [vmem:[#allocation5 + $0x290] sm:$0xff]
    %v218 = vld [vmem:[#allocation5 + $0x298] sm:$0xff]
    %v219 = vld [vmem:[#allocation5 + $0x2a0] sm:$0xff]
    %v220 = vld [vmem:[#allocation5 + $0x2a8] sm:$0xff]
    %v221 = vld [vmem:[#allocation5 + $0x2b0] sm:$0xff]
    %v222 = vld [vmem:[#allocation5 + $0x2b8] sm:$0xff]
    %v223 = vld [vmem:[#allocation5 + $0x2c0] sm:$0xff]
    %v224 = vld [vmem:[#allocation5 + $0x2c8] sm:$0xff]
    %v225 = vld [vmem:[#allocation5 + $0x2d0] sm:$0xff]
    %v226 = vld [vmem:[#allocation5 + $0x2d8] sm:$0xff]
    %v227 = vld [vmem:[#allocation5 + $0x2e0] sm:$0xff]
    %v228 = vld [vmem:[#allocation5 + $0x2e8] sm:$0xff]
    %v229 = vld [vmem:[#allocation5 + $0x2f0] sm:$0xff]
    %v230 = vld [vmem:[#allocation5 + $0x2f8] sm:$0xff]
    %v231 = vld [vmem:[#allocation5 + $0x300] sm:$0xff]
    %v232 = vld [vmem:[#allocation5 + $0x308] sm:$0xff]
    %v233 = vld [vmem:[#allocation5 + $0x310] sm:$0xff]
    %v234 = vld [vmem:[#allocation5 + $0x318] sm:$0xff]
    %v235 = vld [vmem:[#allocation5 + $0x320] sm:$0xff]
    %v236 = vld [vmem:[#allocation5 + $0x328] sm:$0xff]
    %v237 = vld [vmem:[#allocation5 + $0x330] sm:$0xff]
    %v238 = vld [vmem:[#allocation5 + $0x338] sm:$0xff]
    %v239 = vld [vmem:[#allocation5 + $0x340] sm:$0xff]
    %v240 = vld [vmem:[#allocation5 + $0x348] sm:$0xff]
    %v241 = vld [vmem:[#allocation5 + $0x350] sm:$0xff]
    %v242 = vld [vmem:[#allocation5 + $0x358] sm:$0xff]
    %v243 = vld [vmem:[#allocation5 + $0x360] sm:$0xff]
    %v244 = vld [vmem:[#allocation5 + $0x368] sm:$0xff]
    %v245 = vld [vmem:[#allocation5 + $0x370] sm:$0xff]
    %v246 = vld [vmem:[#allocation5 + $0x378] sm:$0xff]
    %v247 = vld [vmem:[#allocation5 + $0x380] sm:$0xff]
    %v248 = vld [vmem:[#allocation5 + $0x388] sm:$0xff]
    %v249 = vld [vmem:[#allocation5 + $0x390] sm:$0xff]
    %v250 = vld [vmem:[#allocation5 + $0x398] sm:$0xff]
    %v251 = vld [vmem:[#allocation5 + $0x3a0] sm:$0xff]
    %v252 = vld [vmem:[#allocation5 + $0x3a8] sm:$0xff]
    %v253 = vld [vmem:[#allocation5 + $0x3b0] sm:$0xff]
    %v254 = vld [vmem:[#allocation5 + $0x3b8] sm:$0xff]
    %v255 = vld [vmem:[#allocation5 + $0x3c0] sm:$0xff]
    %v256 = vld [vmem:[#allocation5 + $0x3c8] sm:$0xff]
    %v257 = vld [vmem:[#allocation5 + $0x3d0] sm:$0xff]
    %v258 = vld [vmem:[#allocation5 + $0x3d8] sm:$0xff]
    %v259 = vld [vmem:[#allocation5 + $0x3e0] sm:$0xff]
    %v260 = vld [vmem:[#allocation5 + $0x3e8] sm:$0xff]
    %v261 = vld [vmem:[#allocation5 + $0x3f0] sm:$0xff]
    %v262 = vld [vmem:[#allocation5 + $0x3f8] sm:$0xff]
    %v263 = vld [vmem:[#allocation5 + $0x400] sm:$0xff]
    %v264 = vld [vmem:[#allocation5 + $0x408] sm:$0xff]
    %v265 = vld [vmem:[#allocation5 + $0x410] sm:$0xff]
    %v266 = vld [vmem:[#allocation5 + $0x418] sm:$0xff]
    %v267 = vld [vmem:[#allocation5 + $0x420] sm:$0xff]
    %v268 = vld [vmem:[#allocation5 + $0x428] sm:$0xff]
    %v269 = vld [vmem:[#allocation5 + $0x430] sm:$0xff]
    %v270 = vld [vmem:[#allocation5 + $0x438] sm:$0xff]
    %v271 = vld [vmem:[#allocation5 + $0x440] sm:$0xff]
    %v272 = vld [vmem:[#allocation5 + $0x448] sm:$0xff]
    %v273 = vld [vmem:[#allocation5 + $0x450] sm:$0xff]
    %v274 = vld [vmem:[#allocation5 + $0x458] sm:$0xff]
    %v275 = vld [vmem:[#allocation5 + $0x460] sm:$0xff]
    %v276 = vld [vmem:[#allocation5 + $0x468] sm:$0xff]
    %v277 = vld [vmem:[#allocation5 + $0x470] sm:$0xff]
    %v278 = vld [vmem:[#allocation5 + $0x478] sm:$0xff]
    %v279 = vld [vmem:[#allocation5 + $0x480] sm:$0xff]
    %v280 = vld [vmem:[#allocation5 + $0x488] sm:$0xff]
    %v281 = vld [vmem:[#allocation5 + $0x490] sm:$0xff]
    %v282 = vld [vmem:[#allocation5 + $0x498] sm:$0xff]
    %v283 = vld [vmem:[#allocation5 + $0x4a0] sm:$0xff]
    %v284 = vld [vmem:[#allocation5 + $0x4a8] sm:$0xff]
    %v285 = vld [vmem:[#allocation5 + $0x4b0] sm:$0xff]
    %v286 = vld [vmem:[#allocation5 + $0x4b8] sm:$0xff]
    %v287 = vld [vmem:[#allocation5 + $0x4c0] sm:$0xff]
    %v288 = vld [vmem:[#allocation5 + $0x4c8] sm:$0xff]
    %v289 = vld [vmem:[#allocation5 + $0x4d0] sm:$0xff]
    %v290 = vld [vmem:[#allocation5 + $0x4d8] sm:$0xff]
    %v291 = vld [vmem:[#allocation5 + $0x4e0] sm:$0xff]
    %v292 = vld [vmem:[#allocation5 + $0x4e8] sm:$0xff]
    %v293 = vld [vmem:[#allocation5 + $0x4f0] sm:$0xff]
    %v294 = vld [vmem:[#allocation5 + $0x4f8] sm:$0xff]
    %v295 = vld [vmem:[#allocation5 + $0x500] sm:$0xff]
    %v296 = vld [vmem:[#allocation5 + $0x508] sm:$0xff]
    %v297 = vld [vmem:[#allocation5 + $0x510] sm:$0xff]
    %v298 = vld [vmem:[#allocation5 + $0x518] sm:$0xff]
    %v299 = vld [vmem:[#allocation5 + $0x520] sm:$0xff]
    %v300 = vld [vmem:[#allocation5 + $0x528] sm:$0xff]
    %v301 = vld [vmem:[#allocation5 + $0x530] sm:$0xff]
    %v302 = vld [vmem:[#allocation5 + $0x538] sm:$0xff]
    %v303 = vld [vmem:[#allocation5 + $0x540] sm:$0xff]
    %v304 = vld [vmem:[#allocation5 + $0x548] sm:$0xff]
    %v305 = vld [vmem:[#allocation5 + $0x550] sm:$0xff]
    %v306 = vld [vmem:[#allocation5 + $0x558] sm:$0xff]
    %v307 = vld [vmem:[#allocation5 + $0x560] sm:$0xff]
    %v308 = vld [vmem:[#allocation5 + $0x568] sm:$0xff]
    %v309 = vld [vmem:[#allocation5 + $0x570] sm:$0xff]
    %v310 = vld [vmem:[#allocation5 + $0x578] sm:$0xff]
    %v311 = vld [vmem:[#allocation5 + $0x580] sm:$0xff]
    %v312 = vld [vmem:[#allocation5 + $0x588] sm:$0xff]
    %v313 = vld [vmem:[#allocation5 + $0x590] sm:$0xff]
    %v314 = vld [vmem:[#allocation5 + $0x598] sm:$0xff]
    %v315 = vld [vmem:[#allocation5 + $0x5a0] sm:$0xff]
    %v316 = vld [vmem:[#allocation5 + $0x5a8] sm:$0xff]
    %v317 = vld [vmem:[#allocation5 + $0x5b0] sm:$0xff]
    %v318 = vld [vmem:[#allocation5 + $0x5b8] sm:$0xff]
    %v319 = vld [vmem:[#allocation5 + $0x5c0] sm:$0xff]
    %v320 = vld [vmem:[#allocation5 + $0x5c8] sm:$0xff]
    %v321 = vld [vmem:[#allocation5 + $0x5d0] sm:$0xff]
    %v322 = vld [vmem:[#allocation5 + $0x5d8] sm:$0xff]
    %v323 = vld [vmem:[#allocation5 + $0x5e0] sm:$0xff]
    %v324 = vld [vmem:[#allocation5 + $0x5e8] sm:$0xff]
    %v325 = vld [vmem:[#allocation5 + $0x5f0] sm:$0xff]
    %v326 = vld [vmem:[#allocation5 + $0x5f8] sm:$0xff]
    %v327 = vld [vmem:[#allocation5 + $0x600] sm:$0xff]
    %v328 = vld [vmem:[#allocation5 + $0x608] sm:$0xff]
    %v329 = vld [vmem:[#allocation5 + $0x610] sm:$0xff]
    %v330 = vld [vmem:[#allocation5 + $0x618] sm:$0xff]
    %v331 = vld [vmem:[#allocation5 + $0x620] sm:$0xff]
    %v332 = vld [vmem:[#allocation5 + $0x628] sm:$0xff]
    %v333 = vld [vmem:[#allocation5 + $0x630] sm:$0xff]
    %v334 = vld [vmem:[#allocation5 + $0x638] sm:$0xff]
    %v335 = vld [vmem:[#allocation5 + $0x640] sm:$0xff]
    %v336 = vld [vmem:[#allocation5 + $0x648] sm:$0xff]
    %v337 = vld [vmem:[#allocation5 + $0x650] sm:$0xff]
    %v338 = vld [vmem:[#allocation5 + $0x658] sm:$0xff]
    %v339 = vld [vmem:[#allocation5 + $0x660] sm:$0xff]
    %v340 = vld [vmem:[#allocation5 + $0x668] sm:$0xff]
    %v341 = vld [vmem:[#allocation5 + $0x670] sm:$0xff]
    %v342 = vld [vmem:[#allocation5 + $0x678] sm:$0xff]
    %v343 = vld [vmem:[#allocation5 + $0x680] sm:$0xff]
    %v344 = vld [vmem:[#allocation5 + $0x688] sm:$0xff]
    %v345 = vld [vmem:[#allocation5 + $0x690] sm:$0xff]
    %v346 = vld [vmem:[#allocation5 + $0x698] sm:$0xff]
    %v347 = vld [vmem:[#allocation5 + $0x6a0] sm:$0xff]
    %v348 = vld [vmem:[#allocation5 + $0x6a8] sm:$0xff]
    %v349 = vld [vmem:[#allocation5 + $0x6b0] sm:$0xff]
    %v350 = vld [vmem:[#allocation5 + $0x6b8] sm:$0xff]
    %v351 = vld [vmem:[#allocation5 + $0x6c0] sm:$0xff]
    %v352 = vld [vmem:[#allocation5 + $0x6c8] sm:$0xff]
    %v353 = vld [vmem:[#allocation5 + $0x6d0] sm:$0xff]
    %v354 = vld [vmem:[#allocation5 + $0x6d8] sm:$0xff]
    %v355 = vld [vmem:[#allocation5 + $0x6e0] sm:$0xff]
    %v356 = vld [vmem:[#allocation5 + $0x6e8] sm:$0xff]
    %v357 = vld [vmem:[#allocation5 + $0x6f0] sm:$0xff]
    %v358 = vld [vmem:[#allocation5 + $0x6f8] sm:$0xff]
    %v359 = vld [vmem:[#allocation5 + $0x700] sm:$0xff]
    %v360 = vld [vmem:[#allocation5 + $0x708] sm:$0xff]
    %v361 = vld [vmem:[#allocation5 + $0x710] sm:$0xff]
    %v362 = vld [vmem:[#allocation5 + $0x718] sm:$0xff]
    %v363 = vld [vmem:[#allocation5 + $0x720] sm:$0xff]
    %v364 = vld [vmem:[#allocation5 + $0x728] sm:$0xff]
    %v365 = vld [vmem:[#allocation5 + $0x730] sm:$0xff]
    %v366 = vld [vmem:[#allocation5 + $0x738] sm:$0xff]
    %v367 = vld [vmem:[#allocation5 + $0x740] sm:$0xff]
    %v368 = vld [vmem:[#allocation5 + $0x748] sm:$0xff]
    %v369 = vld [vmem:[#allocation5 + $0x750] sm:$0xff]
    %v370 = vld [vmem:[#allocation5 + $0x758] sm:$0xff]
    %v371 = vld [vmem:[#allocation5 + $0x760] sm:$0xff]
    %v372 = vld [vmem:[#allocation5 + $0x768] sm:$0xff]
    %v373 = vld [vmem:[#allocation5 + $0x770] sm:$0xff]
    %v374 = vld [vmem:[#allocation5 + $0x778] sm:$0xff]
    %v375 = vld [vmem:[#allocation5 + $0x780] sm:$0xff]
    %v376 = vld [vmem:[#allocation5 + $0x788] sm:$0xff]
    %v377 = vld [vmem:[#allocation5 + $0x790] sm:$0xff]
    %v378 = vld [vmem:[#allocation5 + $0x798] sm:$0xff]
    %v379 = vld [vmem:[#allocation5 + $0x7a0] sm:$0xff]
    %v380 = vld [vmem:[#allocation5 + $0x7a8] sm:$0xff]
    %v381 = vld [vmem:[#allocation5 + $0x7b0] sm:$0xff]
    %v382 = vld [vmem:[#allocation5 + $0x7b8] sm:$0xff]
    %v383 = vld [vmem:[#allocation5 + $0x7c0] sm:$0xff]
    %v384 = vld [vmem:[#allocation5 + $0x7c8] sm:$0xff]
    %v385 = vld [vmem:[#allocation5 + $0x7d0] sm:$0xff]
    %v386 = vld [vmem:[#allocation5 + $0x7d8] sm:$0xff]
    %v387 = vld [vmem:[#allocation5 + $0x7e0] sm:$0xff]
    %v388 = vld [vmem:[#allocation5 + $0x7e8] sm:$0xff]
    %v389 = vld [vmem:[#allocation5 + $0x7f0] sm:$0xff]
    %v390 = vld [vmem:[#allocation5 + $0x7f8] sm:$0xff]
    %v391 = vld [vmem:[%s2] sm:$0xf]
    %v393 = vlaneseq
    %v394 = vshrl.u32 %v393, 7
    %v395 = vsub.s32 0, %v394
    %v396 = vrot.slane %v391, %v395
    %v397 = vlaneseq
    %v398 = vshrl.u32 %v397, 7
    %v399 = vsub.s32 1, %v398
    %v400 = vrot.slane %v391, %v399
    %v401 = vlaneseq
    %v402 = vshrl.u32 %v401, 7
    %v403 = vsub.s32 2, %v402
    %v404 = vrot.slane %v391, %v403
    %v405 = vlaneseq
    %v406 = vshrl.u32 %v405, 7
    %v407 = vsub.s32 3, %v406
    %v408 = vrot.slane %v391, %v407
    %v417 = vunpack.c.l.b16 %v131
    %v418 = vunpack.c.h.b16 %v131
    %v419 = vunpack.c.l.b16 %v132
    %v420 = vunpack.c.h.b16 %v132
    %v421 = vunpack.c.l.b16 %v133
    %v422 = vunpack.c.h.b16 %v133
    %v423 = vunpack.c.l.b16 %v134
    %v424 = vunpack.c.h.b16 %v134
    %v425 = vpack.c.b16 %v417, %v417
    %v426 = vpack.c.b16 %v418, %v418
    %v427 = vpack.c.b16 %v419, %v419
    %v428 = vpack.c.b16 %v420, %v420
    %v429 = vpack.c.b16 %v421, %v421
    %v430 = vpack.c.b16 %v422, %v422
    %v431 = vpack.c.b16 %v423, %v423
    %v432 = vpack.c.b16 %v424, %v424
    %v697 = vunpack.c.l.b16 %v135
    %v698 = vunpack.c.h.b16 %v135
    %v699 = vunpack.c.l.b16 %v136
    %v700 = vunpack.c.h.b16 %v136
    %v701 = vunpack.c.l.b16 %v137
    %v702 = vunpack.c.h.b16 %v137
    %v703 = vunpack.c.l.b16 %v138
    %v704 = vunpack.c.h.b16 %v138
    %v705 = vunpack.c.l.b16 %v139
    %v706 = vunpack.c.h.b16 %v139
    %v707 = vunpack.c.l.b16 %v140
    %v708 = vunpack.c.h.b16 %v140
    %v709 = vunpack.c.l.b16 %v141
    %v710 = vunpack.c.h.b16 %v141
    %v711 = vunpack.c.l.b16 %v142
    %v712 = vunpack.c.h.b16 %v142
    %v713 = vunpack.c.l.b16 %v143
    %v714 = vunpack.c.h.b16 %v143
    %v715 = vunpack.c.l.b16 %v144
    %v716 = vunpack.c.h.b16 %v144
    %v717 = vunpack.c.l.b16 %v145
    %v718 = vunpack.c.h.b16 %v145
    %v719 = vunpack.c.l.b16 %v146
    %v720 = vunpack.c.h.b16 %v146
    %v721 = vunpack.c.l.b16 %v147
    %v722 = vunpack.c.h.b16 %v147
    %v723 = vunpack.c.l.b16 %v148
    %v724 = vunpack.c.h.b16 %v148
    %v725 = vunpack.c.l.b16 %v149
    %v726 = vunpack.c.h.b16 %v149
    %v727 = vunpack.c.l.b16 %v150
    %v728 = vunpack.c.h.b16 %v150
    %v729 = vunpack.c.l.b16 %v151
    %v730 = vunpack.c.h.b16 %v151
    %v731 = vunpack.c.l.b16 %v152
    %v732 = vunpack.c.h.b16 %v152
    %v733 = vunpack.c.l.b16 %v153
    %v734 = vunpack.c.h.b16 %v153
    %v735 = vunpack.c.l.b16 %v154
    %v736 = vunpack.c.h.b16 %v154
    %v737 = vunpack.c.l.b16 %v155
    %v738 = vunpack.c.h.b16 %v155
    %v739 = vunpack.c.l.b16 %v156
    %v740 = vunpack.c.h.b16 %v156
    %v741 = vunpack.c.l.b16 %v157
    %v742 = vunpack.c.h.b16 %v157
    %v743 = vunpack.c.l.b16 %v158
    %v744 = vunpack.c.h.b16 %v158
    %v745 = vunpack.c.l.b16 %v159
    %v746 = vunpack.c.h.b16 %v159
    %v747 = vunpack.c.l.b16 %v160
    %v748 = vunpack.c.h.b16 %v160
    %v749 = vunpack.c.l.b16 %v161
    %v750 = vunpack.c.h.b16 %v161
    %v751 = vunpack.c.l.b16 %v162
    %v752 = vunpack.c.h.b16 %v162
    %v753 = vunpack.c.l.b16 %v163
    %v754 = vunpack.c.h.b16 %v163
    %v755 = vunpack.c.l.b16 %v164
    %v756 = vunpack.c.h.b16 %v164
    %v757 = vunpack.c.l.b16 %v165
    %v758 = vunpack.c.h.b16 %v165
    %v759 = vunpack.c.l.b16 %v166
    %v760 = vunpack.c.h.b16 %v166
    %v761 = vunpack.c.l.b16 %v167
    %v762 = vunpack.c.h.b16 %v167
    %v763 = vunpack.c.l.b16 %v168
    %v764 = vunpack.c.h.b16 %v168
    %v765 = vunpack.c.l.b16 %v169
    %v766 = vunpack.c.h.b16 %v169
    %v767 = vunpack.c.l.b16 %v170
    %v768 = vunpack.c.h.b16 %v170
    %v769 = vunpack.c.l.b16 %v171
    %v770 = vunpack.c.h.b16 %v171
    %v771 = vunpack.c.l.b16 %v172
    %v772 = vunpack.c.h.b16 %v172
    %v773 = vunpack.c.l.b16 %v173
    %v774 = vunpack.c.h.b16 %v173
    %v775 = vunpack.c.l.b16 %v174
    %v776 = vunpack.c.h.b16 %v174
    %v777 = vunpack.c.l.b16 %v175
    %v778 = vunpack.c.h.b16 %v175
    %v779 = vunpack.c.l.b16 %v176
    %v780 = vunpack.c.h.b16 %v176
    %v781 = vunpack.c.l.b16 %v177
    %v782 = vunpack.c.h.b16 %v177
    %v783 = vunpack.c.l.b16 %v178
    %v784 = vunpack.c.h.b16 %v178
    %v785 = vunpack.c.l.b16 %v179
    %v786 = vunpack.c.h.b16 %v179
    %v787 = vunpack.c.l.b16 %v180
    %v788 = vunpack.c.h.b16 %v180
    %v789 = vunpack.c.l.b16 %v181
    %v790 = vunpack.c.h.b16 %v181
    %v791 = vunpack.c.l.b16 %v182
    %v792 = vunpack.c.h.b16 %v182
    %v793 = vunpack.c.l.b16 %v183
    %v794 = vunpack.c.h.b16 %v183
    %v795 = vunpack.c.l.b16 %v184
    %v796 = vunpack.c.h.b16 %v184
    %v797 = vunpack.c.l.b16 %v185
    %v798 = vunpack.c.h.b16 %v185
    %v799 = vunpack.c.l.b16 %v186
    %v800 = vunpack.c.h.b16 %v186
    %v801 = vunpack.c.l.b16 %v187
    %v802 = vunpack.c.h.b16 %v187
    %v803 = vunpack.c.l.b16 %v188
    %v804 = vunpack.c.h.b16 %v188
    %v805 = vunpack.c.l.b16 %v189
    %v806 = vunpack.c.h.b16 %v189
    %v807 = vunpack.c.l.b16 %v190
    %v808 = vunpack.c.h.b16 %v190
    %v809 = vunpack.c.l.b16 %v191
    %v810 = vunpack.c.h.b16 %v191
    %v811 = vunpack.c.l.b16 %v192
    %v812 = vunpack.c.h.b16 %v192
    %v813 = vunpack.c.l.b16 %v193
    %v814 = vunpack.c.h.b16 %v193
    %v815 = vunpack.c.l.b16 %v194
    %v816 = vunpack.c.h.b16 %v194
    %v817 = vunpack.c.l.b16 %v195
    %v818 = vunpack.c.h.b16 %v195
    %v819 = vunpack.c.l.b16 %v196
    %v820 = vunpack.c.h.b16 %v196
    %v821 = vunpack.c.l.b16 %v197
    %v822 = vunpack.c.h.b16 %v197
    %v823 = vunpack.c.l.b16 %v198
    %v824 = vunpack.c.h.b16 %v198
    %v825 = vunpack.c.l.b16 %v199
    %v826 = vunpack.c.h.b16 %v199
    %v827 = vunpack.c.l.b16 %v200
    %v828 = vunpack.c.h.b16 %v200
    %v829 = vunpack.c.l.b16 %v201
    %v830 = vunpack.c.h.b16 %v201
    %v831 = vunpack.c.l.b16 %v202
    %v832 = vunpack.c.h.b16 %v202
    %v833 = vunpack.c.l.b16 %v203
    %v834 = vunpack.c.h.b16 %v203
    %v835 = vunpack.c.l.b16 %v204
    %v836 = vunpack.c.h.b16 %v204
    %v837 = vunpack.c.l.b16 %v205
    %v838 = vunpack.c.h.b16 %v205
    %v839 = vunpack.c.l.b16 %v206
    %v840 = vunpack.c.h.b16 %v206
    %v841 = vunpack.c.l.b16 %v207
    %v842 = vunpack.c.h.b16 %v207
    %v843 = vunpack.c.l.b16 %v208
    %v844 = vunpack.c.h.b16 %v208
    %v845 = vunpack.c.l.b16 %v209
    %v846 = vunpack.c.h.b16 %v209
    %v847 = vunpack.c.l.b16 %v210
    %v848 = vunpack.c.h.b16 %v210
    %v849 = vunpack.c.l.b16 %v211
    %v850 = vunpack.c.h.b16 %v211
    %v851 = vunpack.c.l.b16 %v212
    %v852 = vunpack.c.h.b16 %v212
    %v853 = vunpack.c.l.b16 %v213
    %v854 = vunpack.c.h.b16 %v213
    %v855 = vunpack.c.l.b16 %v214
    %v856 = vunpack.c.h.b16 %v214
    %v857 = vunpack.c.l.b16 %v215
    %v858 = vunpack.c.h.b16 %v215
    %v859 = vunpack.c.l.b16 %v216
    %v860 = vunpack.c.h.b16 %v216
    %v861 = vunpack.c.l.b16 %v217
    %v862 = vunpack.c.h.b16 %v217
    %v863 = vunpack.c.l.b16 %v218
    %v864 = vunpack.c.h.b16 %v218
    %v865 = vunpack.c.l.b16 %v219
    %v866 = vunpack.c.h.b16 %v219
    %v867 = vunpack.c.l.b16 %v220
    %v868 = vunpack.c.h.b16 %v220
    %v869 = vunpack.c.l.b16 %v221
    %v870 = vunpack.c.h.b16 %v221
    %v871 = vunpack.c.l.b16 %v222
    %v872 = vunpack.c.h.b16 %v222
    %v873 = vunpack.c.l.b16 %v223
    %v874 = vunpack.c.h.b16 %v223
    %v875 = vunpack.c.l.b16 %v224
    %v876 = vunpack.c.h.b16 %v224
    %v877 = vunpack.c.l.b16 %v225
    %v878 = vunpack.c.h.b16 %v225
    %v879 = vunpack.c.l.b16 %v226
    %v880 = vunpack.c.h.b16 %v226
    %v881 = vunpack.c.l.b16 %v227
    %v882 = vunpack.c.h.b16 %v227
    %v883 = vunpack.c.l.b16 %v228
    %v884 = vunpack.c.h.b16 %v228
    %v885 = vunpack.c.l.b16 %v229
    %v886 = vunpack.c.h.b16 %v229
    %v887 = vunpack.c.l.b16 %v230
    %v888 = vunpack.c.h.b16 %v230
    %v889 = vunpack.c.l.b16 %v231
    %v890 = vunpack.c.h.b16 %v231
    %v891 = vunpack.c.l.b16 %v232
    %v892 = vunpack.c.h.b16 %v232
    %v893 = vunpack.c.l.b16 %v233
    %v894 = vunpack.c.h.b16 %v233
    %v895 = vunpack.c.l.b16 %v234
    %v896 = vunpack.c.h.b16 %v234
    %v897 = vunpack.c.l.b16 %v235
    %v898 = vunpack.c.h.b16 %v235
    %v899 = vunpack.c.l.b16 %v236
    %v900 = vunpack.c.h.b16 %v236
    %v901 = vunpack.c.l.b16 %v237
    %v902 = vunpack.c.h.b16 %v237
    %v903 = vunpack.c.l.b16 %v238
    %v904 = vunpack.c.h.b16 %v238
    %v905 = vunpack.c.l.b16 %v239
    %v906 = vunpack.c.h.b16 %v239
    %v907 = vunpack.c.l.b16 %v240
    %v908 = vunpack.c.h.b16 %v240
    %v909 = vunpack.c.l.b16 %v241
    %v910 = vunpack.c.h.b16 %v241
    %v911 = vunpack.c.l.b16 %v242
    %v912 = vunpack.c.h.b16 %v242
    %v913 = vunpack.c.l.b16 %v243
    %v914 = vunpack.c.h.b16 %v243
    %v915 = vunpack.c.l.b16 %v244
    %v916 = vunpack.c.h.b16 %v244
    %v917 = vunpack.c.l.b16 %v245
    %v918 = vunpack.c.h.b16 %v245
    %v919 = vunpack.c.l.b16 %v246
    %v920 = vunpack.c.h.b16 %v246
    %v921 = vunpack.c.l.b16 %v247
    %v922 = vunpack.c.h.b16 %v247
    %v923 = vunpack.c.l.b16 %v248
    %v924 = vunpack.c.h.b16 %v248
    %v925 = vunpack.c.l.b16 %v249
    %v926 = vunpack.c.h.b16 %v249
    %v927 = vunpack.c.l.b16 %v250
    %v928 = vunpack.c.h.b16 %v250
    %v929 = vunpack.c.l.b16 %v251
    %v930 = vunpack.c.h.b16 %v251
    %v931 = vunpack.c.l.b16 %v252
    %v932 = vunpack.c.h.b16 %v252
    %v933 = vunpack.c.l.b16 %v253
    %v934 = vunpack.c.h.b16 %v253
    %v935 = vunpack.c.l.b16 %v254
    %v936 = vunpack.c.h.b16 %v254
    %v937 = vunpack.c.l.b16 %v255
    %v938 = vunpack.c.h.b16 %v255
    %v939 = vunpack.c.l.b16 %v256
    %v940 = vunpack.c.h.b16 %v256
    %v941 = vunpack.c.l.b16 %v257
    %v942 = vunpack.c.h.b16 %v257
    %v943 = vunpack.c.l.b16 %v258
    %v944 = vunpack.c.h.b16 %v258
    %v945 = vunpack.c.l.b16 %v259
    %v946 = vunpack.c.h.b16 %v259
    %v947 = vunpack.c.l.b16 %v260
    %v948 = vunpack.c.h.b16 %v260
    %v949 = vunpack.c.l.b16 %v261
    %v950 = vunpack.c.h.b16 %v261
    %v951 = vunpack.c.l.b16 %v262
    %v952 = vunpack.c.h.b16 %v262
    %v953 = vunpack.c.l.b16 %v263
    %v954 = vunpack.c.h.b16 %v263
    %v955 = vunpack.c.l.b16 %v264
    %v956 = vunpack.c.h.b16 %v264
    %v957 = vunpack.c.l.b16 %v265
    %v958 = vunpack.c.h.b16 %v265
    %v959 = vunpack.c.l.b16 %v266
    %v960 = vunpack.c.h.b16 %v266
    %v961 = vunpack.c.l.b16 %v267
    %v962 = vunpack.c.h.b16 %v267
    %v963 = vunpack.c.l.b16 %v268
    %v964 = vunpack.c.h.b16 %v268
    %v965 = vunpack.c.l.b16 %v269
    %v966 = vunpack.c.h.b16 %v269
    %v967 = vunpack.c.l.b16 %v270
    %v968 = vunpack.c.h.b16 %v270
    %v969 = vunpack.c.l.b16 %v271
    %v970 = vunpack.c.h.b16 %v271
    %v971 = vunpack.c.l.b16 %v272
    %v972 = vunpack.c.h.b16 %v272
    %v973 = vunpack.c.l.b16 %v273
    %v974 = vunpack.c.h.b16 %v273
    %v975 = vunpack.c.l.b16 %v274
    %v976 = vunpack.c.h.b16 %v274
    %v977 = vunpack.c.l.b16 %v275
    %v978 = vunpack.c.h.b16 %v275
    %v979 = vunpack.c.l.b16 %v276
    %v980 = vunpack.c.h.b16 %v276
    %v981 = vunpack.c.l.b16 %v277
    %v982 = vunpack.c.h.b16 %v277
    %v983 = vunpack.c.l.b16 %v278
    %v984 = vunpack.c.h.b16 %v278
    %v985 = vunpack.c.l.b16 %v279
    %v986 = vunpack.c.h.b16 %v279
    %v987 = vunpack.c.l.b16 %v280
    %v988 = vunpack.c.h.b16 %v280
    %v989 = vunpack.c.l.b16 %v281
    %v990 = vunpack.c.h.b16 %v281
    %v991 = vunpack.c.l.b16 %v282
    %v992 = vunpack.c.h.b16 %v282
    %v993 = vunpack.c.l.b16 %v283
    %v994 = vunpack.c.h.b16 %v283
    %v995 = vunpack.c.l.b16 %v284
    %v996 = vunpack.c.h.b16 %v284
    %v997 = vunpack.c.l.b16 %v285
    %v998 = vunpack.c.h.b16 %v285
    %v999 = vunpack.c.l.b16 %v286
    %v1000 = vunpack.c.h.b16 %v286
    %v1001 = vunpack.c.l.b16 %v287
    %v1002 = vunpack.c.h.b16 %v287
    %v1003 = vunpack.c.l.b16 %v288
    %v1004 = vunpack.c.h.b16 %v288
    %v1005 = vunpack.c.l.b16 %v289
    %v1006 = vunpack.c.h.b16 %v289
    %v1007 = vunpack.c.l.b16 %v290
    %v1008 = vunpack.c.h.b16 %v290
    %v1009 = vunpack.c.l.b16 %v291
    %v1010 = vunpack.c.h.b16 %v291
    %v1011 = vunpack.c.l.b16 %v292
    %v1012 = vunpack.c.h.b16 %v292
    %v1013 = vunpack.c.l.b16 %v293
    %v1014 = vunpack.c.h.b16 %v293
    %v1015 = vunpack.c.l.b16 %v294
    %v1016 = vunpack.c.h.b16 %v294
    %v1017 = vunpack.c.l.b16 %v295
    %v1018 = vunpack.c.h.b16 %v295
    %v1019 = vunpack.c.l.b16 %v296
    %v1020 = vunpack.c.h.b16 %v296
    %v1021 = vunpack.c.l.b16 %v297
    %v1022 = vunpack.c.h.b16 %v297
    %v1023 = vunpack.c.l.b16 %v298
    %v1024 = vunpack.c.h.b16 %v298
    %v1025 = vunpack.c.l.b16 %v299
    %v1026 = vunpack.c.h.b16 %v299
    %v1027 = vunpack.c.l.b16 %v300
    %v1028 = vunpack.c.h.b16 %v300
    %v1029 = vunpack.c.l.b16 %v301
    %v1030 = vunpack.c.h.b16 %v301
    %v1031 = vunpack.c.l.b16 %v302
    %v1032 = vunpack.c.h.b16 %v302
    %v1033 = vunpack.c.l.b16 %v303
    %v1034 = vunpack.c.h.b16 %v303
    %v1035 = vunpack.c.l.b16 %v304
    %v1036 = vunpack.c.h.b16 %v304
    %v1037 = vunpack.c.l.b16 %v305
    %v1038 = vunpack.c.h.b16 %v305
    %v1039 = vunpack.c.l.b16 %v306
    %v1040 = vunpack.c.h.b16 %v306
    %v1041 = vunpack.c.l.b16 %v307
    %v1042 = vunpack.c.h.b16 %v307
    %v1043 = vunpack.c.l.b16 %v308
    %v1044 = vunpack.c.h.b16 %v308
    %v1045 = vunpack.c.l.b16 %v309
    %v1046 = vunpack.c.h.b16 %v309
    %v1047 = vunpack.c.l.b16 %v310
    %v1048 = vunpack.c.h.b16 %v310
    %v1049 = vunpack.c.l.b16 %v311
    %v1050 = vunpack.c.h.b16 %v311
    %v1051 = vunpack.c.l.b16 %v312
    %v1052 = vunpack.c.h.b16 %v312
    %v1053 = vunpack.c.l.b16 %v313
    %v1054 = vunpack.c.h.b16 %v313
    %v1055 = vunpack.c.l.b16 %v314
    %v1056 = vunpack.c.h.b16 %v314
    %v1057 = vunpack.c.l.b16 %v315
    %v1058 = vunpack.c.h.b16 %v315
    %v1059 = vunpack.c.l.b16 %v316
    %v1060 = vunpack.c.h.b16 %v316
    %v1061 = vunpack.c.l.b16 %v317
    %v1062 = vunpack.c.h.b16 %v317
    %v1063 = vunpack.c.l.b16 %v318
    %v1064 = vunpack.c.h.b16 %v318
    %v1065 = vunpack.c.l.b16 %v319
    %v1066 = vunpack.c.h.b16 %v319
    %v1067 = vunpack.c.l.b16 %v320
    %v1068 = vunpack.c.h.b16 %v320
    %v1069 = vunpack.c.l.b16 %v321
    %v1070 = vunpack.c.h.b16 %v321
    %v1071 = vunpack.c.l.b16 %v322
    %v1072 = vunpack.c.h.b16 %v322
    %v1073 = vunpack.c.l.b16 %v323
    %v1074 = vunpack.c.h.b16 %v323
    %v1075 = vunpack.c.l.b16 %v324
    %v1076 = vunpack.c.h.b16 %v324
    %v1077 = vunpack.c.l.b16 %v325
    %v1078 = vunpack.c.h.b16 %v325
    %v1079 = vunpack.c.l.b16 %v326
    %v1080 = vunpack.c.h.b16 %v326
    %v1081 = vunpack.c.l.b16 %v327
    %v1082 = vunpack.c.h.b16 %v327
    %v1083 = vunpack.c.l.b16 %v328
    %v1084 = vunpack.c.h.b16 %v328
    %v1085 = vunpack.c.l.b16 %v329
    %v1086 = vunpack.c.h.b16 %v329
    %v1087 = vunpack.c.l.b16 %v330
    %v1088 = vunpack.c.h.b16 %v330
    %v1089 = vunpack.c.l.b16 %v331
    %v1090 = vunpack.c.h.b16 %v331
    %v1091 = vunpack.c.l.b16 %v332
    %v1092 = vunpack.c.h.b16 %v332
    %v1093 = vunpack.c.l.b16 %v333
    %v1094 = vunpack.c.h.b16 %v333
    %v1095 = vunpack.c.l.b16 %v334
    %v1096 = vunpack.c.h.b16 %v334
    %v1097 = vunpack.c.l.b16 %v335
    %v1098 = vunpack.c.h.b16 %v335
    %v1099 = vunpack.c.l.b16 %v336
    %v1100 = vunpack.c.h.b16 %v336
    %v1101 = vunpack.c.l.b16 %v337
    %v1102 = vunpack.c.h.b16 %v337
    %v1103 = vunpack.c.l.b16 %v338
    %v1104 = vunpack.c.h.b16 %v338
    %v1105 = vunpack.c.l.b16 %v339
    %v1106 = vunpack.c.h.b16 %v339
    %v1107 = vunpack.c.l.b16 %v340
    %v1108 = vunpack.c.h.b16 %v340
    %v1109 = vunpack.c.l.b16 %v341
    %v1110 = vunpack.c.h.b16 %v341
    %v1111 = vunpack.c.l.b16 %v342
    %v1112 = vunpack.c.h.b16 %v342
    %v1113 = vunpack.c.l.b16 %v343
    %v1114 = vunpack.c.h.b16 %v343
    %v1115 = vunpack.c.l.b16 %v344
    %v1116 = vunpack.c.h.b16 %v344
    %v1117 = vunpack.c.l.b16 %v345
    %v1118 = vunpack.c.h.b16 %v345
    %v1119 = vunpack.c.l.b16 %v346
    %v1120 = vunpack.c.h.b16 %v346
    %v1121 = vunpack.c.l.b16 %v347
    %v1122 = vunpack.c.h.b16 %v347
    %v1123 = vunpack.c.l.b16 %v348
    %v1124 = vunpack.c.h.b16 %v348
    %v1125 = vunpack.c.l.b16 %v349
    %v1126 = vunpack.c.h.b16 %v349
    %v1127 = vunpack.c.l.b16 %v350
    %v1128 = vunpack.c.h.b16 %v350
    %v1129 = vunpack.c.l.b16 %v351
    %v1130 = vunpack.c.h.b16 %v351
    %v1131 = vunpack.c.l.b16 %v352
    %v1132 = vunpack.c.h.b16 %v352
    %v1133 = vunpack.c.l.b16 %v353
    %v1134 = vunpack.c.h.b16 %v353
    %v1135 = vunpack.c.l.b16 %v354
    %v1136 = vunpack.c.h.b16 %v354
    %v1137 = vunpack.c.l.b16 %v355
    %v1138 = vunpack.c.h.b16 %v355
    %v1139 = vunpack.c.l.b16 %v356
    %v1140 = vunpack.c.h.b16 %v356
    %v1141 = vunpack.c.l.b16 %v357
    %v1142 = vunpack.c.h.b16 %v357
    %v1143 = vunpack.c.l.b16 %v358
    %v1144 = vunpack.c.h.b16 %v358
    %v1145 = vunpack.c.l.b16 %v359
    %v1146 = vunpack.c.h.b16 %v359
    %v1147 = vunpack.c.l.b16 %v360
    %v1148 = vunpack.c.h.b16 %v360
    %v1149 = vunpack.c.l.b16 %v361
    %v1150 = vunpack.c.h.b16 %v361
    %v1151 = vunpack.c.l.b16 %v362
    %v1152 = vunpack.c.h.b16 %v362
    %v1153 = vunpack.c.l.b16 %v363
    %v1154 = vunpack.c.h.b16 %v363
    %v1155 = vunpack.c.l.b16 %v364
    %v1156 = vunpack.c.h.b16 %v364
    %v1157 = vunpack.c.l.b16 %v365
    %v1158 = vunpack.c.h.b16 %v365
    %v1159 = vunpack.c.l.b16 %v366
    %v1160 = vunpack.c.h.b16 %v366
    %v1161 = vunpack.c.l.b16 %v367
    %v1162 = vunpack.c.h.b16 %v367
    %v1163 = vunpack.c.l.b16 %v368
    %v1164 = vunpack.c.h.b16 %v368
    %v1165 = vunpack.c.l.b16 %v369
    %v1166 = vunpack.c.h.b16 %v369
    %v1167 = vunpack.c.l.b16 %v370
    %v1168 = vunpack.c.h.b16 %v370
    %v1169 = vunpack.c.l.b16 %v371
    %v1170 = vunpack.c.h.b16 %v371
    %v1171 = vunpack.c.l.b16 %v372
    %v1172 = vunpack.c.h.b16 %v372
    %v1173 = vunpack.c.l.b16 %v373
    %v1174 = vunpack.c.h.b16 %v373
    %v1175 = vunpack.c.l.b16 %v374
    %v1176 = vunpack.c.h.b16 %v374
    %v1177 = vunpack.c.l.b16 %v375
    %v1178 = vunpack.c.h.b16 %v375
    %v1179 = vunpack.c.l.b16 %v376
    %v1180 = vunpack.c.h.b16 %v376
    %v1181 = vunpack.c.l.b16 %v377
    %v1182 = vunpack.c.h.b16 %v377
    %v1183 = vunpack.c.l.b16 %v378
    %v1184 = vunpack.c.h.b16 %v378
    %v1185 = vunpack.c.l.b16 %v379
    %v1186 = vunpack.c.h.b16 %v379
    %v1187 = vunpack.c.l.b16 %v380
    %v1188 = vunpack.c.h.b16 %v380
    %v1189 = vunpack.c.l.b16 %v381
    %v1190 = vunpack.c.h.b16 %v381
    %v1191 = vunpack.c.l.b16 %v382
    %v1192 = vunpack.c.h.b16 %v382
    %v1193 = vunpack.c.l.b16 %v383
    %v1194 = vunpack.c.h.b16 %v383
    %v1195 = vunpack.c.l.b16 %v384
    %v1196 = vunpack.c.h.b16 %v384
    %v1197 = vunpack.c.l.b16 %v385
    %v1198 = vunpack.c.h.b16 %v385
    %v1199 = vunpack.c.l.b16 %v386
    %v1200 = vunpack.c.h.b16 %v386
    %v1201 = vunpack.c.l.b16 %v387
    %v1202 = vunpack.c.h.b16 %v387
    %v1203 = vunpack.c.l.b16 %v388
    %v1204 = vunpack.c.h.b16 %v388
    %v1205 = vunpack.c.l.b16 %v389
    %v1206 = vunpack.c.h.b16 %v389
    %v1207 = vunpack.c.l.b16 %v390
    %v1208 = vunpack.c.h.b16 %v390
    %v1209 = vpack.c.b16 %v701, %v697
    %v1210 = vpack.c.b16 %v702, %v698
    %v1211 = vpack.c.b16 %v703, %v699
    %v1212 = vpack.c.b16 %v704, %v700
    %v1213 = vpack.c.b16 %v709, %v705
    %v1214 = vpack.c.b16 %v710, %v706
    %v1215 = vpack.c.b16 %v711, %v707
    %v1216 = vpack.c.b16 %v712, %v708
    %v1217 = vpack.c.b16 %v717, %v713
    %v1218 = vpack.c.b16 %v718, %v714
    %v1219 = vpack.c.b16 %v719, %v715
    %v1220 = vpack.c.b16 %v720, %v716
    %v1221 = vpack.c.b16 %v725, %v721
    %v1222 = vpack.c.b16 %v726, %v722
    %v1223 = vpack.c.b16 %v727, %v723
    %v1224 = vpack.c.b16 %v728, %v724
    %v1225 = vpack.c.b16 %v733, %v729
    %v1226 = vpack.c.b16 %v734, %v730
    %v1227 = vpack.c.b16 %v735, %v731
    %v1228 = vpack.c.b16 %v736, %v732
    %v1229 = vpack.c.b16 %v741, %v737
    %v1230 = vpack.c.b16 %v742, %v738
    %v1231 = vpack.c.b16 %v743, %v739
    %v1232 = vpack.c.b16 %v744, %v740
    %v1233 = vpack.c.b16 %v749, %v745
    %v1234 = vpack.c.b16 %v750, %v746
    %v1235 = vpack.c.b16 %v751, %v747
    %v1236 = vpack.c.b16 %v752, %v748
    %v1237 = vpack.c.b16 %v757, %v753
    %v1238 = vpack.c.b16 %v758, %v754
    %v1239 = vpack.c.b16 %v759, %v755
    %v1240 = vpack.c.b16 %v760, %v756
    %v1241 = vpack.c.b16 %v765, %v761
    %v1242 = vpack.c.b16 %v766, %v762
    %v1243 = vpack.c.b16 %v767, %v763
    %v1244 = vpack.c.b16 %v768, %v764
    %v1245 = vpack.c.b16 %v773, %v769
    %v1246 = vpack.c.b16 %v774, %v770
    %v1247 = vpack.c.b16 %v775, %v771
    %v1248 = vpack.c.b16 %v776, %v772
    %v1249 = vpack.c.b16 %v781, %v777
    %v1250 = vpack.c.b16 %v782, %v778
    %v1251 = vpack.c.b16 %v783, %v779
    %v1252 = vpack.c.b16 %v784, %v780
    %v1253 = vpack.c.b16 %v789, %v785
    %v1254 = vpack.c.b16 %v790, %v786
    %v1255 = vpack.c.b16 %v791, %v787
    %v1256 = vpack.c.b16 %v792, %v788
    %v1257 = vpack.c.b16 %v797, %v793
    %v1258 = vpack.c.b16 %v798, %v794
    %v1259 = vpack.c.b16 %v799, %v795
    %v1260 = vpack.c.b16 %v800, %v796
    %v1261 = vpack.c.b16 %v805, %v801
    %v1262 = vpack.c.b16 %v806, %v802
    %v1263 = vpack.c.b16 %v807, %v803
    %v1264 = vpack.c.b16 %v808, %v804
    %v1265 = vpack.c.b16 %v813, %v809
    %v1266 = vpack.c.b16 %v814, %v810
    %v1267 = vpack.c.b16 %v815, %v811
    %v1268 = vpack.c.b16 %v816, %v812
    %v1269 = vpack.c.b16 %v821, %v817
    %v1270 = vpack.c.b16 %v822, %v818
    %v1271 = vpack.c.b16 %v823, %v819
    %v1272 = vpack.c.b16 %v824, %v820
    %v1273 = vpack.c.b16 %v829, %v825
    %v1274 = vpack.c.b16 %v830, %v826
    %v1275 = vpack.c.b16 %v831, %v827
    %v1276 = vpack.c.b16 %v832, %v828
    %v1277 = vpack.c.b16 %v837, %v833
    %v1278 = vpack.c.b16 %v838, %v834
    %v1279 = vpack.c.b16 %v839, %v835
    %v1280 = vpack.c.b16 %v840, %v836
    %v1281 = vpack.c.b16 %v845, %v841
    %v1282 = vpack.c.b16 %v846, %v842
    %v1283 = vpack.c.b16 %v847, %v843
    %v1284 = vpack.c.b16 %v848, %v844
    %v1285 = vpack.c.b16 %v853, %v849
    %v1286 = vpack.c.b16 %v854, %v850
    %v1287 = vpack.c.b16 %v855, %v851
    %v1288 = vpack.c.b16 %v856, %v852
    %v1289 = vpack.c.b16 %v861, %v857
    %v1290 = vpack.c.b16 %v862, %v858
    %v1291 = vpack.c.b16 %v863, %v859
    %v1292 = vpack.c.b16 %v864, %v860
    %v1293 = vpack.c.b16 %v869, %v865
    %v1294 = vpack.c.b16 %v870, %v866
    %v1295 = vpack.c.b16 %v871, %v867
    %v1296 = vpack.c.b16 %v872, %v868
    %v1297 = vpack.c.b16 %v877, %v873
    %v1298 = vpack.c.b16 %v878, %v874
    %v1299 = vpack.c.b16 %v879, %v875
    %v1300 = vpack.c.b16 %v880, %v876
    %v1301 = vpack.c.b16 %v885, %v881
    %v1302 = vpack.c.b16 %v886, %v882
    %v1303 = vpack.c.b16 %v887, %v883
    %v1304 = vpack.c.b16 %v888, %v884
    %v1305 = vpack.c.b16 %v893, %v889
    %v1306 = vpack.c.b16 %v894, %v890
    %v1307 = vpack.c.b16 %v895, %v891
    %v1308 = vpack.c.b16 %v896, %v892
    %v1309 = vpack.c.b16 %v901, %v897
    %v1310 = vpack.c.b16 %v902, %v898
    %v1311 = vpack.c.b16 %v903, %v899
    %v1312 = vpack.c.b16 %v904, %v900
    %v1313 = vpack.c.b16 %v909, %v905
    %v1314 = vpack.c.b16 %v910, %v906
    %v1315 = vpack.c.b16 %v911, %v907
    %v1316 = vpack.c.b16 %v912, %v908
    %v1317 = vpack.c.b16 %v917, %v913
    %v1318 = vpack.c.b16 %v918, %v914
    %v1319 = vpack.c.b16 %v919, %v915
    %v1320 = vpack.c.b16 %v920, %v916
    %v1321 = vpack.c.b16 %v925, %v921
    %v1322 = vpack.c.b16 %v926, %v922
    %v1323 = vpack.c.b16 %v927, %v923
    %v1324 = vpack.c.b16 %v928, %v924
    %v1325 = vpack.c.b16 %v933, %v929
    %v1326 = vpack.c.b16 %v934, %v930
    %v1327 = vpack.c.b16 %v935, %v931
    %v1328 = vpack.c.b16 %v936, %v932
    %v1329 = vpack.c.b16 %v941, %v937
    %v1330 = vpack.c.b16 %v942, %v938
    %v1331 = vpack.c.b16 %v943, %v939
    %v1332 = vpack.c.b16 %v944, %v940
    %v1333 = vpack.c.b16 %v949, %v945
    %v1334 = vpack.c.b16 %v950, %v946
    %v1335 = vpack.c.b16 %v951, %v947
    %v1336 = vpack.c.b16 %v952, %v948
    %v1337 = vpack.c.b16 %v957, %v953
    %v1338 = vpack.c.b16 %v958, %v954
    %v1339 = vpack.c.b16 %v959, %v955
    %v1340 = vpack.c.b16 %v960, %v956
    %v1341 = vpack.c.b16 %v965, %v961
    %v1342 = vpack.c.b16 %v966, %v962
    %v1343 = vpack.c.b16 %v967, %v963
    %v1344 = vpack.c.b16 %v968, %v964
    %v1345 = vpack.c.b16 %v973, %v969
    %v1346 = vpack.c.b16 %v974, %v970
    %v1347 = vpack.c.b16 %v975, %v971
    %v1348 = vpack.c.b16 %v976, %v972
    %v1349 = vpack.c.b16 %v981, %v977
    %v1350 = vpack.c.b16 %v982, %v978
    %v1351 = vpack.c.b16 %v983, %v979
    %v1352 = vpack.c.b16 %v984, %v980
    %v1353 = vpack.c.b16 %v989, %v985
    %v1354 = vpack.c.b16 %v990, %v986
    %v1355 = vpack.c.b16 %v991, %v987
    %v1356 = vpack.c.b16 %v992, %v988
    %v1357 = vpack.c.b16 %v997, %v993
    %v1358 = vpack.c.b16 %v998, %v994
    %v1359 = vpack.c.b16 %v999, %v995
    %v1360 = vpack.c.b16 %v1000, %v996
    %v1361 = vpack.c.b16 %v1005, %v1001
    %v1362 = vpack.c.b16 %v1006, %v1002
    %v1363 = vpack.c.b16 %v1007, %v1003
    %v1364 = vpack.c.b16 %v1008, %v1004
    %v1365 = vpack.c.b16 %v1013, %v1009
    %v1366 = vpack.c.b16 %v1014, %v1010
    %v1367 = vpack.c.b16 %v1015, %v1011
    %v1368 = vpack.c.b16 %v1016, %v1012
    %v1369 = vpack.c.b16 %v1021, %v1017
    %v1370 = vpack.c.b16 %v1022, %v1018
    %v1371 = vpack.c.b16 %v1023, %v1019
    %v1372 = vpack.c.b16 %v1024, %v1020
    %v1373 = vpack.c.b16 %v1029, %v1025
    %v1374 = vpack.c.b16 %v1030, %v1026
    %v1375 = vpack.c.b16 %v1031, %v1027
    %v1376 = vpack.c.b16 %v1032, %v1028
    %v1377 = vpack.c.b16 %v1037, %v1033
    %v1378 = vpack.c.b16 %v1038, %v1034
    %v1379 = vpack.c.b16 %v1039, %v1035
    %v1380 = vpack.c.b16 %v1040, %v1036
    %v1381 = vpack.c.b16 %v1045, %v1041
    %v1382 = vpack.c.b16 %v1046, %v1042
    %v1383 = vpack.c.b16 %v1047, %v1043
    %v1384 = vpack.c.b16 %v1048, %v1044
    %v1385 = vpack.c.b16 %v1053, %v1049
    %v1386 = vpack.c.b16 %v1054, %v1050
    %v1387 = vpack.c.b16 %v1055, %v1051
    %v1388 = vpack.c.b16 %v1056, %v1052
    %v1389 = vpack.c.b16 %v1061, %v1057
    %v1390 = vpack.c.b16 %v1062, %v1058
    %v1391 = vpack.c.b16 %v1063, %v1059
    %v1392 = vpack.c.b16 %v1064, %v1060
    %v1393 = vpack.c.b16 %v1069, %v1065
    %v1394 = vpack.c.b16 %v1070, %v1066
    %v1395 = vpack.c.b16 %v1071, %v1067
    %v1396 = vpack.c.b16 %v1072, %v1068
    %v1397 = vpack.c.b16 %v1077, %v1073
    %v1398 = vpack.c.b16 %v1078, %v1074
    %v1399 = vpack.c.b16 %v1079, %v1075
    %v1400 = vpack.c.b16 %v1080, %v1076
    %v1401 = vpack.c.b16 %v1085, %v1081
    %v1402 = vpack.c.b16 %v1086, %v1082
    %v1403 = vpack.c.b16 %v1087, %v1083
    %v1404 = vpack.c.b16 %v1088, %v1084
    %v1405 = vpack.c.b16 %v1093, %v1089
    %v1406 = vpack.c.b16 %v1094, %v1090
    %v1407 = vpack.c.b16 %v1095, %v1091
    %v1408 = vpack.c.b16 %v1096, %v1092
    %v1409 = vpack.c.b16 %v1101, %v1097
    %v1410 = vpack.c.b16 %v1102, %v1098
    %v1411 = vpack.c.b16 %v1103, %v1099
    %v1412 = vpack.c.b16 %v1104, %v1100
    %v1413 = vpack.c.b16 %v1109, %v1105
    %v1414 = vpack.c.b16 %v1110, %v1106
    %v1415 = vpack.c.b16 %v1111, %v1107
    %v1416 = vpack.c.b16 %v1112, %v1108
    %v1417 = vpack.c.b16 %v1117, %v1113
    %v1418 = vpack.c.b16 %v1118, %v1114
    %v1419 = vpack.c.b16 %v1119, %v1115
    %v1420 = vpack.c.b16 %v1120, %v1116
    %v1421 = vpack.c.b16 %v1125, %v1121
    %v1422 = vpack.c.b16 %v1126, %v1122
    %v1423 = vpack.c.b16 %v1127, %v1123
    %v1424 = vpack.c.b16 %v1128, %v1124
    %v1425 = vpack.c.b16 %v1133, %v1129
    %v1426 = vpack.c.b16 %v1134, %v1130
    %v1427 = vpack.c.b16 %v1135, %v1131
    %v1428 = vpack.c.b16 %v1136, %v1132
    %v1429 = vpack.c.b16 %v1141, %v1137
    %v1430 = vpack.c.b16 %v1142, %v1138
    %v1431 = vpack.c.b16 %v1143, %v1139
    %v1432 = vpack.c.b16 %v1144, %v1140
    %v1433 = vpack.c.b16 %v1149, %v1145
    %v1434 = vpack.c.b16 %v1150, %v1146
    %v1435 = vpack.c.b16 %v1151, %v1147
    %v1436 = vpack.c.b16 %v1152, %v1148
    %v1437 = vpack.c.b16 %v1157, %v1153
    %v1438 = vpack.c.b16 %v1158, %v1154
    %v1439 = vpack.c.b16 %v1159, %v1155
    %v1440 = vpack.c.b16 %v1160, %v1156
    %v1441 = vpack.c.b16 %v1165, %v1161
    %v1442 = vpack.c.b16 %v1166, %v1162
    %v1443 = vpack.c.b16 %v1167, %v1163
    %v1444 = vpack.c.b16 %v1168, %v1164
    %v1445 = vpack.c.b16 %v1173, %v1169
    %v1446 = vpack.c.b16 %v1174, %v1170
    %v1447 = vpack.c.b16 %v1175, %v1171
    %v1448 = vpack.c.b16 %v1176, %v1172
    %v1449 = vpack.c.b16 %v1181, %v1177
    %v1450 = vpack.c.b16 %v1182, %v1178
    %v1451 = vpack.c.b16 %v1183, %v1179
    %v1452 = vpack.c.b16 %v1184, %v1180
    %v1453 = vpack.c.b16 %v1189, %v1185
    %v1454 = vpack.c.b16 %v1190, %v1186
    %v1455 = vpack.c.b16 %v1191, %v1187
    %v1456 = vpack.c.b16 %v1192, %v1188
    %v1457 = vpack.c.b16 %v1197, %v1193
    %v1458 = vpack.c.b16 %v1198, %v1194
    %v1459 = vpack.c.b16 %v1199, %v1195
    %v1460 = vpack.c.b16 %v1200, %v1196
    %v1461 = vpack.c.b16 %v1205, %v1201
    %v1462 = vpack.c.b16 %v1206, %v1202
    %v1463 = vpack.c.b16 %v1207, %v1203
    %v1464 = vpack.c.b16 %v1208, %v1204
    %1721 = vmatprep.subr.bf16.mxu0 %v1210
    %1722 = vmatpush1.bf16.msra.mxu0 %v1209
    %1723 = vmatprep.subr.bf16.mxu0 %v1214
    %1724 = vmatpush1.bf16.msra.mxu0 %v1213
    %1725 = vmatprep.subr.bf16.mxu0 %v1218
    %1726 = vmatpush1.bf16.msra.mxu0 %v1217
    %1727 = vmatprep.subr.bf16.mxu0 %v1222
    %1728 = vmatpush1.bf16.msra.mxu0 %v1221
    %1729 = vmatprep.subr.bf16.mxu0 %v1226
    %1730 = vmatpush1.bf16.msra.mxu0 %v1225
    %1731 = vmatprep.subr.bf16.mxu0 %v1230
    %1732 = vmatpush1.bf16.msra.mxu0 %v1229
    %1733 = vmatprep.subr.bf16.mxu0 %v1234
    %1734 = vmatpush1.bf16.msra.mxu0 %v1233
    %1735 = vmatprep.subr.bf16.mxu0 %v1238
    %1736 = vmatpush1.bf16.msra.mxu0 %v1237
    %1737 = vmatprep.subr.bf16.mxu0 %v1242
    %1738 = vmatpush1.bf16.msra.mxu0 %v1241
    %1739 = vmatprep.subr.bf16.mxu0 %v1246
    %1740 = vmatpush1.bf16.msra.mxu0 %v1245
    %1741 = vmatprep.subr.bf16.mxu0 %v1250
    %1742 = vmatpush1.bf16.msra.mxu0 %v1249
    %1743 = vmatprep.subr.bf16.mxu0 %v1254
    %1744 = vmatpush1.bf16.msra.mxu0 %v1253
    %1745 = vmatprep.subr.bf16.mxu0 %v1258
    %1746 = vmatpush1.bf16.msra.mxu0 %v1257
    %1747 = vmatprep.subr.bf16.mxu0 %v1262
    %1748 = vmatpush1.bf16.msra.mxu0 %v1261
    %1749 = vmatprep.subr.bf16.mxu0 %v1266
    %1750 = vmatpush1.bf16.msra.mxu0 %v1265
    %1751 = vmatprep.subr.bf16.mxu0 %v1270
    %1752 = vmatpush1.bf16.msra.mxu0 %v1269
    %1753 = vmatprep.mubr.bf16.mxu0 %v426
    %1754 = vmatmul.mubr.bf16.gmra.mrb[0].mxu0 %v425
    %v1755 = vpop.f32.mrb[0].mxu0
    %v1756 = vadd.f32 %v396, %v1755
    %v1757 = vpop.f32.mrb[0].mxu0
    %v1758 = vadd.f32 %v400, %v1757
    %v1759 = vpop.f32.mrb[0].mxu0
    %v1760 = vpop.f32.mrb[0].mxu0
    %1761 = vdwg.mxu0
    %1762 = vmatprep.subr.bf16.mxu0 %v1274
    %1763 = vmatpush1.bf16.msra.mxu0 %v1273
    %1764 = vmatprep.subr.bf16.mxu0 %v1278
    %1765 = vmatpush1.bf16.msra.mxu0 %v1277
    %1766 = vmatprep.subr.bf16.mxu0 %v1282
    %1767 = vmatpush1.bf16.msra.mxu0 %v1281
    %1768 = vmatprep.subr.bf16.mxu0 %v1286
    %1769 = vmatpush1.bf16.msra.mxu0 %v1285
    %1770 = vmatprep.subr.bf16.mxu0 %v1290
    %1771 = vmatpush1.bf16.msra.mxu0 %v1289
    %1772 = vmatprep.subr.bf16.mxu0 %v1294
    %1773 = vmatpush1.bf16.msra.mxu0 %v1293
    %1774 = vmatprep.subr.bf16.mxu0 %v1298
    %1775 = vmatpush1.bf16.msra.mxu0 %v1297
    %1776 = vmatprep.subr.bf16.mxu0 %v1302
    %1777 = vmatpush1.bf16.msra.mxu0 %v1301
    %1778 = vmatprep.subr.bf16.mxu0 %v1306
    %1779 = vmatpush1.bf16.msra.mxu0 %v1305
    %1780 = vmatprep.subr.bf16.mxu0 %v1310
    %1781 = vmatpush1.bf16.msra.mxu0 %v1309
    %1782 = vmatprep.subr.bf16.mxu0 %v1314
    %1783 = vmatpush1.bf16.msra.mxu0 %v1313
    %1784 = vmatprep.subr.bf16.mxu0 %v1318
    %1785 = vmatpush1.bf16.msra.mxu0 %v1317
    %1786 = vmatprep.subr.bf16.mxu0 %v1322
    %1787 = vmatpush1.bf16.msra.mxu0 %v1321
    %1788 = vmatprep.subr.bf16.mxu0 %v1326
    %1789 = vmatpush1.bf16.msra.mxu0 %v1325
    %1790 = vmatprep.subr.bf16.mxu0 %v1330
    %1791 = vmatpush1.bf16.msra.mxu0 %v1329
    %1792 = vmatprep.subr.bf16.mxu0 %v1334
    %1793 = vmatpush1.bf16.msra.mxu0 %v1333
    %1794 = vmatprep.mubr.bf16.mxu0 %v428
    %1795 = vmatmul.mubr.bf16.gmra.mrb[0].mxu0 %v427
    %v1796 = vpop.f32.mrb[0].mxu0
    %v1797 = vadd.f32 %v1756, %v1796
    %v1798 = vpop.f32.mrb[0].mxu0
    %v1799 = vadd.f32 %v1758, %v1798
    %v1800 = vpop.f32.mrb[0].mxu0
    %v1801 = vpop.f32.mrb[0].mxu0
    %1802 = vdwg.mxu0
    %1803 = vmatprep.subr.bf16.mxu0 %v1338
    %1804 = vmatpush1.bf16.msra.mxu0 %v1337
    %1805 = vmatprep.subr.bf16.mxu0 %v1342
    %1806 = vmatpush1.bf16.msra.mxu0 %v1341
    %1807 = vmatprep.subr.bf16.mxu0 %v1346
    %1808 = vmatpush1.bf16.msra.mxu0 %v1345
    %1809 = vmatprep.subr.bf16.mxu0 %v1350
    %1810 = vmatpush1.bf16.msra.mxu0 %v1349
    %1811 = vmatprep.subr.bf16.mxu0 %v1354
    %1812 = vmatpush1.bf16.msra.mxu0 %v1353
    %1813 = vmatprep.subr.bf16.mxu0 %v1358
    %1814 = vmatpush1.bf16.msra.mxu0 %v1357
    %1815 = vmatprep.subr.bf16.mxu0 %v1362
    %1816 = vmatpush1.bf16.msra.mxu0 %v1361
    %1817 = vmatprep.subr.bf16.mxu0 %v1366
    %1818 = vmatpush1.bf16.msra.mxu0 %v1365
    %1819 = vmatprep.subr.bf16.mxu0 %v1370
    %1820 = vmatpush1.bf16.msra.mxu0 %v1369
    %1821 = vmatprep.subr.bf16.mxu0 %v1374
    %1822 = vmatpush1.bf16.msra.mxu0 %v1373
    %1823 = vmatprep.subr.bf16.mxu0 %v1378
    %1824 = vmatpush1.bf16.msra.mxu0 %v1377
    %1825 = vmatprep.subr.bf16.mxu0 %v1382
    %1826 = vmatpush1.bf16.msra.mxu0 %v1381
    %1827 = vmatprep.subr.bf16.mxu0 %v1386
    %1828 = vmatpush1.bf16.msra.mxu0 %v1385
    %1829 = vmatprep.subr.bf16.mxu0 %v1390
    %1830 = vmatpush1.bf16.msra.mxu0 %v1389
    %1831 = vmatprep.subr.bf16.mxu0 %v1394
    %1832 = vmatpush1.bf16.msra.mxu0 %v1393
    %1833 = vmatprep.subr.bf16.mxu0 %v1398
    %1834 = vmatpush1.bf16.msra.mxu0 %v1397
    %1835 = vmatprep.mubr.bf16.mxu0 %v430
    %1836 = vmatmul.mubr.bf16.gmra.mrb[0].mxu0 %v429
    %v1837 = vpop.f32.mrb[0].mxu0
    %v1838 = vadd.f32 %v1797, %v1837
    %v1839 = vpop.f32.mrb[0].mxu0
    %v1840 = vadd.f32 %v1799, %v1839
    %v1841 = vpop.f32.mrb[0].mxu0
    %v1842 = vpop.f32.mrb[0].mxu0
    %1843 = vdwg.mxu0
    %1844 = vmatprep.subr.bf16.mxu0 %v1402
    %1845 = vmatpush1.bf16.msra.mxu0 %v1401
    %1846 = vmatprep.subr.bf16.mxu0 %v1406
    %1847 = vmatpush1.bf16.msra.mxu0 %v1405
    %1848 = vmatprep.subr.bf16.mxu0 %v1410
    %1849 = vmatpush1.bf16.msra.mxu0 %v1409
    %1850 = vmatprep.subr.bf16.mxu0 %v1414
    %1851 = vmatpush1.bf16.msra.mxu0 %v1413
    %1852 = vmatprep.subr.bf16.mxu0 %v1418
    %1853 = vmatpush1.bf16.msra.mxu0 %v1417
    %1854 = vmatprep.subr.bf16.mxu0 %v1422
    %1855 = vmatpush1.bf16.msra.mxu0 %v1421
    %1856 = vmatprep.subr.bf16.mxu0 %v1426
    %1857 = vmatpush1.bf16.msra.mxu0 %v1425
    %1858 = vmatprep.subr.bf16.mxu0 %v1430
    %1859 = vmatpush1.bf16.msra.mxu0 %v1429
    %1860 = vmatprep.subr.bf16.mxu0 %v1434
    %1861 = vmatpush1.bf16.msra.mxu0 %v1433
    %1862 = vmatprep.subr.bf16.mxu0 %v1438
    %1863 = vmatpush1.bf16.msra.mxu0 %v1437
    %1864 = vmatprep.subr.bf16.mxu0 %v1442
    %1865 = vmatpush1.bf16.msra.mxu0 %v1441
    %1866 = vmatprep.subr.bf16.mxu0 %v1446
    %1867 = vmatpush1.bf16.msra.mxu0 %v1445
    %1868 = vmatprep.subr.bf16.mxu0 %v1450
    %1869 = vmatpush1.bf16.msra.mxu0 %v1449
    %1870 = vmatprep.subr.bf16.mxu0 %v1454
    %1871 = vmatpush1.bf16.msra.mxu0 %v1453
    %1872 = vmatprep.subr.bf16.mxu0 %v1458
    %1873 = vmatpush1.bf16.msra.mxu0 %v1457
    %1874 = vmatprep.subr.bf16.mxu0 %v1462
    %1875 = vmatpush1.bf16.msra.mxu0 %v1461
    %1876 = vmatprep.mubr.bf16.mxu0 %v432
    %1877 = vmatmul.mubr.bf16.gmra.mrb[0].mxu0 %v431
    %v1878 = vpop.f32.mrb[0].mxu0
    %v1879 = vadd.f32 %v1838, %v1878
    %v1880 = vpop.f32.mrb[0].mxu0
    %v1881 = vadd.f32 %v1840, %v1880
    %v1882 = vpop.f32.mrb[0].mxu0
    %v1883 = vpop.f32.mrb[0].mxu0
    %1884 = vdwg.mxu0
    %1885 = vmatprep.subr.bf16.mxu0 %v1212
    %1886 = vmatpush1.bf16.msra.mxu0 %v1211
    %1887 = vmatprep.subr.bf16.mxu0 %v1216
    %1888 = vmatpush1.bf16.msra.mxu0 %v1215
    %1889 = vmatprep.subr.bf16.mxu0 %v1220
    %1890 = vmatpush1.bf16.msra.mxu0 %v1219
    %1891 = vmatprep.subr.bf16.mxu0 %v1224
    %1892 = vmatpush1.bf16.msra.mxu0 %v1223
    %1893 = vmatprep.subr.bf16.mxu0 %v1228
    %1894 = vmatpush1.bf16.msra.mxu0 %v1227
    %1895 = vmatprep.subr.bf16.mxu0 %v1232
    %1896 = vmatpush1.bf16.msra.mxu0 %v1231
    %1897 = vmatprep.subr.bf16.mxu0 %v1236
    %1898 = vmatpush1.bf16.msra.mxu0 %v1235
    %1899 = vmatprep.subr.bf16.mxu0 %v1240
    %1900 = vmatpush1.bf16.msra.mxu0 %v1239
    %1901 = vmatprep.subr.bf16.mxu0 %v1244
    %1902 = vmatpush1.bf16.msra.mxu0 %v1243
    %1903 = vmatprep.subr.bf16.mxu0 %v1248
    %1904 = vmatpush1.bf16.msra.mxu0 %v1247
    %1905 = vmatprep.subr.bf16.mxu0 %v1252
    %1906 = vmatpush1.bf16.msra.mxu0 %v1251
    %1907 = vmatprep.subr.bf16.mxu0 %v1256
    %1908 = vmatpush1.bf16.msra.mxu0 %v1255
    %1909 = vmatprep.subr.bf16.mxu0 %v1260
    %1910 = vmatpush1.bf16.msra.mxu0 %v1259
    %1911 = vmatprep.subr.bf16.mxu0 %v1264
    %1912 = vmatpush1.bf16.msra.mxu0 %v1263
    %1913 = vmatprep.subr.bf16.mxu0 %v1268
    %1914 = vmatpush1.bf16.msra.mxu0 %v1267
    %1915 = vmatprep.subr.bf16.mxu0 %v1272
    %1916 = vmatpush1.bf16.msra.mxu0 %v1271
    %1917 = vmatprep.mubr.bf16.mxu0 %v426
    %1918 = vmatmul.mubr.bf16.gmra.mrb[0].mxu0 %v425
    %v1919 = vpop.f32.mrb[0].mxu0
    %v1920 = vadd.f32 %v404, %v1919
    %v1921 = vpop.f32.mrb[0].mxu0
    %v1922 = vadd.f32 %v408, %v1921
    %v1923 = vpop.f32.mrb[0].mxu0
    %v1924 = vpop.f32.mrb[0].mxu0
    %1925 = vdwg.mxu0
    %1926 = vmatprep.subr.bf16.mxu0 %v1276
    %1927 = vmatpush1.bf16.msra.mxu0 %v1275
    %1928 = vmatprep.subr.bf16.mxu0 %v1280
    %1929 = vmatpush1.bf16.msra.mxu0 %v1279
    %1930 = vmatprep.subr.bf16.mxu0 %v1284
    %1931 = vmatpush1.bf16.msra.mxu0 %v1283
    %1932 = vmatprep.subr.bf16.mxu0 %v1288
    %1933 = vmatpush1.bf16.msra.mxu0 %v1287
    %1934 = vmatprep.subr.bf16.mxu0 %v1292
    %1935 = vmatpush1.bf16.msra.mxu0 %v1291
    %1936 = vmatprep.subr.bf16.mxu0 %v1296
    %1937 = vmatpush1.bf16.msra.mxu0 %v1295
    %1938 = vmatprep.subr.bf16.mxu0 %v1300
    %1939 = vmatpush1.bf16.msra.mxu0 %v1299
    %1940 = vmatprep.subr.bf16.mxu0 %v1304
    %1941 = vmatpush1.bf16.msra.mxu0 %v1303
    %1942 = vmatprep.subr.bf16.mxu0 %v1308
    %1943 = vmatpush1.bf16.msra.mxu0 %v1307
    %1944 = vmatprep.subr.bf16.mxu0 %v1312
    %1945 = vmatpush1.bf16.msra.mxu0 %v1311
    %1946 = vmatprep.subr.bf16.mxu0 %v1316
    %1947 = vmatpush1.bf16.msra.mxu0 %v1315
    %1948 = vmatprep.subr.bf16.mxu0 %v1320
    %1949 = vmatpush1.bf16.msra.mxu0 %v1319
    %1950 = vmatprep.subr.bf16.mxu0 %v1324
    %1951 = vmatpush1.bf16.msra.mxu0 %v1323
    %1952 = vmatprep.subr.bf16.mxu0 %v1328
    %1953 = vmatpush1.bf16.msra.mxu0 %v1327
    %1954 = vmatprep.subr.bf16.mxu0 %v1332
    %1955 = vmatpush1.bf16.msra.mxu0 %v1331
    %1956 = vmatprep.subr.bf16.mxu0 %v1336
    %1957 = vmatpush1.bf16.msra.mxu0 %v1335
    %1958 = vmatprep.mubr.bf16.mxu0 %v428
    %1959 = vmatmul.mubr.bf16.gmra.mrb[0].mxu0 %v427
    %v1960 = vpop.f32.mrb[0].mxu0
    %v1961 = vadd.f32 %v1920, %v1960
    %v1962 = vpop.f32.mrb[0].mxu0
    %v1963 = vadd.f32 %v1922, %v1962
    %v1964 = vpop.f32.mrb[0].mxu0
    %v1965 = vpop.f32.mrb[0].mxu0
    %1966 = vdwg.mxu0
    %1967 = vmatprep.subr.bf16.mxu0 %v1340
    %1968 = vmatpush1.bf16.msra.mxu0 %v1339
    %1969 = vmatprep.subr.bf16.mxu0 %v1344
    %1970 = vmatpush1.bf16.msra.mxu0 %v1343
    %1971 = vmatprep.subr.bf16.mxu0 %v1348
    %1972 = vmatpush1.bf16.msra.mxu0 %v1347
    %1973 = vmatprep.subr.bf16.mxu0 %v1352
    %1974 = vmatpush1.bf16.msra.mxu0 %v1351
    %1975 = vmatprep.subr.bf16.mxu0 %v1356
    %1976 = vmatpush1.bf16.msra.mxu0 %v1355
    %1977 = vmatprep.subr.bf16.mxu0 %v1360
    %1978 = vmatpush1.bf16.msra.mxu0 %v1359
    %1979 = vmatprep.subr.bf16.mxu0 %v1364
    %1980 = vmatpush1.bf16.msra.mxu0 %v1363
    %1981 = vmatprep.subr.bf16.mxu0 %v1368
    %1982 = vmatpush1.bf16.msra.mxu0 %v1367
    %1983 = vmatprep.subr.bf16.mxu0 %v1372
    %1984 = vmatpush1.bf16.msra.mxu0 %v1371
    %1985 = vmatprep.subr.bf16.mxu0 %v1376
    %1986 = vmatpush1.bf16.msra.mxu0 %v1375
    %1987 = vmatprep.subr.bf16.mxu0 %v1380
    %1988 = vmatpush1.bf16.msra.mxu0 %v1379
    %1989 = vmatprep.subr.bf16.mxu0 %v1384
    %1990 = vmatpush1.bf16.msra.mxu0 %v1383
    %1991 = vmatprep.subr.bf16.mxu0 %v1388
    %1992 = vmatpush1.bf16.msra.mxu0 %v1387
    %1993 = vmatprep.subr.bf16.mxu0 %v1392
    %1994 = vmatpush1.bf16.msra.mxu0 %v1391
    %1995 = vmatprep.subr.bf16.mxu0 %v1396
    %1996 = vmatpush1.bf16.msra.mxu0 %v1395
    %1997 = vmatprep.subr.bf16.mxu0 %v1400
    %1998 = vmatpush1.bf16.msra.mxu0 %v1399
    %1999 = vmatprep.mubr.bf16.mxu0 %v430
    %2000 = vmatmul.mubr.bf16.gmra.mrb[0].mxu0 %v429
    %v2001 = vpop.f32.mrb[0].mxu0
    %v2002 = vadd.f32 %v1961, %v2001
    %v2003 = vpop.f32.mrb[0].mxu0
    %v2004 = vadd.f32 %v1963, %v2003
    %v2005 = vpop.f32.mrb[0].mxu0
    %v2006 = vpop.f32.mrb[0].mxu0
    %2007 = vdwg.mxu0
    %2008 = vmatprep.subr.bf16.mxu0 %v1404
    %2009 = vmatpush1.bf16.msra.mxu0 %v1403
    %2010 = vmatprep.subr.bf16.mxu0 %v1408
    %2011 = vmatpush1.bf16.msra.mxu0 %v1407
    %2012 = vmatprep.subr.bf16.mxu0 %v1412
    %2013 = vmatpush1.bf16.msra.mxu0 %v1411
    %2014 = vmatprep.subr.bf16.mxu0 %v1416
    %2015 = vmatpush1.bf16.msra.mxu0 %v1415
    %2016 = vmatprep.subr.bf16.mxu0 %v1420
    %2017 = vmatpush1.bf16.msra.mxu0 %v1419
    %2018 = vmatprep.subr.bf16.mxu0 %v1424
    %2019 = vmatpush1.bf16.msra.mxu0 %v1423
    %2020 = vmatprep.subr.bf16.mxu0 %v1428
    %2021 = vmatpush1.bf16.msra.mxu0 %v1427
    %2022 = vmatprep.subr.bf16.mxu0 %v1432
    %2023 = vmatpush1.bf16.msra.mxu0 %v1431
    %2024 = vmatprep.subr.bf16.mxu0 %v1436
    %2025 = vmatpush1.bf16.msra.mxu0 %v1435
    %2026 = vmatprep.subr.bf16.mxu0 %v1440
    %2027 = vmatpush1.bf16.msra.mxu0 %v1439
    %2028 = vmatprep.subr.bf16.mxu0 %v1444
    %2029 = vmatpush1.bf16.msra.mxu0 %v1443
    %2030 = vmatprep.subr.bf16.mxu0 %v1448
    %2031 = vmatpush1.bf16.msra.mxu0 %v1447
    %2032 = vmatprep.subr.bf16.mxu0 %v1452
    %2033 = vmatpush1.bf16.msra.mxu0 %v1451
    %2034 = vmatprep.subr.bf16.mxu0 %v1456
    %2035 = vmatpush1.bf16.msra.mxu0 %v1455
    %2036 = vmatprep.subr.bf16.mxu0 %v1460
    %2037 = vmatpush1.bf16.msra.mxu0 %v1459
    %2038 = vmatprep.subr.bf16.mxu0 %v1464
    %2039 = vmatpush1.bf16.msra.mxu0 %v1463
    %2040 = vmatprep.mubr.bf16.mxu0 %v432
    %2041 = vmatmul.mubr.bf16.gmra.mrb[0].mxu0 %v431
    %v2042 = vpop.f32.mrb[0].mxu0
    %v2043 = vadd.f32 %v2002, %v2042
    %v2044 = vpop.f32.mrb[0].mxu0
    %v2045 = vadd.f32 %v2004, %v2044
    %v2046 = vpop.f32.mrb[0].mxu0
    %v2047 = vpop.f32.mrb[0].mxu0
    %2048 = vdwg.mxu0
    %v2049 = vmax.f32 %v1879, 0.0
    %v2050 = vmax.f32 %v1881, 0.0
    %v2051 = vmax.f32 %v2043, 0.0
    %v2052 = vmax.f32 %v2045, 0.0
    %v2053 = vpack.c.bf16 %v2049, %v2049
    %v2054 = vpack.c.bf16 %v2050, %v2050
    %v2055 = vpack.c.bf16 %v2051, %v2051
    %v2056 = vpack.c.bf16 %v2052, %v2052
    %v2057 = vld [vmem:[#allocation7] sm:$0xff]
    %v2058 = vld [vmem:[#allocation7 + $0x8] sm:$0xff]
    %v2059 = vld [vmem:[#allocation7 + $0x10] sm:$0xff]
    %v2060 = vld [vmem:[#allocation7 + $0x18] sm:$0xff]
    %v2061 = vld [vmem:[#allocation7 + $0x20] sm:$0xff]
    %v2062 = vld [vmem:[#allocation7 + $0x28] sm:$0xff]
    %v2063 = vld [vmem:[#allocation7 + $0x30] sm:$0xff]
    %v2064 = vld [vmem:[#allocation7 + $0x38] sm:$0xff]
    %v2065 = vld [vmem:[#allocation7 + $0x40] sm:$0xff]
    %v2066 = vld [vmem:[#allocation7 + $0x48] sm:$0xff]
    %v2067 = vld [vmem:[#allocation7 + $0x50] sm:$0xff]
    %v2068 = vld [vmem:[#allocation7 + $0x58] sm:$0xff]
    %v2069 = vld [vmem:[#allocation7 + $0x60] sm:$0xff]
    %v2070 = vld [vmem:[#allocation7 + $0x68] sm:$0xff]
    %v2071 = vld [vmem:[#allocation7 + $0x70] sm:$0xff]
    %v2072 = vld [vmem:[#allocation7 + $0x78] sm:$0xff]
    %v2073 = vld [vmem:[#allocation7 + $0x80] sm:$0xff]
    %v2074 = vld [vmem:[#allocation7 + $0x88] sm:$0xff]
    %v2075 = vld [vmem:[#allocation7 + $0x90] sm:$0xff]
    %v2076 = vld [vmem:[#allocation7 + $0x98] sm:$0xff]
    %v2077 = vld [vmem:[#allocation7 + $0xa0] sm:$0xff]
    %v2078 = vld [vmem:[#allocation7 + $0xa8] sm:$0xff]
    %v2079 = vld [vmem:[#allocation7 + $0xb0] sm:$0xff]
    %v2080 = vld [vmem:[#allocation7 + $0xb8] sm:$0xff]
    %v2081 = vld [vmem:[#allocation7 + $0xc0] sm:$0xff]
    %v2082 = vld [vmem:[#allocation7 + $0xc8] sm:$0xff]
    %v2083 = vld [vmem:[#allocation7 + $0xd0] sm:$0xff]
    %v2084 = vld [vmem:[#allocation7 + $0xd8] sm:$0xff]
    %v2085 = vld [vmem:[#allocation7 + $0xe0] sm:$0xff]
    %v2086 = vld [vmem:[#allocation7 + $0xe8] sm:$0xff]
    %v2087 = vld [vmem:[#allocation7 + $0xf0] sm:$0xff]
    %v2088 = vld [vmem:[#allocation7 + $0xf8] sm:$0xff]
    %v2089 = vld [vmem:[#allocation7 + $0x100] sm:$0xff]
    %v2090 = vld [vmem:[#allocation7 + $0x108] sm:$0xff]
    %v2091 = vld [vmem:[#allocation7 + $0x110] sm:$0xff]
    %v2092 = vld [vmem:[#allocation7 + $0x118] sm:$0xff]
    %v2093 = vld [vmem:[#allocation7 + $0x120] sm:$0xff]
    %v2094 = vld [vmem:[#allocation7 + $0x128] sm:$0xff]
    %v2095 = vld [vmem:[#allocation7 + $0x130] sm:$0xff]
    %v2096 = vld [vmem:[#allocation7 + $0x138] sm:$0xff]
    %v2097 = vld [vmem:[#allocation7 + $0x140] sm:$0xff]
    %v2098 = vld [vmem:[#allocation7 + $0x148] sm:$0xff]
    %v2099 = vld [vmem:[#allocation7 + $0x150] sm:$0xff]
    %v2100 = vld [vmem:[#allocation7 + $0x158] sm:$0xff]
    %v2101 = vld [vmem:[#allocation7 + $0x160] sm:$0xff]
    %v2102 = vld [vmem:[#allocation7 + $0x168] sm:$0xff]
    %v2103 = vld [vmem:[#allocation7 + $0x170] sm:$0xff]
    %v2104 = vld [vmem:[#allocation7 + $0x178] sm:$0xff]
    %v2105 = vld [vmem:[#allocation7 + $0x180] sm:$0xff]
    %v2106 = vld [vmem:[#allocation7 + $0x188] sm:$0xff]
    %v2107 = vld [vmem:[#allocation7 + $0x190] sm:$0xff]
    %v2108 = vld [vmem:[#allocation7 + $0x198] sm:$0xff]
    %v2109 = vld [vmem:[#allocation7 + $0x1a0] sm:$0xff]
    %v2110 = vld [vmem:[#allocation7 + $0x1a8] sm:$0xff]
    %v2111 = vld [vmem:[#allocation7 + $0x1b0] sm:$0xff]
    %v2112 = vld [vmem:[#allocation7 + $0x1b8] sm:$0xff]
    %v2113 = vld [vmem:[#allocation7 + $0x1c0] sm:$0xff]
    %v2114 = vld [vmem:[#allocation7 + $0x1c8] sm:$0xff]
    %v2115 = vld [vmem:[#allocation7 + $0x1d0] sm:$0xff]
    %v2116 = vld [vmem:[#allocation7 + $0x1d8] sm:$0xff]
    %v2117 = vld [vmem:[#allocation7 + $0x1e0] sm:$0xff]
    %v2118 = vld [vmem:[#allocation7 + $0x1e8] sm:$0xff]
    %v2119 = vld [vmem:[#allocation7 + $0x1f0] sm:$0xff]
    %v2120 = vld [vmem:[#allocation7 + $0x1f8] sm:$0xff]
    %v2121 = vld [vmem:[#allocation7 + $0x200] sm:$0xff]
    %v2122 = vld [vmem:[#allocation7 + $0x208] sm:$0xff]
    %v2123 = vld [vmem:[#allocation7 + $0x210] sm:$0xff]
    %v2124 = vld [vmem:[#allocation7 + $0x218] sm:$0xff]
    %v2125 = vld [vmem:[#allocation7 + $0x220] sm:$0xff]
    %v2126 = vld [vmem:[#allocation7 + $0x228] sm:$0xff]
    %v2127 = vld [vmem:[#allocation7 + $0x230] sm:$0xff]
    %v2128 = vld [vmem:[#allocation7 + $0x238] sm:$0xff]
    %v2129 = vld [vmem:[#allocation7 + $0x240] sm:$0xff]
    %v2130 = vld [vmem:[#allocation7 + $0x248] sm:$0xff]
    %v2131 = vld [vmem:[#allocation7 + $0x250] sm:$0xff]
    %v2132 = vld [vmem:[#allocation7 + $0x258] sm:$0xff]
    %v2133 = vld [vmem:[#allocation7 + $0x260] sm:$0xff]
    %v2134 = vld [vmem:[#allocation7 + $0x268] sm:$0xff]
    %v2135 = vld [vmem:[#allocation7 + $0x270] sm:$0xff]
    %v2136 = vld [vmem:[#allocation7 + $0x278] sm:$0xff]
    %v2137 = vld [vmem:[#allocation7 + $0x280] sm:$0xff]
    %v2138 = vld [vmem:[#allocation7 + $0x288] sm:$0xff]
    %v2139 = vld [vmem:[#allocation7 + $0x290] sm:$0xff]
    %v2140 = vld [vmem:[#allocation7 + $0x298] sm:$0xff]
    %v2141 = vld [vmem:[#allocation7 + $0x2a0] sm:$0xff]
    %v2142 = vld [vmem:[#allocation7 + $0x2a8] sm:$0xff]
    %v2143 = vld [vmem:[#allocation7 + $0x2b0] sm:$0xff]
    %v2144 = vld [vmem:[#allocation7 + $0x2b8] sm:$0xff]
    %v2145 = vld [vmem:[#allocation7 + $0x2c0] sm:$0xff]
    %v2146 = vld [vmem:[#allocation7 + $0x2c8] sm:$0xff]
    %v2147 = vld [vmem:[#allocation7 + $0x2d0] sm:$0xff]
    %v2148 = vld [vmem:[#allocation7 + $0x2d8] sm:$0xff]
    %v2149 = vld [vmem:[#allocation7 + $0x2e0] sm:$0xff]
    %v2150 = vld [vmem:[#allocation7 + $0x2e8] sm:$0xff]
    %v2151 = vld [vmem:[#allocation7 + $0x2f0] sm:$0xff]
    %v2152 = vld [vmem:[#allocation7 + $0x2f8] sm:$0xff]
    %v2153 = vld [vmem:[#allocation7 + $0x300] sm:$0xff]
    %v2154 = vld [vmem:[#allocation7 + $0x308] sm:$0xff]
    %v2155 = vld [vmem:[#allocation7 + $0x310] sm:$0xff]
    %v2156 = vld [vmem:[#allocation7 + $0x318] sm:$0xff]
    %v2157 = vld [vmem:[#allocation7 + $0x320] sm:$0xff]
    %v2158 = vld [vmem:[#allocation7 + $0x328] sm:$0xff]
    %v2159 = vld [vmem:[#allocation7 + $0x330] sm:$0xff]
    %v2160 = vld [vmem:[#allocation7 + $0x338] sm:$0xff]
    %v2161 = vld [vmem:[#allocation7 + $0x340] sm:$0xff]
    %v2162 = vld [vmem:[#allocation7 + $0x348] sm:$0xff]
    %v2163 = vld [vmem:[#allocation7 + $0x350] sm:$0xff]
    %v2164 = vld [vmem:[#allocation7 + $0x358] sm:$0xff]
    %v2165 = vld [vmem:[#allocation7 + $0x360] sm:$0xff]
    %v2166 = vld [vmem:[#allocation7 + $0x368] sm:$0xff]
    %v2167 = vld [vmem:[#allocation7 + $0x370] sm:$0xff]
    %v2168 = vld [vmem:[#allocation7 + $0x378] sm:$0xff]
    %v2169 = vld [vmem:[#allocation7 + $0x380] sm:$0xff]
    %v2170 = vld [vmem:[#allocation7 + $0x388] sm:$0xff]
    %v2171 = vld [vmem:[#allocation7 + $0x390] sm:$0xff]
    %v2172 = vld [vmem:[#allocation7 + $0x398] sm:$0xff]
    %v2173 = vld [vmem:[#allocation7 + $0x3a0] sm:$0xff]
    %v2174 = vld [vmem:[#allocation7 + $0x3a8] sm:$0xff]
    %v2175 = vld [vmem:[#allocation7 + $0x3b0] sm:$0xff]
    %v2176 = vld [vmem:[#allocation7 + $0x3b8] sm:$0xff]
    %v2177 = vld [vmem:[#allocation7 + $0x3c0] sm:$0xff]
    %v2178 = vld [vmem:[#allocation7 + $0x3c8] sm:$0xff]
    %v2179 = vld [vmem:[#allocation7 + $0x3d0] sm:$0xff]
    %v2180 = vld [vmem:[#allocation7 + $0x3d8] sm:$0xff]
    %v2181 = vld [vmem:[#allocation7 + $0x3e0] sm:$0xff]
    %v2182 = vld [vmem:[#allocation7 + $0x3e8] sm:$0xff]
    %v2183 = vld [vmem:[#allocation7 + $0x3f0] sm:$0xff]
    %v2184 = vld [vmem:[#allocation7 + $0x3f8] sm:$0xff]
    %v2185 = vld [vmem:[#allocation8] sm:$0xf]
    %v2187 = vlaneseq
    %v2188 = vshrl.u32 %v2187, 7
    %v2189 = vsub.s32 0, %v2188
    %v2190 = vrot.slane %v2185, %v2189
    %v2191 = vlaneseq
    %v2192 = vshrl.u32 %v2191, 7
    %v2193 = vsub.s32 1, %v2192
    %v2194 = vrot.slane %v2185, %v2193
    %v2195 = vlaneseq
    %v2196 = vshrl.u32 %v2195, 7
    %v2197 = vsub.s32 2, %v2196
    %v2198 = vrot.slane %v2185, %v2197
    %v2199 = vlaneseq
    %v2200 = vshrl.u32 %v2199, 7
    %v2201 = vsub.s32 3, %v2200
    %v2202 = vrot.slane %v2185, %v2201
    %v2335 = vunpack.c.l.b16 %v2057
    %v2336 = vunpack.c.h.b16 %v2057
    %v2337 = vunpack.c.l.b16 %v2058
    %v2338 = vunpack.c.h.b16 %v2058
    %v2339 = vunpack.c.l.b16 %v2059
    %v2340 = vunpack.c.h.b16 %v2059
    %v2341 = vunpack.c.l.b16 %v2060
    %v2342 = vunpack.c.h.b16 %v2060
    %v2343 = vunpack.c.l.b16 %v2061
    %v2344 = vunpack.c.h.b16 %v2061
    %v2345 = vunpack.c.l.b16 %v2062
    %v2346 = vunpack.c.h.b16 %v2062
    %v2347 = vunpack.c.l.b16 %v2063
    %v2348 = vunpack.c.h.b16 %v2063
    %v2349 = vunpack.c.l.b16 %v2064
    %v2350 = vunpack.c.h.b16 %v2064
    %v2351 = vunpack.c.l.b16 %v2065
    %v2352 = vunpack.c.h.b16 %v2065
    %v2353 = vunpack.c.l.b16 %v2066
    %v2354 = vunpack.c.h.b16 %v2066
    %v2355 = vunpack.c.l.b16 %v2067
    %v2356 = vunpack.c.h.b16 %v2067
    %v2357 = vunpack.c.l.b16 %v2068
    %v2358 = vunpack.c.h.b16 %v2068
    %v2359 = vunpack.c.l.b16 %v2069
    %v2360 = vunpack.c.h.b16 %v2069
    %v2361 = vunpack.c.l.b16 %v2070
    %v2362 = vunpack.c.h.b16 %v2070
    %v2363 = vunpack.c.l.b16 %v2071
    %v2364 = vunpack.c.h.b16 %v2071
    %v2365 = vunpack.c.l.b16 %v2072
    %v2366 = vunpack.c.h.b16 %v2072
    %v2367 = vunpack.c.l.b16 %v2073
    %v2368 = vunpack.c.h.b16 %v2073
    %v2369 = vunpack.c.l.b16 %v2074
    %v2370 = vunpack.c.h.b16 %v2074
    %v2371 = vunpack.c.l.b16 %v2075
    %v2372 = vunpack.c.h.b16 %v2075
    %v2373 = vunpack.c.l.b16 %v2076
    %v2374 = vunpack.c.h.b16 %v2076
    %v2375 = vunpack.c.l.b16 %v2077
    %v2376 = vunpack.c.h.b16 %v2077
    %v2377 = vunpack.c.l.b16 %v2078
    %v2378 = vunpack.c.h.b16 %v2078
    %v2379 = vunpack.c.l.b16 %v2079
    %v2380 = vunpack.c.h.b16 %v2079
    %v2381 = vunpack.c.l.b16 %v2080
    %v2382 = vunpack.c.h.b16 %v2080
    %v2383 = vunpack.c.l.b16 %v2081
    %v2384 = vunpack.c.h.b16 %v2081
    %v2385 = vunpack.c.l.b16 %v2082
    %v2386 = vunpack.c.h.b16 %v2082
    %v2387 = vunpack.c.l.b16 %v2083
    %v2388 = vunpack.c.h.b16 %v2083
    %v2389 = vunpack.c.l.b16 %v2084
    %v2390 = vunpack.c.h.b16 %v2084
    %v2391 = vunpack.c.l.b16 %v2085
    %v2392 = vunpack.c.h.b16 %v2085
    %v2393 = vunpack.c.l.b16 %v2086
    %v2394 = vunpack.c.h.b16 %v2086
    %v2395 = vunpack.c.l.b16 %v2087
    %v2396 = vunpack.c.h.b16 %v2087
    %v2397 = vunpack.c.l.b16 %v2088
    %v2398 = vunpack.c.h.b16 %v2088
    %v2399 = vunpack.c.l.b16 %v2089
    %v2400 = vunpack.c.h.b16 %v2089
    %v2401 = vunpack.c.l.b16 %v2090
    %v2402 = vunpack.c.h.b16 %v2090
    %v2403 = vunpack.c.l.b16 %v2091
    %v2404 = vunpack.c.h.b16 %v2091
    %v2405 = vunpack.c.l.b16 %v2092
    %v2406 = vunpack.c.h.b16 %v2092
    %v2407 = vunpack.c.l.b16 %v2093
    %v2408 = vunpack.c.h.b16 %v2093
    %v2409 = vunpack.c.l.b16 %v2094
    %v2410 = vunpack.c.h.b16 %v2094
    %v2411 = vunpack.c.l.b16 %v2095
    %v2412 = vunpack.c.h.b16 %v2095
    %v2413 = vunpack.c.l.b16 %v2096
    %v2414 = vunpack.c.h.b16 %v2096
    %v2415 = vunpack.c.l.b16 %v2097
    %v2416 = vunpack.c.h.b16 %v2097
    %v2417 = vunpack.c.l.b16 %v2098
    %v2418 = vunpack.c.h.b16 %v2098
    %v2419 = vunpack.c.l.b16 %v2099
    %v2420 = vunpack.c.h.b16 %v2099
    %v2421 = vunpack.c.l.b16 %v2100
    %v2422 = vunpack.c.h.b16 %v2100
    %v2423 = vunpack.c.l.b16 %v2101
    %v2424 = vunpack.c.h.b16 %v2101
    %v2425 = vunpack.c.l.b16 %v2102
    %v2426 = vunpack.c.h.b16 %v2102
    %v2427 = vunpack.c.l.b16 %v2103
    %v2428 = vunpack.c.h.b16 %v2103
    %v2429 = vunpack.c.l.b16 %v2104
    %v2430 = vunpack.c.h.b16 %v2104
    %v2431 = vunpack.c.l.b16 %v2105
    %v2432 = vunpack.c.h.b16 %v2105
    %v2433 = vunpack.c.l.b16 %v2106
    %v2434 = vunpack.c.h.b16 %v2106
    %v2435 = vunpack.c.l.b16 %v2107
    %v2436 = vunpack.c.h.b16 %v2107
    %v2437 = vunpack.c.l.b16 %v2108
    %v2438 = vunpack.c.h.b16 %v2108
    %v2439 = vunpack.c.l.b16 %v2109
    %v2440 = vunpack.c.h.b16 %v2109
    %v2441 = vunpack.c.l.b16 %v2110
    %v2442 = vunpack.c.h.b16 %v2110
    %v2443 = vunpack.c.l.b16 %v2111
    %v2444 = vunpack.c.h.b16 %v2111
    %v2445 = vunpack.c.l.b16 %v2112
    %v2446 = vunpack.c.h.b16 %v2112
    %v2447 = vunpack.c.l.b16 %v2113
    %v2448 = vunpack.c.h.b16 %v2113
    %v2449 = vunpack.c.l.b16 %v2114
    %v2450 = vunpack.c.h.b16 %v2114
    %v2451 = vunpack.c.l.b16 %v2115
    %v2452 = vunpack.c.h.b16 %v2115
    %v2453 = vunpack.c.l.b16 %v2116
    %v2454 = vunpack.c.h.b16 %v2116
    %v2455 = vunpack.c.l.b16 %v2117
    %v2456 = vunpack.c.h.b16 %v2117
    %v2457 = vunpack.c.l.b16 %v2118
    %v2458 = vunpack.c.h.b16 %v2118
    %v2459 = vunpack.c.l.b16 %v2119
    %v2460 = vunpack.c.h.b16 %v2119
    %v2461 = vunpack.c.l.b16 %v2120
    %v2462 = vunpack.c.h.b16 %v2120
    %v2463 = vunpack.c.l.b16 %v2121
    %v2464 = vunpack.c.h.b16 %v2121
    %v2465 = vunpack.c.l.b16 %v2122
    %v2466 = vunpack.c.h.b16 %v2122
    %v2467 = vunpack.c.l.b16 %v2123
    %v2468 = vunpack.c.h.b16 %v2123
    %v2469 = vunpack.c.l.b16 %v2124
    %v2470 = vunpack.c.h.b16 %v2124
    %v2471 = vunpack.c.l.b16 %v2125
    %v2472 = vunpack.c.h.b16 %v2125
    %v2473 = vunpack.c.l.b16 %v2126
    %v2474 = vunpack.c.h.b16 %v2126
    %v2475 = vunpack.c.l.b16 %v2127
    %v2476 = vunpack.c.h.b16 %v2127
    %v2477 = vunpack.c.l.b16 %v2128
    %v2478 = vunpack.c.h.b16 %v2128
    %v2479 = vunpack.c.l.b16 %v2129
    %v2480 = vunpack.c.h.b16 %v2129
    %v2481 = vunpack.c.l.b16 %v2130
    %v2482 = vunpack.c.h.b16 %v2130
    %v2483 = vunpack.c.l.b16 %v2131
    %v2484 = vunpack.c.h.b16 %v2131
    %v2485 = vunpack.c.l.b16 %v2132
    %v2486 = vunpack.c.h.b16 %v2132
    %v2487 = vunpack.c.l.b16 %v2133
    %v2488 = vunpack.c.h.b16 %v2133
    %v2489 = vunpack.c.l.b16 %v2134
    %v2490 = vunpack.c.h.b16 %v2134
    %v2491 = vunpack.c.l.b16 %v2135
    %v2492 = vunpack.c.h.b16 %v2135
    %v2493 = vunpack.c.l.b16 %v2136
    %v2494 = vunpack.c.h.b16 %v2136
    %v2495 = vunpack.c.l.b16 %v2137
    %v2496 = vunpack.c.h.b16 %v2137
    %v2497 = vunpack.c.l.b16 %v2138
    %v2498 = vunpack.c.h.b16 %v2138
    %v2499 = vunpack.c.l.b16 %v2139
    %v2500 = vunpack.c.h.b16 %v2139
    %v2501 = vunpack.c.l.b16 %v2140
    %v2502 = vunpack.c.h.b16 %v2140
    %v2503 = vunpack.c.l.b16 %v2141
    %v2504 = vunpack.c.h.b16 %v2141
    %v2505 = vunpack.c.l.b16 %v2142
    %v2506 = vunpack.c.h.b16 %v2142
    %v2507 = vunpack.c.l.b16 %v2143
    %v2508 = vunpack.c.h.b16 %v2143
    %v2509 = vunpack.c.l.b16 %v2144
    %v2510 = vunpack.c.h.b16 %v2144
    %v2511 = vunpack.c.l.b16 %v2145
    %v2512 = vunpack.c.h.b16 %v2145
    %v2513 = vunpack.c.l.b16 %v2146
    %v2514 = vunpack.c.h.b16 %v2146
    %v2515 = vunpack.c.l.b16 %v2147
    %v2516 = vunpack.c.h.b16 %v2147
    %v2517 = vunpack.c.l.b16 %v2148
    %v2518 = vunpack.c.h.b16 %v2148
    %v2519 = vunpack.c.l.b16 %v2149
    %v2520 = vunpack.c.h.b16 %v2149
    %v2521 = vunpack.c.l.b16 %v2150
    %v2522 = vunpack.c.h.b16 %v2150
    %v2523 = vunpack.c.l.b16 %v2151
    %v2524 = vunpack.c.h.b16 %v2151
    %v2525 = vunpack.c.l.b16 %v2152
    %v2526 = vunpack.c.h.b16 %v2152
    %v2527 = vunpack.c.l.b16 %v2153
    %v2528 = vunpack.c.h.b16 %v2153
    %v2529 = vunpack.c.l.b16 %v2154
    %v2530 = vunpack.c.h.b16 %v2154
    %v2531 = vunpack.c.l.b16 %v2155
    %v2532 = vunpack.c.h.b16 %v2155
    %v2533 = vunpack.c.l.b16 %v2156
    %v2534 = vunpack.c.h.b16 %v2156
    %v2535 = vunpack.c.l.b16 %v2157
    %v2536 = vunpack.c.h.b16 %v2157
    %v2537 = vunpack.c.l.b16 %v2158
    %v2538 = vunpack.c.h.b16 %v2158
    %v2539 = vunpack.c.l.b16 %v2159
    %v2540 = vunpack.c.h.b16 %v2159
    %v2541 = vunpack.c.l.b16 %v2160
    %v2542 = vunpack.c.h.b16 %v2160
    %v2543 = vunpack.c.l.b16 %v2161
    %v2544 = vunpack.c.h.b16 %v2161
    %v2545 = vunpack.c.l.b16 %v2162
    %v2546 = vunpack.c.h.b16 %v2162
    %v2547 = vunpack.c.l.b16 %v2163
    %v2548 = vunpack.c.h.b16 %v2163
    %v2549 = vunpack.c.l.b16 %v2164
    %v2550 = vunpack.c.h.b16 %v2164
    %v2551 = vunpack.c.l.b16 %v2165
    %v2552 = vunpack.c.h.b16 %v2165
    %v2553 = vunpack.c.l.b16 %v2166
    %v2554 = vunpack.c.h.b16 %v2166
    %v2555 = vunpack.c.l.b16 %v2167
    %v2556 = vunpack.c.h.b16 %v2167
    %v2557 = vunpack.c.l.b16 %v2168
    %v2558 = vunpack.c.h.b16 %v2168
    %v2559 = vunpack.c.l.b16 %v2169
    %v2560 = vunpack.c.h.b16 %v2169
    %v2561 = vunpack.c.l.b16 %v2170
    %v2562 = vunpack.c.h.b16 %v2170
    %v2563 = vunpack.c.l.b16 %v2171
    %v2564 = vunpack.c.h.b16 %v2171
    %v2565 = vunpack.c.l.b16 %v2172
    %v2566 = vunpack.c.h.b16 %v2172
    %v2567 = vunpack.c.l.b16 %v2173
    %v2568 = vunpack.c.h.b16 %v2173
    %v2569 = vunpack.c.l.b16 %v2174
    %v2570 = vunpack.c.h.b16 %v2174
    %v2571 = vunpack.c.l.b16 %v2175
    %v2572 = vunpack.c.h.b16 %v2175
    %v2573 = vunpack.c.l.b16 %v2176
    %v2574 = vunpack.c.h.b16 %v2176
    %v2575 = vunpack.c.l.b16 %v2177
    %v2576 = vunpack.c.h.b16 %v2177
    %v2577 = vunpack.c.l.b16 %v2178
    %v2578 = vunpack.c.h.b16 %v2178
    %v2579 = vunpack.c.l.b16 %v2179
    %v2580 = vunpack.c.h.b16 %v2179
    %v2581 = vunpack.c.l.b16 %v2180
    %v2582 = vunpack.c.h.b16 %v2180
    %v2583 = vunpack.c.l.b16 %v2181
    %v2584 = vunpack.c.h.b16 %v2181
    %v2585 = vunpack.c.l.b16 %v2182
    %v2586 = vunpack.c.h.b16 %v2182
    %v2587 = vunpack.c.l.b16 %v2183
    %v2588 = vunpack.c.h.b16 %v2183
    %v2589 = vunpack.c.l.b16 %v2184
    %v2590 = vunpack.c.h.b16 %v2184
    %v2591 = vpack.c.b16 %v2339, %v2335
    %v2592 = vpack.c.b16 %v2340, %v2336
    %v2593 = vpack.c.b16 %v2341, %v2337
    %v2594 = vpack.c.b16 %v2342, %v2338
    %v2595 = vpack.c.b16 %v2347, %v2343
    %v2596 = vpack.c.b16 %v2348, %v2344
    %v2597 = vpack.c.b16 %v2349, %v2345
    %v2598 = vpack.c.b16 %v2350, %v2346
    %v2599 = vpack.c.b16 %v2355, %v2351
    %v2600 = vpack.c.b16 %v2356, %v2352
    %v2601 = vpack.c.b16 %v2357, %v2353
    %v2602 = vpack.c.b16 %v2358, %v2354
    %v2603 = vpack.c.b16 %v2363, %v2359
    %v2604 = vpack.c.b16 %v2364, %v2360
    %v2605 = vpack.c.b16 %v2365, %v2361
    %v2606 = vpack.c.b16 %v2366, %v2362
    %v2607 = vpack.c.b16 %v2371, %v2367
    %v2608 = vpack.c.b16 %v2372, %v2368
    %v2609 = vpack.c.b16 %v2373, %v2369
    %v2610 = vpack.c.b16 %v2374, %v2370
    %v2611 = vpack.c.b16 %v2379, %v2375
    %v2612 = vpack.c.b16 %v2380, %v2376
    %v2613 = vpack.c.b16 %v2381, %v2377
    %v2614 = vpack.c.b16 %v2382, %v2378
    %v2615 = vpack.c.b16 %v2387, %v2383
    %v2616 = vpack.c.b16 %v2388, %v2384
    %v2617 = vpack.c.b16 %v2389, %v2385
    %v2618 = vpack.c.b16 %v2390, %v2386
    %v2619 = vpack.c.b16 %v2395, %v2391
    %v2620 = vpack.c.b16 %v2396, %v2392
    %v2621 = vpack.c.b16 %v2397, %v2393
    %v2622 = vpack.c.b16 %v2398, %v2394
    %v2623 = vpack.c.b16 %v2403, %v2399
    %v2624 = vpack.c.b16 %v2404, %v2400
    %v2625 = vpack.c.b16 %v2405, %v2401
    %v2626 = vpack.c.b16 %v2406, %v2402
    %v2627 = vpack.c.b16 %v2411, %v2407
    %v2628 = vpack.c.b16 %v2412, %v2408
    %v2629 = vpack.c.b16 %v2413, %v2409
    %v2630 = vpack.c.b16 %v2414, %v2410
    %v2631 = vpack.c.b16 %v2419, %v2415
    %v2632 = vpack.c.b16 %v2420, %v2416
    %v2633 = vpack.c.b16 %v2421, %v2417
    %v2634 = vpack.c.b16 %v2422, %v2418
    %v2635 = vpack.c.b16 %v2427, %v2423
    %v2636 = vpack.c.b16 %v2428, %v2424
    %v2637 = vpack.c.b16 %v2429, %v2425
    %v2638 = vpack.c.b16 %v2430, %v2426
    %v2639 = vpack.c.b16 %v2435, %v2431
    %v2640 = vpack.c.b16 %v2436, %v2432
    %v2641 = vpack.c.b16 %v2437, %v2433
    %v2642 = vpack.c.b16 %v2438, %v2434
    %v2643 = vpack.c.b16 %v2443, %v2439
    %v2644 = vpack.c.b16 %v2444, %v2440
    %v2645 = vpack.c.b16 %v2445, %v2441
    %v2646 = vpack.c.b16 %v2446, %v2442
    %v2647 = vpack.c.b16 %v2451, %v2447
    %v2648 = vpack.c.b16 %v2452, %v2448
    %v2649 = vpack.c.b16 %v2453, %v2449
    %v2650 = vpack.c.b16 %v2454, %v2450
    %v2651 = vpack.c.b16 %v2459, %v2455
    %v2652 = vpack.c.b16 %v2460, %v2456
    %v2653 = vpack.c.b16 %v2461, %v2457
    %v2654 = vpack.c.b16 %v2462, %v2458
    %v2655 = vpack.c.b16 %v2467, %v2463
    %v2656 = vpack.c.b16 %v2468, %v2464
    %v2657 = vpack.c.b16 %v2469, %v2465
    %v2658 = vpack.c.b16 %v2470, %v2466
    %v2659 = vpack.c.b16 %v2475, %v2471
    %v2660 = vpack.c.b16 %v2476, %v2472
    %v2661 = vpack.c.b16 %v2477, %v2473
    %v2662 = vpack.c.b16 %v2478, %v2474
    %v2663 = vpack.c.b16 %v2483, %v2479
    %v2664 = vpack.c.b16 %v2484, %v2480
    %v2665 = vpack.c.b16 %v2485, %v2481
    %v2666 = vpack.c.b16 %v2486, %v2482
    %v2667 = vpack.c.b16 %v2491, %v2487
    %v2668 = vpack.c.b16 %v2492, %v2488
    %v2669 = vpack.c.b16 %v2493, %v2489
    %v2670 = vpack.c.b16 %v2494, %v2490
    %v2671 = vpack.c.b16 %v2499, %v2495
    %v2672 = vpack.c.b16 %v2500, %v2496
    %v2673 = vpack.c.b16 %v2501, %v2497
    %v2674 = vpack.c.b16 %v2502, %v2498
    %v2675 = vpack.c.b16 %v2507, %v2503
    %v2676 = vpack.c.b16 %v2508, %v2504
    %v2677 = vpack.c.b16 %v2509, %v2505
    %v2678 = vpack.c.b16 %v2510, %v2506
    %v2679 = vpack.c.b16 %v2515, %v2511
    %v2680 = vpack.c.b16 %v2516, %v2512
    %v2681 = vpack.c.b16 %v2517, %v2513
    %v2682 = vpack.c.b16 %v2518, %v2514
    %v2683 = vpack.c.b16 %v2523, %v2519
    %v2684 = vpack.c.b16 %v2524, %v2520
    %v2685 = vpack.c.b16 %v2525, %v2521
    %v2686 = vpack.c.b16 %v2526, %v2522
    %v2687 = vpack.c.b16 %v2531, %v2527
    %v2688 = vpack.c.b16 %v2532, %v2528
    %v2689 = vpack.c.b16 %v2533, %v2529
    %v2690 = vpack.c.b16 %v2534, %v2530
    %v2691 = vpack.c.b16 %v2539, %v2535
    %v2692 = vpack.c.b16 %v2540, %v2536
    %v2693 = vpack.c.b16 %v2541, %v2537
    %v2694 = vpack.c.b16 %v2542, %v2538
    %v2695 = vpack.c.b16 %v2547, %v2543
    %v2696 = vpack.c.b16 %v2548, %v2544
    %v2697 = vpack.c.b16 %v2549, %v2545
    %v2698 = vpack.c.b16 %v2550, %v2546
    %v2699 = vpack.c.b16 %v2555, %v2551
    %v2700 = vpack.c.b16 %v2556, %v2552
    %v2701 = vpack.c.b16 %v2557, %v2553
    %v2702 = vpack.c.b16 %v2558, %v2554
    %v2703 = vpack.c.b16 %v2563, %v2559
    %v2704 = vpack.c.b16 %v2564, %v2560
    %v2705 = vpack.c.b16 %v2565, %v2561
    %v2706 = vpack.c.b16 %v2566, %v2562
    %v2707 = vpack.c.b16 %v2571, %v2567
    %v2708 = vpack.c.b16 %v2572, %v2568
    %v2709 = vpack.c.b16 %v2573, %v2569
    %v2710 = vpack.c.b16 %v2574, %v2570
    %v2711 = vpack.c.b16 %v2579, %v2575
    %v2712 = vpack.c.b16 %v2580, %v2576
    %v2713 = vpack.c.b16 %v2581, %v2577
    %v2714 = vpack.c.b16 %v2582, %v2578
    %v2715 = vpack.c.b16 %v2587, %v2583
    %v2716 = vpack.c.b16 %v2588, %v2584
    %v2717 = vpack.c.b16 %v2589, %v2585
    %v2718 = vpack.c.b16 %v2590, %v2586
    %2847 = vmatprep.subr.bf16.mxu0 %v2592
    %2848 = vmatpush1.bf16.msra.mxu0 %v2591
    %2849 = vmatprep.subr.bf16.mxu0 %v2596
    %2850 = vmatpush1.bf16.msra.mxu0 %v2595
    %2851 = vmatprep.subr.bf16.mxu0 %v2600
    %2852 = vmatpush1.bf16.msra.mxu0 %v2599
    %2853 = vmatprep.subr.bf16.mxu0 %v2604
    %2854 = vmatpush1.bf16.msra.mxu0 %v2603
    %2855 = vmatprep.subr.bf16.mxu0 %v2608
    %2856 = vmatpush1.bf16.msra.mxu0 %v2607
    %2857 = vmatprep.subr.bf16.mxu0 %v2612
    %2858 = vmatpush1.bf16.msra.mxu0 %v2611
    %2859 = vmatprep.subr.bf16.mxu0 %v2616
    %2860 = vmatpush1.bf16.msra.mxu0 %v2615
    %2861 = vmatprep.subr.bf16.mxu0 %v2620
    %2862 = vmatpush1.bf16.msra.mxu0 %v2619
    %2863 = vmatprep.subr.bf16.mxu0 %v2624
    %2864 = vmatpush1.bf16.msra.mxu0 %v2623
    %2865 = vmatprep.subr.bf16.mxu0 %v2628
    %2866 = vmatpush1.bf16.msra.mxu0 %v2627
    %2867 = vmatprep.subr.bf16.mxu0 %v2632
    %2868 = vmatpush1.bf16.msra.mxu0 %v2631
    %2869 = vmatprep.subr.bf16.mxu0 %v2636
    %2870 = vmatpush1.bf16.msra.mxu0 %v2635
    %2871 = vmatprep.subr.bf16.mxu0 %v2640
    %2872 = vmatpush1.bf16.msra.mxu0 %v2639
    %2873 = vmatprep.subr.bf16.mxu0 %v2644
    %2874 = vmatpush1.bf16.msra.mxu0 %v2643
    %2875 = vmatprep.subr.bf16.mxu0 %v2648
    %2876 = vmatpush1.bf16.msra.mxu0 %v2647
    %2877 = vmatprep.subr.bf16.mxu0 %v2652
    %2878 = vmatpush1.bf16.msra.mxu0 %v2651
    %2879 = vmatprep.mubr.bf16.mxu0 %v2054
    %2880 = vmatmul.mubr.bf16.gmra.mrb[0].mxu0 %v2053
    %v2881 = vpop.f32.mrb[0].mxu0
    %v2882 = vadd.f32 %v2190, %v2881
    %v2883 = vpop.f32.mrb[0].mxu0
    %v2884 = vadd.f32 %v2194, %v2883
    %v2885 = vpop.f32.mrb[0].mxu0
    %v2886 = vpop.f32.mrb[0].mxu0
    %2887 = vdwg.mxu0
    %2888 = vmatprep.subr.bf16.mxu0 %v2656
    %2889 = vmatpush1.bf16.msra.mxu0 %v2655
    %2890 = vmatprep.subr.bf16.mxu0 %v2660
    %2891 = vmatpush1.bf16.msra.mxu0 %v2659
    %2892 = vmatprep.subr.bf16.mxu0 %v2664
    %2893 = vmatpush1.bf16.msra.mxu0 %v2663
    %2894 = vmatprep.subr.bf16.mxu0 %v2668
    %2895 = vmatpush1.bf16.msra.mxu0 %v2667
    %2896 = vmatprep.subr.bf16.mxu0 %v2672
    %2897 = vmatpush1.bf16.msra.mxu0 %v2671
    %2898 = vmatprep.subr.bf16.mxu0 %v2676
    %2899 = vmatpush1.bf16.msra.mxu0 %v2675
    %2900 = vmatprep.subr.bf16.mxu0 %v2680
    %2901 = vmatpush1.bf16.msra.mxu0 %v2679
    %2902 = vmatprep.subr.bf16.mxu0 %v2684
    %2903 = vmatpush1.bf16.msra.mxu0 %v2683
    %2904 = vmatprep.subr.bf16.mxu0 %v2688
    %2905 = vmatpush1.bf16.msra.mxu0 %v2687
    %2906 = vmatprep.subr.bf16.mxu0 %v2692
    %2907 = vmatpush1.bf16.msra.mxu0 %v2691
    %2908 = vmatprep.subr.bf16.mxu0 %v2696
    %2909 = vmatpush1.bf16.msra.mxu0 %v2695
    %2910 = vmatprep.subr.bf16.mxu0 %v2700
    %2911 = vmatpush1.bf16.msra.mxu0 %v2699
    %2912 = vmatprep.subr.bf16.mxu0 %v2704
    %2913 = vmatpush1.bf16.msra.mxu0 %v2703
    %2914 = vmatprep.subr.bf16.mxu0 %v2708
    %2915 = vmatpush1.bf16.msra.mxu0 %v2707
    %2916 = vmatprep.subr.bf16.mxu0 %v2712
    %2917 = vmatpush1.bf16.msra.mxu0 %v2711
    %2918 = vmatprep.subr.bf16.mxu0 %v2716
    %2919 = vmatpush1.bf16.msra.mxu0 %v2715
    %2920 = vmatprep.mubr.bf16.mxu0 %v2056
    %2921 = vmatmul.mubr.bf16.gmra.mrb[0].mxu0 %v2055
    %v2922 = vpop.f32.mrb[0].mxu0
    %v2923 = vadd.f32 %v2882, %v2922
    %v2924 = vpop.f32.mrb[0].mxu0
    %v2925 = vadd.f32 %v2884, %v2924
    %v2926 = vpop.f32.mrb[0].mxu0
    %v2927 = vpop.f32.mrb[0].mxu0
    %2928 = vdwg.mxu0
    %2929 = vmatprep.subr.bf16.mxu0 %v2594
    %2930 = vmatpush1.bf16.msra.mxu0 %v2593
    %2931 = vmatprep.subr.bf16.mxu0 %v2598
    %2932 = vmatpush1.bf16.msra.mxu0 %v2597
    %2933 = vmatprep.subr.bf16.mxu0 %v2602
    %2934 = vmatpush1.bf16.msra.mxu0 %v2601
    %2935 = vmatprep.subr.bf16.mxu0 %v2606
    %2936 = vmatpush1.bf16.msra.mxu0 %v2605
    %2937 = vmatprep.subr.bf16.mxu0 %v2610
    %2938 = vmatpush1.bf16.msra.mxu0 %v2609
    %2939 = vmatprep.subr.bf16.mxu0 %v2614
    %2940 = vmatpush1.bf16.msra.mxu0 %v2613
    %2941 = vmatprep.subr.bf16.mxu0 %v2618
    %2942 = vmatpush1.bf16.msra.mxu0 %v2617
    %2943 = vmatprep.subr.bf16.mxu0 %v2622
    %2944 = vmatpush1.bf16.msra.mxu0 %v2621
    %2945 = vmatprep.subr.bf16.mxu0 %v2626
    %2946 = vmatpush1.bf16.msra.mxu0 %v2625
    %2947 = vmatprep.subr.bf16.mxu0 %v2630
    %2948 = vmatpush1.bf16.msra.mxu0 %v2629
    %2949 = vmatprep.subr.bf16.mxu0 %v2634
    %2950 = vmatpush1.bf16.msra.mxu0 %v2633
    %2951 = vmatprep.subr.bf16.mxu0 %v2638
    %2952 = vmatpush1.bf16.msra.mxu0 %v2637
    %2953 = vmatprep.subr.bf16.mxu0 %v2642
    %2954 = vmatpush1.bf16.msra.mxu0 %v2641
    %2955 = vmatprep.subr.bf16.mxu0 %v2646
    %2956 = vmatpush1.bf16.msra.mxu0 %v2645
    %2957 = vmatprep.subr.bf16.mxu0 %v2650
    %2958 = vmatpush1.bf16.msra.mxu0 %v2649
    %2959 = vmatprep.subr.bf16.mxu0 %v2654
    %2960 = vmatpush1.bf16.msra.mxu0 %v2653
    %2961 = vmatprep.mubr.bf16.mxu0 %v2054
    %2962 = vmatmul.mubr.bf16.gmra.mrb[0].mxu0 %v2053
    %v2963 = vpop.f32.mrb[0].mxu0
    %v2964 = vadd.f32 %v2198, %v2963
    %v2965 = vpop.f32.mrb[0].mxu0
    %v2966 = vadd.f32 %v2202, %v2965
    %v2967 = vpop.f32.mrb[0].mxu0
    %v2968 = vpop.f32.mrb[0].mxu0
    %2969 = vdwg.mxu0
    %2970 = vmatprep.subr.bf16.mxu0 %v2658
    %2971 = vmatpush1.bf16.msra.mxu0 %v2657
    %2972 = vmatprep.subr.bf16.mxu0 %v2662
    %2973 = vmatpush1.bf16.msra.mxu0 %v2661
    %2974 = vmatprep.subr.bf16.mxu0 %v2666
    %2975 = vmatpush1.bf16.msra.mxu0 %v2665
    %2976 = vmatprep.subr.bf16.mxu0 %v2670
    %2977 = vmatpush1.bf16.msra.mxu0 %v2669
    %2978 = vmatprep.subr.bf16.mxu0 %v2674
    %2979 = vmatpush1.bf16.msra.mxu0 %v2673
    %2980 = vmatprep.subr.bf16.mxu0 %v2678
    %2981 = vmatpush1.bf16.msra.mxu0 %v2677
    %2982 = vmatprep.subr.bf16.mxu0 %v2682
    %2983 = vmatpush1.bf16.msra.mxu0 %v2681
    %2984 = vmatprep.subr.bf16.mxu0 %v2686
    %2985 = vmatpush1.bf16.msra.mxu0 %v2685
    %2986 = vmatprep.subr.bf16.mxu0 %v2690
    %2987 = vmatpush1.bf16.msra.mxu0 %v2689
    %2988 = vmatprep.subr.bf16.mxu0 %v2694
    %2989 = vmatpush1.bf16.msra.mxu0 %v2693
    %2990 = vmatprep.subr.bf16.mxu0 %v2698
    %2991 = vmatpush1.bf16.msra.mxu0 %v2697
    %2992 = vmatprep.subr.bf16.mxu0 %v2702
    %2993 = vmatpush1.bf16.msra.mxu0 %v2701
    %2994 = vmatprep.subr.bf16.mxu0 %v2706
    %2995 = vmatpush1.bf16.msra.mxu0 %v2705
    %2996 = vmatprep.subr.bf16.mxu0 %v2710
    %2997 = vmatpush1.bf16.msra.mxu0 %v2709
    %2998 = vmatprep.subr.bf16.mxu0 %v2714
    %2999 = vmatpush1.bf16.msra.mxu0 %v2713
    %3000 = vmatprep.subr.bf16.mxu0 %v2718
    %3001 = vmatpush1.bf16.msra.mxu0 %v2717
    %3002 = vmatprep.mubr.bf16.mxu0 %v2056
    %3003 = vmatmul.mubr.bf16.gmra.mrb[0].mxu0 %v2055
    %v3004 = vpop.f32.mrb[0].mxu0
    %v3005 = vadd.f32 %v2964, %v3004
    %v3006 = vpop.f32.mrb[0].mxu0
    %v3007 = vadd.f32 %v2966, %v3006
    %v3008 = vpop.f32.mrb[0].mxu0
    %v3009 = vpop.f32.mrb[0].mxu0
    %3010 = vdwg.mxu0
    %v3011 = vmax.f32 %v2923, 0.0
    %v3012 = vmax.f32 %v2925, 0.0
    %v3013 = vmax.f32 %v3005, 0.0
    %v3014 = vmax.f32 %v3007, 0.0
    %v3015 = vpack.c.bf16 %v3011, %v3011
    %v3016 = vpack.c.bf16 %v3012, %v3012
    %v3017 = vpack.c.bf16 %v3013, %v3013
    %v3018 = vpack.c.bf16 %v3014, %v3014
    %v3019 = vld [vmem:[#allocation10] sm:$0xff]
    %v3020 = vld [vmem:[#allocation10 + $0x8] sm:$0xff]
    %v3021 = vld [vmem:[#allocation10 + $0x10] sm:$0xff]
    %v3022 = vld [vmem:[#allocation10 + $0x18] sm:$0xff]
    %v3023 = vld [vmem:[#allocation10 + $0x20] sm:$0xff]
    %v3024 = vld [vmem:[#allocation10 + $0x28] sm:$0xff]
    %v3025 = vld [vmem:[#allocation10 + $0x30] sm:$0xff]
    %v3026 = vld [vmem:[#allocation10 + $0x38] sm:$0xff]
    %v3027 = vld [vmem:[#allocation10 + $0x40] sm:$0xff]
    %v3028 = vld [vmem:[#allocation10 + $0x48] sm:$0xff]
    %v3029 = vld [vmem:[#allocation10 + $0x50] sm:$0xff]
    %v3030 = vld [vmem:[#allocation10 + $0x58] sm:$0xff]
    %v3031 = vld [vmem:[#allocation10 + $0x60] sm:$0xff]
    %v3032 = vld [vmem:[#allocation10 + $0x68] sm:$0xff]
    %v3033 = vld [vmem:[#allocation10 + $0x70] sm:$0xff]
    %v3034 = vld [vmem:[#allocation10 + $0x78] sm:$0xff]
    %v3035 = vld [vmem:[#allocation10 + $0x80] sm:$0xff]
    %v3036 = vld [vmem:[#allocation10 + $0x88] sm:$0xff]
    %v3037 = vld [vmem:[#allocation10 + $0x90] sm:$0xff]
    %v3038 = vld [vmem:[#allocation10 + $0x98] sm:$0xff]
    %v3039 = vld [vmem:[#allocation10 + $0xa0] sm:$0xff]
    %v3040 = vld [vmem:[#allocation10 + $0xa8] sm:$0xff]
    %v3041 = vld [vmem:[#allocation10 + $0xb0] sm:$0xff]
    %v3042 = vld [vmem:[#allocation10 + $0xb8] sm:$0xff]
    %v3043 = vld [vmem:[#allocation10 + $0xc0] sm:$0xff]
    %v3044 = vld [vmem:[#allocation10 + $0xc8] sm:$0xff]
    %v3045 = vld [vmem:[#allocation10 + $0xd0] sm:$0xff]
    %v3046 = vld [vmem:[#allocation10 + $0xd8] sm:$0xff]
    %v3047 = vld [vmem:[#allocation10 + $0xe0] sm:$0xff]
    %v3048 = vld [vmem:[#allocation10 + $0xe8] sm:$0xff]
    %v3049 = vld [vmem:[#allocation10 + $0xf0] sm:$0xff]
    %v3050 = vld [vmem:[#allocation10 + $0xf8] sm:$0xff]
    %v3051 = vld [vmem:[#allocation10 + $0x100] sm:$0xff]
    %v3052 = vld [vmem:[#allocation10 + $0x108] sm:$0xff]
    %v3053 = vld [vmem:[#allocation10 + $0x110] sm:$0xff]
    %v3054 = vld [vmem:[#allocation10 + $0x118] sm:$0xff]
    %v3055 = vld [vmem:[#allocation10 + $0x120] sm:$0xff]
    %v3056 = vld [vmem:[#allocation10 + $0x128] sm:$0xff]
    %v3057 = vld [vmem:[#allocation10 + $0x130] sm:$0xff]
    %v3058 = vld [vmem:[#allocation10 + $0x138] sm:$0xff]
    %v3059 = vld [vmem:[#allocation10 + $0x140] sm:$0xff]
    %v3060 = vld [vmem:[#allocation10 + $0x148] sm:$0xff]
    %v3061 = vld [vmem:[#allocation10 + $0x150] sm:$0xff]
    %v3062 = vld [vmem:[#allocation10 + $0x158] sm:$0xff]
    %v3063 = vld [vmem:[#allocation10 + $0x160] sm:$0xff]
    %v3064 = vld [vmem:[#allocation10 + $0x168] sm:$0xff]
    %v3065 = vld [vmem:[#allocation10 + $0x170] sm:$0xff]
    %v3066 = vld [vmem:[#allocation10 + $0x178] sm:$0xff]
    %v3067 = vld [vmem:[#allocation10 + $0x180] sm:$0xff]
    %v3068 = vld [vmem:[#allocation10 + $0x188] sm:$0xff]
    %v3069 = vld [vmem:[#allocation10 + $0x190] sm:$0xff]
    %v3070 = vld [vmem:[#allocation10 + $0x198] sm:$0xff]
    %v3071 = vld [vmem:[#allocation10 + $0x1a0] sm:$0xff]
    %v3072 = vld [vmem:[#allocation10 + $0x1a8] sm:$0xff]
    %v3073 = vld [vmem:[#allocation10 + $0x1b0] sm:$0xff]
    %v3074 = vld [vmem:[#allocation10 + $0x1b8] sm:$0xff]
    %v3075 = vld [vmem:[#allocation10 + $0x1c0] sm:$0xff]
    %v3076 = vld [vmem:[#allocation10 + $0x1c8] sm:$0xff]
    %v3077 = vld [vmem:[#allocation10 + $0x1d0] sm:$0xff]
    %v3078 = vld [vmem:[#allocation10 + $0x1d8] sm:$0xff]
    %v3079 = vld [vmem:[#allocation10 + $0x1e0] sm:$0xff]
    %v3080 = vld [vmem:[#allocation10 + $0x1e8] sm:$0xff]
    %v3081 = vld [vmem:[#allocation10 + $0x1f0] sm:$0xff]
    %v3082 = vld [vmem:[#allocation10 + $0x1f8] sm:$0xff]
    %v3083 = vld [vmem:[#allocation10 + $0x200] sm:$0xff]
    %v3084 = vld [vmem:[#allocation10 + $0x208] sm:$0xff]
    %v3085 = vld [vmem:[#allocation10 + $0x210] sm:$0xff]
    %v3086 = vld [vmem:[#allocation10 + $0x218] sm:$0xff]
    %v3087 = vld [vmem:[#allocation10 + $0x220] sm:$0xff]
    %v3088 = vld [vmem:[#allocation10 + $0x228] sm:$0xff]
    %v3089 = vld [vmem:[#allocation10 + $0x230] sm:$0xff]
    %v3090 = vld [vmem:[#allocation10 + $0x238] sm:$0xff]
    %v3091 = vld [vmem:[#allocation10 + $0x240] sm:$0xff]
    %v3092 = vld [vmem:[#allocation10 + $0x248] sm:$0xff]
    %v3093 = vld [vmem:[#allocation10 + $0x250] sm:$0xff]
    %v3094 = vld [vmem:[#allocation10 + $0x258] sm:$0xff]
    %v3095 = vld [vmem:[#allocation10 + $0x260] sm:$0xff]
    %v3096 = vld [vmem:[#allocation10 + $0x268] sm:$0xff]
    %v3097 = vld [vmem:[#allocation10 + $0x270] sm:$0xff]
    %v3098 = vld [vmem:[#allocation10 + $0x278] sm:$0xff]
    %v3099 = vld [vmem:[#allocation10 + $0x280] sm:$0xff]
    %v3100 = vld [vmem:[#allocation10 + $0x288] sm:$0xff]
    %v3101 = vld [vmem:[#allocation10 + $0x290] sm:$0xff]
    %v3102 = vld [vmem:[#allocation10 + $0x298] sm:$0xff]
    %v3103 = vld [vmem:[#allocation10 + $0x2a0] sm:$0xff]
    %v3104 = vld [vmem:[#allocation10 + $0x2a8] sm:$0xff]
    %v3105 = vld [vmem:[#allocation10 + $0x2b0] sm:$0xff]
    %v3106 = vld [vmem:[#allocation10 + $0x2b8] sm:$0xff]
    %v3107 = vld [vmem:[#allocation10 + $0x2c0] sm:$0xff]
    %v3108 = vld [vmem:[#allocation10 + $0x2c8] sm:$0xff]
    %v3109 = vld [vmem:[#allocation10 + $0x2d0] sm:$0xff]
    %v3110 = vld [vmem:[#allocation10 + $0x2d8] sm:$0xff]
    %v3111 = vld [vmem:[#allocation10 + $0x2e0] sm:$0xff]
    %v3112 = vld [vmem:[#allocation10 + $0x2e8] sm:$0xff]
    %v3113 = vld [vmem:[#allocation10 + $0x2f0] sm:$0xff]
    %v3114 = vld [vmem:[#allocation10 + $0x2f8] sm:$0xff]
    %v3115 = vld [vmem:[#allocation10 + $0x300] sm:$0xff]
    %v3116 = vld [vmem:[#allocation10 + $0x308] sm:$0xff]
    %v3117 = vld [vmem:[#allocation10 + $0x310] sm:$0xff]
    %v3118 = vld [vmem:[#allocation10 + $0x318] sm:$0xff]
    %v3119 = vld [vmem:[#allocation10 + $0x320] sm:$0xff]
    %v3120 = vld [vmem:[#allocation10 + $0x328] sm:$0xff]
    %v3121 = vld [vmem:[#allocation10 + $0x330] sm:$0xff]
    %v3122 = vld [vmem:[#allocation10 + $0x338] sm:$0xff]
    %v3123 = vld [vmem:[#allocation10 + $0x340] sm:$0xff]
    %v3124 = vld [vmem:[#allocation10 + $0x348] sm:$0xff]
    %v3125 = vld [vmem:[#allocation10 + $0x350] sm:$0xff]
    %v3126 = vld [vmem:[#allocation10 + $0x358] sm:$0xff]
    %v3127 = vld [vmem:[#allocation10 + $0x360] sm:$0xff]
    %v3128 = vld [vmem:[#allocation10 + $0x368] sm:$0xff]
    %v3129 = vld [vmem:[#allocation10 + $0x370] sm:$0xff]
    %v3130 = vld [vmem:[#allocation10 + $0x378] sm:$0xff]
    %v3131 = vld [vmem:[#allocation10 + $0x380] sm:$0xff]
    %v3132 = vld [vmem:[#allocation10 + $0x388] sm:$0xff]
    %v3133 = vld [vmem:[#allocation10 + $0x390] sm:$0xff]
    %v3134 = vld [vmem:[#allocation10 + $0x398] sm:$0xff]
    %v3135 = vld [vmem:[#allocation10 + $0x3a0] sm:$0xff]
    %v3136 = vld [vmem:[#allocation10 + $0x3a8] sm:$0xff]
    %v3137 = vld [vmem:[#allocation10 + $0x3b0] sm:$0xff]
    %v3138 = vld [vmem:[#allocation10 + $0x3b8] sm:$0xff]
    %v3139 = vld [vmem:[#allocation10 + $0x3c0] sm:$0xff]
    %v3140 = vld [vmem:[#allocation10 + $0x3c8] sm:$0xff]
    %v3141 = vld [vmem:[#allocation10 + $0x3d0] sm:$0xff]
    %v3142 = vld [vmem:[#allocation10 + $0x3d8] sm:$0xff]
    %v3143 = vld [vmem:[#allocation10 + $0x3e0] sm:$0xff]
    %v3144 = vld [vmem:[#allocation10 + $0x3e8] sm:$0xff]
    %v3145 = vld [vmem:[#allocation10 + $0x3f0] sm:$0xff]
    %v3146 = vld [vmem:[#allocation10 + $0x3f8] sm:$0xff]
    %v3147 = vld [vmem:[%s6] sm:$0xf]
    %v3149 = vlaneseq
    %v3150 = vshrl.u32 %v3149, 7
    %v3151 = vsub.s32 0, %v3150
    %v3152 = vrot.slane %v3147, %v3151
    %v3153 = vlaneseq
    %v3154 = vshrl.u32 %v3153, 7
    %v3155 = vsub.s32 1, %v3154
    %v3156 = vrot.slane %v3147, %v3155
    %v3157 = vlaneseq
    %v3158 = vshrl.u32 %v3157, 7
    %v3159 = vsub.s32 2, %v3158
    %v3160 = vrot.slane %v3147, %v3159
    %v3161 = vlaneseq
    %v3162 = vshrl.u32 %v3161, 7
    %v3163 = vsub.s32 3, %v3162
    %v3164 = vrot.slane %v3147, %v3163
    %v3297 = vunpack.c.l.b16 %v3019
    %v3298 = vunpack.c.h.b16 %v3019
    %v3299 = vunpack.c.l.b16 %v3020
    %v3300 = vunpack.c.h.b16 %v3020
    %v3301 = vunpack.c.l.b16 %v3021
    %v3302 = vunpack.c.h.b16 %v3021
    %v3303 = vunpack.c.l.b16 %v3022
    %v3304 = vunpack.c.h.b16 %v3022
    %v3305 = vunpack.c.l.b16 %v3023
    %v3306 = vunpack.c.h.b16 %v3023
    %v3307 = vunpack.c.l.b16 %v3024
    %v3308 = vunpack.c.h.b16 %v3024
    %v3309 = vunpack.c.l.b16 %v3025
    %v3310 = vunpack.c.h.b16 %v3025
    %v3311 = vunpack.c.l.b16 %v3026
    %v3312 = vunpack.c.h.b16 %v3026
    %v3313 = vunpack.c.l.b16 %v3027
    %v3314 = vunpack.c.h.b16 %v3027
    %v3315 = vunpack.c.l.b16 %v3028
    %v3316 = vunpack.c.h.b16 %v3028
    %v3317 = vunpack.c.l.b16 %v3029
    %v3318 = vunpack.c.h.b16 %v3029
    %v3319 = vunpack.c.l.b16 %v3030
    %v3320 = vunpack.c.h.b16 %v3030
    %v3321 = vunpack.c.l.b16 %v3031
    %v3322 = vunpack.c.h.b16 %v3031
    %v3323 = vunpack.c.l.b16 %v3032
    %v3324 = vunpack.c.h.b16 %v3032
    %v3325 = vunpack.c.l.b16 %v3033
    %v3326 = vunpack.c.h.b16 %v3033
    %v3327 = vunpack.c.l.b16 %v3034
    %v3328 = vunpack.c.h.b16 %v3034
    %v3329 = vunpack.c.l.b16 %v3035
    %v3330 = vunpack.c.h.b16 %v3035
    %v3331 = vunpack.c.l.b16 %v3036
    %v3332 = vunpack.c.h.b16 %v3036
    %v3333 = vunpack.c.l.b16 %v3037
    %v3334 = vunpack.c.h.b16 %v3037
    %v3335 = vunpack.c.l.b16 %v3038
    %v3336 = vunpack.c.h.b16 %v3038
    %v3337 = vunpack.c.l.b16 %v3039
    %v3338 = vunpack.c.h.b16 %v3039
    %v3339 = vunpack.c.l.b16 %v3040
    %v3340 = vunpack.c.h.b16 %v3040
    %v3341 = vunpack.c.l.b16 %v3041
    %v3342 = vunpack.c.h.b16 %v3041
    %v3343 = vunpack.c.l.b16 %v3042
    %v3344 = vunpack.c.h.b16 %v3042
    %v3345 = vunpack.c.l.b16 %v3043
    %v3346 = vunpack.c.h.b16 %v3043
    %v3347 = vunpack.c.l.b16 %v3044
    %v3348 = vunpack.c.h.b16 %v3044
    %v3349 = vunpack.c.l.b16 %v3045
    %v3350 = vunpack.c.h.b16 %v3045
    %v3351 = vunpack.c.l.b16 %v3046
    %v3352 = vunpack.c.h.b16 %v3046
    %v3353 = vunpack.c.l.b16 %v3047
    %v3354 = vunpack.c.h.b16 %v3047
    %v3355 = vunpack.c.l.b16 %v3048
    %v3356 = vunpack.c.h.b16 %v3048
    %v3357 = vunpack.c.l.b16 %v3049
    %v3358 = vunpack.c.h.b16 %v3049
    %v3359 = vunpack.c.l.b16 %v3050
    %v3360 = vunpack.c.h.b16 %v3050
    %v3361 = vunpack.c.l.b16 %v3051
    %v3362 = vunpack.c.h.b16 %v3051
    %v3363 = vunpack.c.l.b16 %v3052
    %v3364 = vunpack.c.h.b16 %v3052
    %v3365 = vunpack.c.l.b16 %v3053
    %v3366 = vunpack.c.h.b16 %v3053
    %v3367 = vunpack.c.l.b16 %v3054
    %v3368 = vunpack.c.h.b16 %v3054
    %v3369 = vunpack.c.l.b16 %v3055
    %v3370 = vunpack.c.h.b16 %v3055
    %v3371 = vunpack.c.l.b16 %v3056
    %v3372 = vunpack.c.h.b16 %v3056
    %v3373 = vunpack.c.l.b16 %v3057
    %v3374 = vunpack.c.h.b16 %v3057
    %v3375 = vunpack.c.l.b16 %v3058
    %v3376 = vunpack.c.h.b16 %v3058
    %v3377 = vunpack.c.l.b16 %v3059
    %v3378 = vunpack.c.h.b16 %v3059
    %v3379 = vunpack.c.l.b16 %v3060
    %v3380 = vunpack.c.h.b16 %v3060
    %v3381 = vunpack.c.l.b16 %v3061
    %v3382 = vunpack.c.h.b16 %v3061
    %v3383 = vunpack.c.l.b16 %v3062
    %v3384 = vunpack.c.h.b16 %v3062
    %v3385 = vunpack.c.l.b16 %v3063
    %v3386 = vunpack.c.h.b16 %v3063
    %v3387 = vunpack.c.l.b16 %v3064
    %v3388 = vunpack.c.h.b16 %v3064
    %v3389 = vunpack.c.l.b16 %v3065
    %v3390 = vunpack.c.h.b16 %v3065
    %v3391 = vunpack.c.l.b16 %v3066
    %v3392 = vunpack.c.h.b16 %v3066
    %v3393 = vunpack.c.l.b16 %v3067
    %v3394 = vunpack.c.h.b16 %v3067
    %v3395 = vunpack.c.l.b16 %v3068
    %v3396 = vunpack.c.h.b16 %v3068
    %v3397 = vunpack.c.l.b16 %v3069
    %v3398 = vunpack.c.h.b16 %v3069
    %v3399 = vunpack.c.l.b16 %v3070
    %v3400 = vunpack.c.h.b16 %v3070
    %v3401 = vunpack.c.l.b16 %v3071
    %v3402 = vunpack.c.h.b16 %v3071
    %v3403 = vunpack.c.l.b16 %v3072
    %v3404 = vunpack.c.h.b16 %v3072
    %v3405 = vunpack.c.l.b16 %v3073
    %v3406 = vunpack.c.h.b16 %v3073
    %v3407 = vunpack.c.l.b16 %v3074
    %v3408 = vunpack.c.h.b16 %v3074
    %v3409 = vunpack.c.l.b16 %v3075
    %v3410 = vunpack.c.h.b16 %v3075
    %v3411 = vunpack.c.l.b16 %v3076
    %v3412 = vunpack.c.h.b16 %v3076
    %v3413 = vunpack.c.l.b16 %v3077
    %v3414 = vunpack.c.h.b16 %v3077
    %v3415 = vunpack.c.l.b16 %v3078
    %v3416 = vunpack.c.h.b16 %v3078
    %v3417 = vunpack.c.l.b16 %v3079
    %v3418 = vunpack.c.h.b16 %v3079
    %v3419 = vunpack.c.l.b16 %v3080
    %v3420 = vunpack.c.h.b16 %v3080
    %v3421 = vunpack.c.l.b16 %v3081
    %v3422 = vunpack.c.h.b16 %v3081
    %v3423 = vunpack.c.l.b16 %v3082
    %v3424 = vunpack.c.h.b16 %v3082
    %v3425 = vunpack.c.l.b16 %v3083
    %v3426 = vunpack.c.h.b16 %v3083
    %v3427 = vunpack.c.l.b16 %v3084
    %v3428 = vunpack.c.h.b16 %v3084
    %v3429 = vunpack.c.l.b16 %v3085
    %v3430 = vunpack.c.h.b16 %v3085
    %v3431 = vunpack.c.l.b16 %v3086
    %v3432 = vunpack.c.h.b16 %v3086
    %v3433 = vunpack.c.l.b16 %v3087
    %v3434 = vunpack.c.h.b16 %v3087
    %v3435 = vunpack.c.l.b16 %v3088
    %v3436 = vunpack.c.h.b16 %v3088
    %v3437 = vunpack.c.l.b16 %v3089
    %v3438 = vunpack.c.h.b16 %v3089
    %v3439 = vunpack.c.l.b16 %v3090
    %v3440 = vunpack.c.h.b16 %v3090
    %v3441 = vunpack.c.l.b16 %v3091
    %v3442 = vunpack.c.h.b16 %v3091
    %v3443 = vunpack.c.l.b16 %v3092
    %v3444 = vunpack.c.h.b16 %v3092
    %v3445 = vunpack.c.l.b16 %v3093
    %v3446 = vunpack.c.h.b16 %v3093
    %v3447 = vunpack.c.l.b16 %v3094
    %v3448 = vunpack.c.h.b16 %v3094
    %v3449 = vunpack.c.l.b16 %v3095
    %v3450 = vunpack.c.h.b16 %v3095
    %v3451 = vunpack.c.l.b16 %v3096
    %v3452 = vunpack.c.h.b16 %v3096
    %v3453 = vunpack.c.l.b16 %v3097
    %v3454 = vunpack.c.h.b16 %v3097
    %v3455 = vunpack.c.l.b16 %v3098
    %v3456 = vunpack.c.h.b16 %v3098
    %v3457 = vunpack.c.l.b16 %v3099
    %v3458 = vunpack.c.h.b16 %v3099
    %v3459 = vunpack.c.l.b16 %v3100
    %v3460 = vunpack.c.h.b16 %v3100
    %v3461 = vunpack.c.l.b16 %v3101
    %v3462 = vunpack.c.h.b16 %v3101
    %v3463 = vunpack.c.l.b16 %v3102
    %v3464 = vunpack.c.h.b16 %v3102
    %v3465 = vunpack.c.l.b16 %v3103
    %v3466 = vunpack.c.h.b16 %v3103
    %v3467 = vunpack.c.l.b16 %v3104
    %v3468 = vunpack.c.h.b16 %v3104
    %v3469 = vunpack.c.l.b16 %v3105
    %v3470 = vunpack.c.h.b16 %v3105
    %v3471 = vunpack.c.l.b16 %v3106
    %v3472 = vunpack.c.h.b16 %v3106
    %v3473 = vunpack.c.l.b16 %v3107
    %v3474 = vunpack.c.h.b16 %v3107
    %v3475 = vunpack.c.l.b16 %v3108
    %v3476 = vunpack.c.h.b16 %v3108
    %v3477 = vunpack.c.l.b16 %v3109
    %v3478 = vunpack.c.h.b16 %v3109
    %v3479 = vunpack.c.l.b16 %v3110
    %v3480 = vunpack.c.h.b16 %v3110
    %v3481 = vunpack.c.l.b16 %v3111
    %v3482 = vunpack.c.h.b16 %v3111
    %v3483 = vunpack.c.l.b16 %v3112
    %v3484 = vunpack.c.h.b16 %v3112
    %v3485 = vunpack.c.l.b16 %v3113
    %v3486 = vunpack.c.h.b16 %v3113
    %v3487 = vunpack.c.l.b16 %v3114
    %v3488 = vunpack.c.h.b16 %v3114
    %v3489 = vunpack.c.l.b16 %v3115
    %v3490 = vunpack.c.h.b16 %v3115
    %v3491 = vunpack.c.l.b16 %v3116
    %v3492 = vunpack.c.h.b16 %v3116
    %v3493 = vunpack.c.l.b16 %v3117
    %v3494 = vunpack.c.h.b16 %v3117
    %v3495 = vunpack.c.l.b16 %v3118
    %v3496 = vunpack.c.h.b16 %v3118
    %v3497 = vunpack.c.l.b16 %v3119
    %v3498 = vunpack.c.h.b16 %v3119
    %v3499 = vunpack.c.l.b16 %v3120
    %v3500 = vunpack.c.h.b16 %v3120
    %v3501 = vunpack.c.l.b16 %v3121
    %v3502 = vunpack.c.h.b16 %v3121
    %v3503 = vunpack.c.l.b16 %v3122
    %v3504 = vunpack.c.h.b16 %v3122
    %v3505 = vunpack.c.l.b16 %v3123
    %v3506 = vunpack.c.h.b16 %v3123
    %v3507 = vunpack.c.l.b16 %v3124
    %v3508 = vunpack.c.h.b16 %v3124
    %v3509 = vunpack.c.l.b16 %v3125
    %v3510 = vunpack.c.h.b16 %v3125
    %v3511 = vunpack.c.l.b16 %v3126
    %v3512 = vunpack.c.h.b16 %v3126
    %v3513 = vunpack.c.l.b16 %v3127
    %v3514 = vunpack.c.h.b16 %v3127
    %v3515 = vunpack.c.l.b16 %v3128
    %v3516 = vunpack.c.h.b16 %v3128
    %v3517 = vunpack.c.l.b16 %v3129
    %v3518 = vunpack.c.h.b16 %v3129
    %v3519 = vunpack.c.l.b16 %v3130
    %v3520 = vunpack.c.h.b16 %v3130
    %v3521 = vunpack.c.l.b16 %v3131
    %v3522 = vunpack.c.h.b16 %v3131
    %v3523 = vunpack.c.l.b16 %v3132
    %v3524 = vunpack.c.h.b16 %v3132
    %v3525 = vunpack.c.l.b16 %v3133
    %v3526 = vunpack.c.h.b16 %v3133
    %v3527 = vunpack.c.l.b16 %v3134
    %v3528 = vunpack.c.h.b16 %v3134
    %v3529 = vunpack.c.l.b16 %v3135
    %v3530 = vunpack.c.h.b16 %v3135
    %v3531 = vunpack.c.l.b16 %v3136
    %v3532 = vunpack.c.h.b16 %v3136
    %v3533 = vunpack.c.l.b16 %v3137
    %v3534 = vunpack.c.h.b16 %v3137
    %v3535 = vunpack.c.l.b16 %v3138
    %v3536 = vunpack.c.h.b16 %v3138
    %v3537 = vunpack.c.l.b16 %v3139
    %v3538 = vunpack.c.h.b16 %v3139
    %v3539 = vunpack.c.l.b16 %v3140
    %v3540 = vunpack.c.h.b16 %v3140
    %v3541 = vunpack.c.l.b16 %v3141
    %v3542 = vunpack.c.h.b16 %v3141
    %v3543 = vunpack.c.l.b16 %v3142
    %v3544 = vunpack.c.h.b16 %v3142
    %v3545 = vunpack.c.l.b16 %v3143
    %v3546 = vunpack.c.h.b16 %v3143
    %v3547 = vunpack.c.l.b16 %v3144
    %v3548 = vunpack.c.h.b16 %v3144
    %v3549 = vunpack.c.l.b16 %v3145
    %v3550 = vunpack.c.h.b16 %v3145
    %v3551 = vunpack.c.l.b16 %v3146
    %v3552 = vunpack.c.h.b16 %v3146
    %v3553 = vpack.c.b16 %v3301, %v3297
    %v3554 = vpack.c.b16 %v3302, %v3298
    %v3555 = vpack.c.b16 %v3303, %v3299
    %v3556 = vpack.c.b16 %v3304, %v3300
    %v3557 = vpack.c.b16 %v3309, %v3305
    %v3558 = vpack.c.b16 %v3310, %v3306
    %v3559 = vpack.c.b16 %v3311, %v3307
    %v3560 = vpack.c.b16 %v3312, %v3308
    %v3561 = vpack.c.b16 %v3317, %v3313
    %v3562 = vpack.c.b16 %v3318, %v3314
    %v3563 = vpack.c.b16 %v3319, %v3315
    %v3564 = vpack.c.b16 %v3320, %v3316
    %v3565 = vpack.c.b16 %v3325, %v3321
    %v3566 = vpack.c.b16 %v3326, %v3322
    %v3567 = vpack.c.b16 %v3327, %v3323
    %v3568 = vpack.c.b16 %v3328, %v3324
    %v3569 = vpack.c.b16 %v3333, %v3329
    %v3570 = vpack.c.b16 %v3334, %v3330
    %v3571 = vpack.c.b16 %v3335, %v3331
    %v3572 = vpack.c.b16 %v3336, %v3332
    %v3573 = vpack.c.b16 %v3341, %v3337
    %v3574 = vpack.c.b16 %v3342, %v3338
    %v3575 = vpack.c.b16 %v3343, %v3339
    %v3576 = vpack.c.b16 %v3344, %v3340
    %v3577 = vpack.c.b16 %v3349, %v3345
    %v3578 = vpack.c.b16 %v3350, %v3346
    %v3579 = vpack.c.b16 %v3351, %v3347
    %v3580 = vpack.c.b16 %v3352, %v3348
    %v3581 = vpack.c.b16 %v3357, %v3353
    %v3582 = vpack.c.b16 %v3358, %v3354
    %v3583 = vpack.c.b16 %v3359, %v3355
    %v3584 = vpack.c.b16 %v3360, %v3356
    %v3585 = vpack.c.b16 %v3365, %v3361
    %v3586 = vpack.c.b16 %v3366, %v3362
    %v3587 = vpack.c.b16 %v3367, %v3363
    %v3588 = vpack.c.b16 %v3368, %v3364
    %v3589 = vpack.c.b16 %v3373, %v3369
    %v3590 = vpack.c.b16 %v3374, %v3370
    %v3591 = vpack.c.b16 %v3375, %v3371
    %v3592 = vpack.c.b16 %v3376, %v3372
    %v3593 = vpack.c.b16 %v3381, %v3377
    %v3594 = vpack.c.b16 %v3382, %v3378
    %v3595 = vpack.c.b16 %v3383, %v3379
    %v3596 = vpack.c.b16 %v3384, %v3380
    %v3597 = vpack.c.b16 %v3389, %v3385
    %v3598 = vpack.c.b16 %v3390, %v3386
    %v3599 = vpack.c.b16 %v3391, %v3387
    %v3600 = vpack.c.b16 %v3392, %v3388
    %v3601 = vpack.c.b16 %v3397, %v3393
    %v3602 = vpack.c.b16 %v3398, %v3394
    %v3603 = vpack.c.b16 %v3399, %v3395
    %v3604 = vpack.c.b16 %v3400, %v3396
    %v3605 = vpack.c.b16 %v3405, %v3401
    %v3606 = vpack.c.b16 %v3406, %v3402
    %v3607 = vpack.c.b16 %v3407, %v3403
    %v3608 = vpack.c.b16 %v3408, %v3404
    %v3609 = vpack.c.b16 %v3413, %v3409
    %v3610 = vpack.c.b16 %v3414, %v3410
    %v3611 = vpack.c.b16 %v3415, %v3411
    %v3612 = vpack.c.b16 %v3416, %v3412
    %v3613 = vpack.c.b16 %v3421, %v3417
    %v3614 = vpack.c.b16 %v3422, %v3418
    %v3615 = vpack.c.b16 %v3423, %v3419
    %v3616 = vpack.c.b16 %v3424, %v3420
    %v3617 = vpack.c.b16 %v3429, %v3425
    %v3618 = vpack.c.b16 %v3430, %v3426
    %v3619 = vpack.c.b16 %v3431, %v3427
    %v3620 = vpack.c.b16 %v3432, %v3428
    %v3621 = vpack.c.b16 %v3437, %v3433
    %v3622 = vpack.c.b16 %v3438, %v3434
    %v3623 = vpack.c.b16 %v3439, %v3435
    %v3624 = vpack.c.b16 %v3440, %v3436
    %v3625 = vpack.c.b16 %v3445, %v3441
    %v3626 = vpack.c.b16 %v3446, %v3442
    %v3627 = vpack.c.b16 %v3447, %v3443
    %v3628 = vpack.c.b16 %v3448, %v3444
    %v3629 = vpack.c.b16 %v3453, %v3449
    %v3630 = vpack.c.b16 %v3454, %v3450
    %v3631 = vpack.c.b16 %v3455, %v3451
    %v3632 = vpack.c.b16 %v3456, %v3452
    %v3633 = vpack.c.b16 %v3461, %v3457
    %v3634 = vpack.c.b16 %v3462, %v3458
    %v3635 = vpack.c.b16 %v3463, %v3459
    %v3636 = vpack.c.b16 %v3464, %v3460
    %v3637 = vpack.c.b16 %v3469, %v3465
    %v3638 = vpack.c.b16 %v3470, %v3466
    %v3639 = vpack.c.b16 %v3471, %v3467
    %v3640 = vpack.c.b16 %v3472, %v3468
    %v3641 = vpack.c.b16 %v3477, %v3473
    %v3642 = vpack.c.b16 %v3478, %v3474
    %v3643 = vpack.c.b16 %v3479, %v3475
    %v3644 = vpack.c.b16 %v3480, %v3476
    %v3645 = vpack.c.b16 %v3485, %v3481
    %v3646 = vpack.c.b16 %v3486, %v3482
    %v3647 = vpack.c.b16 %v3487, %v3483
    %v3648 = vpack.c.b16 %v3488, %v3484
    %v3649 = vpack.c.b16 %v3493, %v3489
    %v3650 = vpack.c.b16 %v3494, %v3490
    %v3651 = vpack.c.b16 %v3495, %v3491
    %v3652 = vpack.c.b16 %v3496, %v3492
    %v3653 = vpack.c.b16 %v3501, %v3497
    %v3654 = vpack.c.b16 %v3502, %v3498
    %v3655 = vpack.c.b16 %v3503, %v3499
    %v3656 = vpack.c.b16 %v3504, %v3500
    %v3657 = vpack.c.b16 %v3509, %v3505
    %v3658 = vpack.c.b16 %v3510, %v3506
    %v3659 = vpack.c.b16 %v3511, %v3507
    %v3660 = vpack.c.b16 %v3512, %v3508
    %v3661 = vpack.c.b16 %v3517, %v3513
    %v3662 = vpack.c.b16 %v3518, %v3514
    %v3663 = vpack.c.b16 %v3519, %v3515
    %v3664 = vpack.c.b16 %v3520, %v3516
    %v3665 = vpack.c.b16 %v3525, %v3521
    %v3666 = vpack.c.b16 %v3526, %v3522
    %v3667 = vpack.c.b16 %v3527, %v3523
    %v3668 = vpack.c.b16 %v3528, %v3524
    %v3669 = vpack.c.b16 %v3533, %v3529
    %v3670 = vpack.c.b16 %v3534, %v3530
    %v3671 = vpack.c.b16 %v3535, %v3531
    %v3672 = vpack.c.b16 %v3536, %v3532
    %v3673 = vpack.c.b16 %v3541, %v3537
    %v3674 = vpack.c.b16 %v3542, %v3538
    %v3675 = vpack.c.b16 %v3543, %v3539
    %v3676 = vpack.c.b16 %v3544, %v3540
    %v3677 = vpack.c.b16 %v3549, %v3545
    %v3678 = vpack.c.b16 %v3550, %v3546
    %v3679 = vpack.c.b16 %v3551, %v3547
    %v3680 = vpack.c.b16 %v3552, %v3548
    %3809 = vmatprep.subr.bf16.mxu0 %v3554
    %3810 = vmatpush1.bf16.msra.mxu0 %v3553
    %3811 = vmatprep.subr.bf16.mxu0 %v3558
    %3812 = vmatpush1.bf16.msra.mxu0 %v3557
    %3813 = vmatprep.subr.bf16.mxu0 %v3562
    %3814 = vmatpush1.bf16.msra.mxu0 %v3561
    %3815 = vmatprep.subr.bf16.mxu0 %v3566
    %3816 = vmatpush1.bf16.msra.mxu0 %v3565
    %3817 = vmatprep.subr.bf16.mxu0 %v3570
    %3818 = vmatpush1.bf16.msra.mxu0 %v3569
    %3819 = vmatprep.subr.bf16.mxu0 %v3574
    %3820 = vmatpush1.bf16.msra.mxu0 %v3573
    %3821 = vmatprep.subr.bf16.mxu0 %v3578
    %3822 = vmatpush1.bf16.msra.mxu0 %v3577
    %3823 = vmatprep.subr.bf16.mxu0 %v3582
    %3824 = vmatpush1.bf16.msra.mxu0 %v3581
    %3825 = vmatprep.subr.bf16.mxu0 %v3586
    %3826 = vmatpush1.bf16.msra.mxu0 %v3585
    %3827 = vmatprep.subr.bf16.mxu0 %v3590
    %3828 = vmatpush1.bf16.msra.mxu0 %v3589
    %3829 = vmatprep.subr.bf16.mxu0 %v3594
    %3830 = vmatpush1.bf16.msra.mxu0 %v3593
    %3831 = vmatprep.subr.bf16.mxu0 %v3598
    %3832 = vmatpush1.bf16.msra.mxu0 %v3597
    %3833 = vmatprep.subr.bf16.mxu0 %v3602
    %3834 = vmatpush1.bf16.msra.mxu0 %v3601
    %3835 = vmatprep.subr.bf16.mxu0 %v3606
    %3836 = vmatpush1.bf16.msra.mxu0 %v3605
    %3837 = vmatprep.subr.bf16.mxu0 %v3610
    %3838 = vmatpush1.bf16.msra.mxu0 %v3609
    %3839 = vmatprep.subr.bf16.mxu0 %v3614
    %3840 = vmatpush1.bf16.msra.mxu0 %v3613
    %3841 = vmatprep.mubr.bf16.mxu0 %v3016
    %3842 = vmatmul.mubr.bf16.gmra.mrb[0].mxu0 %v3015
    %v3843 = vpop.f32.mrb[0].mxu0
    %v3844 = vadd.f32 %v3152, %v3843
    %v3845 = vpop.f32.mrb[0].mxu0
    %v3846 = vadd.f32 %v3156, %v3845
    %v3847 = vpop.f32.mrb[0].mxu0
    %v3848 = vpop.f32.mrb[0].mxu0
    %3849 = vdwg.mxu0
    %3850 = vmatprep.subr.bf16.mxu0 %v3618
    %3851 = vmatpush1.bf16.msra.mxu0 %v3617
    %3852 = vmatprep.subr.bf16.mxu0 %v3622
    %3853 = vmatpush1.bf16.msra.mxu0 %v3621
    %3854 = vmatprep.subr.bf16.mxu0 %v3626
    %3855 = vmatpush1.bf16.msra.mxu0 %v3625
    %3856 = vmatprep.subr.bf16.mxu0 %v3630
    %3857 = vmatpush1.bf16.msra.mxu0 %v3629
    %3858 = vmatprep.subr.bf16.mxu0 %v3634
    %3859 = vmatpush1.bf16.msra.mxu0 %v3633
    %3860 = vmatprep.subr.bf16.mxu0 %v3638
    %3861 = vmatpush1.bf16.msra.mxu0 %v3637
    %3862 = vmatprep.subr.bf16.mxu0 %v3642
    %3863 = vmatpush1.bf16.msra.mxu0 %v3641
    %3864 = vmatprep.subr.bf16.mxu0 %v3646
    %3865 = vmatpush1.bf16.msra.mxu0 %v3645
    %3866 = vmatprep.subr.bf16.mxu0 %v3650
    %3867 = vmatpush1.bf16.msra.mxu0 %v3649
    %3868 = vmatprep.subr.bf16.mxu0 %v3654
    %3869 = vmatpush1.bf16.msra.mxu0 %v3653
    %3870 = vmatprep.subr.bf16.mxu0 %v3658
    %3871 = vmatpush1.bf16.msra.mxu0 %v3657
    %3872 = vmatprep.subr.bf16.mxu0 %v3662
    %3873 = vmatpush1.bf16.msra.mxu0 %v3661
    %3874 = vmatprep.subr.bf16.mxu0 %v3666
    %3875 = vmatpush1.bf16.msra.mxu0 %v3665
    %3876 = vmatprep.subr.bf16.mxu0 %v3670
    %3877 = vmatpush1.bf16.msra.mxu0 %v3669
    %3878 = vmatprep.subr.bf16.mxu0 %v3674
    %3879 = vmatpush1.bf16.msra.mxu0 %v3673
    %3880 = vmatprep.subr.bf16.mxu0 %v3678
    %3881 = vmatpush1.bf16.msra.mxu0 %v3677
    %3882 = vmatprep.mubr.bf16.mxu0 %v3018
    %3883 = vmatmul.mubr.bf16.gmra.mrb[0].mxu0 %v3017
    %v3884 = vpop.f32.mrb[0].mxu0
    %v3885 = vadd.f32 %v3844, %v3884
    %v3886 = vpop.f32.mrb[0].mxu0
    %v3887 = vadd.f32 %v3846, %v3886
    %v3888 = vpop.f32.mrb[0].mxu0
    %v3889 = vpop.f32.mrb[0].mxu0
    %3890 = vdwg.mxu0
    %3891 = vmatprep.subr.bf16.mxu0 %v3556
    %3892 = vmatpush1.bf16.msra.mxu0 %v3555
    %3893 = vmatprep.subr.bf16.mxu0 %v3560
    %3894 = vmatpush1.bf16.msra.mxu0 %v3559
    %3895 = vmatprep.subr.bf16.mxu0 %v3564
    %3896 = vmatpush1.bf16.msra.mxu0 %v3563
    %3897 = vmatprep.subr.bf16.mxu0 %v3568
    %3898 = vmatpush1.bf16.msra.mxu0 %v3567
    %3899 = vmatprep.subr.bf16.mxu0 %v3572
    %3900 = vmatpush1.bf16.msra.mxu0 %v3571
    %3901 = vmatprep.subr.bf16.mxu0 %v3576
    %3902 = vmatpush1.bf16.msra.mxu0 %v3575
    %3903 = vmatprep.subr.bf16.mxu0 %v3580
    %3904 = vmatpush1.bf16.msra.mxu0 %v3579
    %3905 = vmatprep.subr.bf16.mxu0 %v3584
    %3906 = vmatpush1.bf16.msra.mxu0 %v3583
    %3907 = vmatprep.subr.bf16.mxu0 %v3588
    %3908 = vmatpush1.bf16.msra.mxu0 %v3587
    %3909 = vmatprep.subr.bf16.mxu0 %v3592
    %3910 = vmatpush1.bf16.msra.mxu0 %v3591
    %3911 = vmatprep.subr.bf16.mxu0 %v3596
    %3912 = vmatpush1.bf16.msra.mxu0 %v3595
    %3913 = vmatprep.subr.bf16.mxu0 %v3600
    %3914 = vmatpush1.bf16.msra.mxu0 %v3599
    %3915 = vmatprep.subr.bf16.mxu0 %v3604
    %3916 = vmatpush1.bf16.msra.mxu0 %v3603
    %3917 = vmatprep.subr.bf16.mxu0 %v3608
    %3918 = vmatpush1.bf16.msra.mxu0 %v3607
    %3919 = vmatprep.subr.bf16.mxu0 %v3612
    %3920 = vmatpush1.bf16.msra.mxu0 %v3611
    %3921 = vmatprep.subr.bf16.mxu0 %v3616
    %3922 = vmatpush1.bf16.msra.mxu0 %v3615
    %3923 = vmatprep.mubr.bf16.mxu0 %v3016
    %3924 = vmatmul.mubr.bf16.gmra.mrb[0].mxu0 %v3015
    %v3925 = vpop.f32.mrb[0].mxu0
    %v3926 = vadd.f32 %v3160, %v3925
    %v3927 = vpop.f32.mrb[0].mxu0
    %v3928 = vadd.f32 %v3164, %v3927
    %v3929 = vpop.f32.mrb[0].mxu0
    %v3930 = vpop.f32.mrb[0].mxu0
    %3931 = vdwg.mxu0
    %3932 = vmatprep.subr.bf16.mxu0 %v3620
    %3933 = vmatpush1.bf16.msra.mxu0 %v3619
    %3934 = vmatprep.subr.bf16.mxu0 %v3624
    %3935 = vmatpush1.bf16.msra.mxu0 %v3623
    %3936 = vmatprep.subr.bf16.mxu0 %v3628
    %3937 = vmatpush1.bf16.msra.mxu0 %v3627
    %3938 = vmatprep.subr.bf16.mxu0 %v3632
    %3939 = vmatpush1.bf16.msra.mxu0 %v3631
    %3940 = vmatprep.subr.bf16.mxu0 %v3636
    %3941 = vmatpush1.bf16.msra.mxu0 %v3635
    %3942 = vmatprep.subr.bf16.mxu0 %v3640
    %3943 = vmatpush1.bf16.msra.mxu0 %v3639
    %3944 = vmatprep.subr.bf16.mxu0 %v3644
    %3945 = vmatpush1.bf16.msra.mxu0 %v3643
    %3946 = vmatprep.subr.bf16.mxu0 %v3648
    %3947 = vmatpush1.bf16.msra.mxu0 %v3647
    %3948 = vmatprep.subr.bf16.mxu0 %v3652
    %3949 = vmatpush1.bf16.msra.mxu0 %v3651
    %3950 = vmatprep.subr.bf16.mxu0 %v3656
    %3951 = vmatpush1.bf16.msra.mxu0 %v3655
    %3952 = vmatprep.subr.bf16.mxu0 %v3660
    %3953 = vmatpush1.bf16.msra.mxu0 %v3659
    %3954 = vmatprep.subr.bf16.mxu0 %v3664
    %3955 = vmatpush1.bf16.msra.mxu0 %v3663
    %3956 = vmatprep.subr.bf16.mxu0 %v3668
    %3957 = vmatpush1.bf16.msra.mxu0 %v3667
    %3958 = vmatprep.subr.bf16.mxu0 %v3672
    %3959 = vmatpush1.bf16.msra.mxu0 %v3671
    %3960 = vmatprep.subr.bf16.mxu0 %v3676
    %3961 = vmatpush1.bf16.msra.mxu0 %v3675
    %3962 = vmatprep.subr.bf16.mxu0 %v3680
    %3963 = vmatpush1.bf16.msra.mxu0 %v3679
    %3964 = vmatprep.mubr.bf16.mxu0 %v3018
    %3965 = vmatmul.mubr.bf16.gmra.mrb[0].mxu0 %v3017
    %v3966 = vpop.f32.mrb[0].mxu0
    %v3967 = vadd.f32 %v3926, %v3966
    %v3968 = vpop.f32.mrb[0].mxu0
    %v3969 = vadd.f32 %v3928, %v3968
    %v3970 = vpop.f32.mrb[0].mxu0
    %v3971 = vpop.f32.mrb[0].mxu0
    %3972 = vdwg.mxu0
    %v3973 = vmax.f32 %v3885, 0.0
    %v3974 = vmax.f32 %v3887, 0.0
    %v3975 = vmax.f32 %v3967, 0.0
    %v3976 = vmax.f32 %v3969, 0.0
    %v3977 = vpack.c.bf16 %v3973, %v3973
    %v3978 = vpack.c.bf16 %v3974, %v3974
    %v3979 = vpack.c.bf16 %v3975, %v3975
    %v3980 = vpack.c.bf16 %v3976, %v3976
    %v3981 = vld [vmem:[#allocation11] sm:$0xff]
    %v3982 = vld [vmem:[#allocation11 + $0x8] sm:$0xff]
    %v3983 = vld [vmem:[#allocation11 + $0x10] sm:$0xff]
    %v3984 = vld [vmem:[#allocation11 + $0x18] sm:$0xff]
    %v3985 = vld [vmem:[#allocation11 + $0x20] sm:$0xff]
    %v3986 = vld [vmem:[#allocation11 + $0x28] sm:$0xff]
    %v3987 = vld [vmem:[#allocation11 + $0x30] sm:$0xff]
    %v3988 = vld [vmem:[#allocation11 + $0x38] sm:$0xff]
    %v3989 = vld [vmem:[#allocation11 + $0x40] sm:$0xff]
    %v3990 = vld [vmem:[#allocation11 + $0x48] sm:$0xff]
    %v3991 = vld [vmem:[#allocation11 + $0x50] sm:$0xff]
    %v3992 = vld [vmem:[#allocation11 + $0x58] sm:$0xff]
    %v3993 = vld [vmem:[#allocation11 + $0x60] sm:$0xff]
    %v3994 = vld [vmem:[#allocation11 + $0x68] sm:$0xff]
    %v3995 = vld [vmem:[#allocation11 + $0x70] sm:$0xff]
    %v3996 = vld [vmem:[#allocation11 + $0x78] sm:$0xff]
    %v3997 = vld [vmem:[#allocation11 + $0x80] sm:$0xff]
    %v3998 = vld [vmem:[#allocation11 + $0x88] sm:$0xff]
    %v3999 = vld [vmem:[#allocation11 + $0x90] sm:$0xff]
    %v4000 = vld [vmem:[#allocation11 + $0x98] sm:$0xff]
    %v4001 = vld [vmem:[#allocation11 + $0xa0] sm:$0xff]
    %v4002 = vld [vmem:[#allocation11 + $0xa8] sm:$0xff]
    %v4003 = vld [vmem:[#allocation11 + $0xb0] sm:$0xff]
    %v4004 = vld [vmem:[#allocation11 + $0xb8] sm:$0xff]
    %v4005 = vld [vmem:[#allocation11 + $0xc0] sm:$0xff]
    %v4006 = vld [vmem:[#allocation11 + $0xc8] sm:$0xff]
    %v4007 = vld [vmem:[#allocation11 + $0xd0] sm:$0xff]
    %v4008 = vld [vmem:[#allocation11 + $0xd8] sm:$0xff]
    %v4009 = vld [vmem:[#allocation11 + $0xe0] sm:$0xff]
    %v4010 = vld [vmem:[#allocation11 + $0xe8] sm:$0xff]
    %v4011 = vld [vmem:[#allocation11 + $0xf0] sm:$0xff]
    %v4012 = vld [vmem:[#allocation11 + $0xf8] sm:$0xff]
    %v4013 = vld [vmem:[#allocation11 + $0x100] sm:$0xff]
    %v4014 = vld [vmem:[#allocation11 + $0x108] sm:$0xff]
    %v4015 = vld [vmem:[#allocation11 + $0x110] sm:$0xff]
    %v4016 = vld [vmem:[#allocation11 + $0x118] sm:$0xff]
    %v4017 = vld [vmem:[#allocation11 + $0x120] sm:$0xff]
    %v4018 = vld [vmem:[#allocation11 + $0x128] sm:$0xff]
    %v4019 = vld [vmem:[#allocation11 + $0x130] sm:$0xff]
    %v4020 = vld [vmem:[#allocation11 + $0x138] sm:$0xff]
    %v4021 = vld [vmem:[#allocation11 + $0x140] sm:$0xff]
    %v4022 = vld [vmem:[#allocation11 + $0x148] sm:$0xff]
    %v4023 = vld [vmem:[#allocation11 + $0x150] sm:$0xff]
    %v4024 = vld [vmem:[#allocation11 + $0x158] sm:$0xff]
    %v4025 = vld [vmem:[#allocation11 + $0x160] sm:$0xff]
    %v4026 = vld [vmem:[#allocation11 + $0x168] sm:$0xff]
    %v4027 = vld [vmem:[#allocation11 + $0x170] sm:$0xff]
    %v4028 = vld [vmem:[#allocation11 + $0x178] sm:$0xff]
    %v4029 = vld [vmem:[#allocation11 + $0x180] sm:$0xff]
    %v4030 = vld [vmem:[#allocation11 + $0x188] sm:$0xff]
    %v4031 = vld [vmem:[#allocation11 + $0x190] sm:$0xff]
    %v4032 = vld [vmem:[#allocation11 + $0x198] sm:$0xff]
    %v4033 = vld [vmem:[#allocation11 + $0x1a0] sm:$0xff]
    %v4034 = vld [vmem:[#allocation11 + $0x1a8] sm:$0xff]
    %v4035 = vld [vmem:[#allocation11 + $0x1b0] sm:$0xff]
    %v4036 = vld [vmem:[#allocation11 + $0x1b8] sm:$0xff]
    %v4037 = vld [vmem:[#allocation11 + $0x1c0] sm:$0xff]
    %v4038 = vld [vmem:[#allocation11 + $0x1c8] sm:$0xff]
    %v4039 = vld [vmem:[#allocation11 + $0x1d0] sm:$0xff]
    %v4040 = vld [vmem:[#allocation11 + $0x1d8] sm:$0xff]
    %v4041 = vld [vmem:[#allocation11 + $0x1e0] sm:$0xff]
    %v4042 = vld [vmem:[#allocation11 + $0x1e8] sm:$0xff]
    %v4043 = vld [vmem:[#allocation11 + $0x1f0] sm:$0xff]
    %v4044 = vld [vmem:[#allocation11 + $0x1f8] sm:$0xff]
    %v4045 = vld [vmem:[#allocation11 + $0x200] sm:$0xff]
    %v4046 = vld [vmem:[#allocation11 + $0x208] sm:$0xff]
    %v4047 = vld [vmem:[#allocation11 + $0x210] sm:$0xff]
    %v4048 = vld [vmem:[#allocation11 + $0x218] sm:$0xff]
    %v4049 = vld [vmem:[#allocation11 + $0x220] sm:$0xff]
    %v4050 = vld [vmem:[#allocation11 + $0x228] sm:$0xff]
    %v4051 = vld [vmem:[#allocation11 + $0x230] sm:$0xff]
    %v4052 = vld [vmem:[#allocation11 + $0x238] sm:$0xff]
    %v4053 = vld [vmem:[#allocation11 + $0x240] sm:$0xff]
    %v4054 = vld [vmem:[#allocation11 + $0x248] sm:$0xff]
    %v4055 = vld [vmem:[#allocation11 + $0x250] sm:$0xff]
    %v4056 = vld [vmem:[#allocation11 + $0x258] sm:$0xff]
    %v4057 = vld [vmem:[#allocation11 + $0x260] sm:$0xff]
    %v4058 = vld [vmem:[#allocation11 + $0x268] sm:$0xff]
    %v4059 = vld [vmem:[#allocation11 + $0x270] sm:$0xff]
    %v4060 = vld [vmem:[#allocation11 + $0x278] sm:$0xff]
    %v4061 = vld [vmem:[#allocation11 + $0x280] sm:$0xff]
    %v4062 = vld [vmem:[#allocation11 + $0x288] sm:$0xff]
    %v4063 = vld [vmem:[#allocation11 + $0x290] sm:$0xff]
    %v4064 = vld [vmem:[#allocation11 + $0x298] sm:$0xff]
    %v4065 = vld [vmem:[#allocation11 + $0x2a0] sm:$0xff]
    %v4066 = vld [vmem:[#allocation11 + $0x2a8] sm:$0xff]
    %v4067 = vld [vmem:[#allocation11 + $0x2b0] sm:$0xff]
    %v4068 = vld [vmem:[#allocation11 + $0x2b8] sm:$0xff]
    %v4069 = vld [vmem:[#allocation11 + $0x2c0] sm:$0xff]
    %v4070 = vld [vmem:[#allocation11 + $0x2c8] sm:$0xff]
    %v4071 = vld [vmem:[#allocation11 + $0x2d0] sm:$0xff]
    %v4072 = vld [vmem:[#allocation11 + $0x2d8] sm:$0xff]
    %v4073 = vld [vmem:[#allocation11 + $0x2e0] sm:$0xff]
    %v4074 = vld [vmem:[#allocation11 + $0x2e8] sm:$0xff]
    %v4075 = vld [vmem:[#allocation11 + $0x2f0] sm:$0xff]
    %v4076 = vld [vmem:[#allocation11 + $0x2f8] sm:$0xff]
    %v4077 = vld [vmem:[#allocation11 + $0x300] sm:$0xff]
    %v4078 = vld [vmem:[#allocation11 + $0x308] sm:$0xff]
    %v4079 = vld [vmem:[#allocation11 + $0x310] sm:$0xff]
    %v4080 = vld [vmem:[#allocation11 + $0x318] sm:$0xff]
    %v4081 = vld [vmem:[#allocation11 + $0x320] sm:$0xff]
    %v4082 = vld [vmem:[#allocation11 + $0x328] sm:$0xff]
    %v4083 = vld [vmem:[#allocation11 + $0x330] sm:$0xff]
    %v4084 = vld [vmem:[#allocation11 + $0x338] sm:$0xff]
    %v4085 = vld [vmem:[#allocation11 + $0x340] sm:$0xff]
    %v4086 = vld [vmem:[#allocation11 + $0x348] sm:$0xff]
    %v4087 = vld [vmem:[#allocation11 + $0x350] sm:$0xff]
    %v4088 = vld [vmem:[#allocation11 + $0x358] sm:$0xff]
    %v4089 = vld [vmem:[#allocation11 + $0x360] sm:$0xff]
    %v4090 = vld [vmem:[#allocation11 + $0x368] sm:$0xff]
    %v4091 = vld [vmem:[#allocation11 + $0x370] sm:$0xff]
    %v4092 = vld [vmem:[#allocation11 + $0x378] sm:$0xff]
    %v4093 = vld [vmem:[#allocation11 + $0x380] sm:$0xff]
    %v4094 = vld [vmem:[#allocation11 + $0x388] sm:$0xff]
    %v4095 = vld [vmem:[#allocation11 + $0x390] sm:$0xff]
    %v4096 = vld [vmem:[#allocation11 + $0x398] sm:$0xff]
    %v4097 = vld [vmem:[#allocation11 + $0x3a0] sm:$0xff]
    %v4098 = vld [vmem:[#allocation11 + $0x3a8] sm:$0xff]
    %v4099 = vld [vmem:[#allocation11 + $0x3b0] sm:$0xff]
    %v4100 = vld [vmem:[#allocation11 + $0x3b8] sm:$0xff]
    %v4101 = vld [vmem:[#allocation11 + $0x3c0] sm:$0xff]
    %v4102 = vld [vmem:[#allocation11 + $0x3c8] sm:$0xff]
    %v4103 = vld [vmem:[#allocation11 + $0x3d0] sm:$0xff]
    %v4104 = vld [vmem:[#allocation11 + $0x3d8] sm:$0xff]
    %v4105 = vld [vmem:[#allocation11 + $0x3e0] sm:$0xff]
    %v4106 = vld [vmem:[#allocation11 + $0x3e8] sm:$0xff]
    %v4107 = vld [vmem:[#allocation11 + $0x3f0] sm:$0xff]
    %v4108 = vld [vmem:[#allocation11 + $0x3f8] sm:$0xff]
    %v4109 = vld [vmem:[#allocation11 + $0x400] sm:$0xff]
    %v4110 = vld [vmem:[#allocation11 + $0x408] sm:$0xff]
    %v4111 = vld [vmem:[#allocation11 + $0x410] sm:$0xff]
    %v4112 = vld [vmem:[#allocation11 + $0x418] sm:$0xff]
    %v4113 = vld [vmem:[#allocation11 + $0x420] sm:$0xff]
    %v4114 = vld [vmem:[#allocation11 + $0x428] sm:$0xff]
    %v4115 = vld [vmem:[#allocation11 + $0x430] sm:$0xff]
    %v4116 = vld [vmem:[#allocation11 + $0x438] sm:$0xff]
    %v4117 = vld [vmem:[#allocation11 + $0x440] sm:$0xff]
    %v4118 = vld [vmem:[#allocation11 + $0x448] sm:$0xff]
    %v4119 = vld [vmem:[#allocation11 + $0x450] sm:$0xff]
    %v4120 = vld [vmem:[#allocation11 + $0x458] sm:$0xff]
    %v4121 = vld [vmem:[#allocation11 + $0x460] sm:$0xff]
    %v4122 = vld [vmem:[#allocation11 + $0x468] sm:$0xff]
    %v4123 = vld [vmem:[#allocation11 + $0x470] sm:$0xff]
    %v4124 = vld [vmem:[#allocation11 + $0x478] sm:$0xff]
    %v4125 = vld [vmem:[#allocation11 + $0x480] sm:$0xff]
    %v4126 = vld [vmem:[#allocation11 + $0x488] sm:$0xff]
    %v4127 = vld [vmem:[#allocation11 + $0x490] sm:$0xff]
    %v4128 = vld [vmem:[#allocation11 + $0x498] sm:$0xff]
    %v4129 = vld [vmem:[#allocation11 + $0x4a0] sm:$0xff]
    %v4130 = vld [vmem:[#allocation11 + $0x4a8] sm:$0xff]
    %v4131 = vld [vmem:[#allocation11 + $0x4b0] sm:$0xff]
    %v4132 = vld [vmem:[#allocation11 + $0x4b8] sm:$0xff]
    %v4133 = vld [vmem:[#allocation11 + $0x4c0] sm:$0xff]
    %v4134 = vld [vmem:[#allocation11 + $0x4c8] sm:$0xff]
    %v4135 = vld [vmem:[#allocation11 + $0x4d0] sm:$0xff]
    %v4136 = vld [vmem:[#allocation11 + $0x4d8] sm:$0xff]
    %v4137 = vld [vmem:[#allocation11 + $0x4e0] sm:$0xff]
    %v4138 = vld [vmem:[#allocation11 + $0x4e8] sm:$0xff]
    %v4139 = vld [vmem:[#allocation11 + $0x4f0] sm:$0xff]
    %v4140 = vld [vmem:[#allocation11 + $0x4f8] sm:$0xff]
    %v4141 = vld [vmem:[#allocation11 + $0x500] sm:$0xff]
    %v4142 = vld [vmem:[#allocation11 + $0x508] sm:$0xff]
    %v4143 = vld [vmem:[#allocation11 + $0x510] sm:$0xff]
    %v4144 = vld [vmem:[#allocation11 + $0x518] sm:$0xff]
    %v4145 = vld [vmem:[#allocation11 + $0x520] sm:$0xff]
    %v4146 = vld [vmem:[#allocation11 + $0x528] sm:$0xff]
    %v4147 = vld [vmem:[#allocation11 + $0x530] sm:$0xff]
    %v4148 = vld [vmem:[#allocation11 + $0x538] sm:$0xff]
    %v4149 = vld [vmem:[#allocation11 + $0x540] sm:$0xff]
    %v4150 = vld [vmem:[#allocation11 + $0x548] sm:$0xff]
    %v4151 = vld [vmem:[#allocation11 + $0x550] sm:$0xff]
    %v4152 = vld [vmem:[#allocation11 + $0x558] sm:$0xff]
    %v4153 = vld [vmem:[#allocation11 + $0x560] sm:$0xff]
    %v4154 = vld [vmem:[#allocation11 + $0x568] sm:$0xff]
    %v4155 = vld [vmem:[#allocation11 + $0x570] sm:$0xff]
    %v4156 = vld [vmem:[#allocation11 + $0x578] sm:$0xff]
    %v4157 = vld [vmem:[#allocation11 + $0x580] sm:$0xff]
    %v4158 = vld [vmem:[#allocation11 + $0x588] sm:$0xff]
    %v4159 = vld [vmem:[#allocation11 + $0x590] sm:$0xff]
    %v4160 = vld [vmem:[#allocation11 + $0x598] sm:$0xff]
    %v4161 = vld [vmem:[#allocation11 + $0x5a0] sm:$0xff]
    %v4162 = vld [vmem:[#allocation11 + $0x5a8] sm:$0xff]
    %v4163 = vld [vmem:[#allocation11 + $0x5b0] sm:$0xff]
    %v4164 = vld [vmem:[#allocation11 + $0x5b8] sm:$0xff]
    %v4165 = vld [vmem:[#allocation11 + $0x5c0] sm:$0xff]
    %v4166 = vld [vmem:[#allocation11 + $0x5c8] sm:$0xff]
    %v4167 = vld [vmem:[#allocation11 + $0x5d0] sm:$0xff]
    %v4168 = vld [vmem:[#allocation11 + $0x5d8] sm:$0xff]
    %v4169 = vld [vmem:[#allocation11 + $0x5e0] sm:$0xff]
    %v4170 = vld [vmem:[#allocation11 + $0x5e8] sm:$0xff]
    %v4171 = vld [vmem:[#allocation11 + $0x5f0] sm:$0xff]
    %v4172 = vld [vmem:[#allocation11 + $0x5f8] sm:$0xff]
    %v4173 = vld [vmem:[#allocation11 + $0x600] sm:$0xff]
    %v4174 = vld [vmem:[#allocation11 + $0x608] sm:$0xff]
    %v4175 = vld [vmem:[#allocation11 + $0x610] sm:$0xff]
    %v4176 = vld [vmem:[#allocation11 + $0x618] sm:$0xff]
    %v4177 = vld [vmem:[#allocation11 + $0x620] sm:$0xff]
    %v4178 = vld [vmem:[#allocation11 + $0x628] sm:$0xff]
    %v4179 = vld [vmem:[#allocation11 + $0x630] sm:$0xff]
    %v4180 = vld [vmem:[#allocation11 + $0x638] sm:$0xff]
    %v4181 = vld [vmem:[#allocation11 + $0x640] sm:$0xff]
    %v4182 = vld [vmem:[#allocation11 + $0x648] sm:$0xff]
    %v4183 = vld [vmem:[#allocation11 + $0x650] sm:$0xff]
    %v4184 = vld [vmem:[#allocation11 + $0x658] sm:$0xff]
    %v4185 = vld [vmem:[#allocation11 + $0x660] sm:$0xff]
    %v4186 = vld [vmem:[#allocation11 + $0x668] sm:$0xff]
    %v4187 = vld [vmem:[#allocation11 + $0x670] sm:$0xff]
    %v4188 = vld [vmem:[#allocation11 + $0x678] sm:$0xff]
    %v4189 = vld [vmem:[#allocation11 + $0x680] sm:$0xff]
    %v4190 = vld [vmem:[#allocation11 + $0x688] sm:$0xff]
    %v4191 = vld [vmem:[#allocation11 + $0x690] sm:$0xff]
    %v4192 = vld [vmem:[#allocation11 + $0x698] sm:$0xff]
    %v4193 = vld [vmem:[#allocation11 + $0x6a0] sm:$0xff]
    %v4194 = vld [vmem:[#allocation11 + $0x6a8] sm:$0xff]
    %v4195 = vld [vmem:[#allocation11 + $0x6b0] sm:$0xff]
    %v4196 = vld [vmem:[#allocation11 + $0x6b8] sm:$0xff]
    %v4197 = vld [vmem:[#allocation11 + $0x6c0] sm:$0xff]
    %v4198 = vld [vmem:[#allocation11 + $0x6c8] sm:$0xff]
    %v4199 = vld [vmem:[#allocation11 + $0x6d0] sm:$0xff]
    %v4200 = vld [vmem:[#allocation11 + $0x6d8] sm:$0xff]
    %v4201 = vld [vmem:[#allocation11 + $0x6e0] sm:$0xff]
    %v4202 = vld [vmem:[#allocation11 + $0x6e8] sm:$0xff]
    %v4203 = vld [vmem:[#allocation11 + $0x6f0] sm:$0xff]
    %v4204 = vld [vmem:[#allocation11 + $0x6f8] sm:$0xff]
    %v4205 = vld [vmem:[#allocation11 + $0x700] sm:$0xff]
    %v4206 = vld [vmem:[#allocation11 + $0x708] sm:$0xff]
    %v4207 = vld [vmem:[#allocation11 + $0x710] sm:$0xff]
    %v4208 = vld [vmem:[#allocation11 + $0x718] sm:$0xff]
    %v4209 = vld [vmem:[#allocation11 + $0x720] sm:$0xff]
    %v4210 = vld [vmem:[#allocation11 + $0x728] sm:$0xff]
    %v4211 = vld [vmem:[#allocation11 + $0x730] sm:$0xff]
    %v4212 = vld [vmem:[#allocation11 + $0x738] sm:$0xff]
    %v4213 = vld [vmem:[#allocation11 + $0x740] sm:$0xff]
    %v4214 = vld [vmem:[#allocation11 + $0x748] sm:$0xff]
    %v4215 = vld [vmem:[#allocation11 + $0x750] sm:$0xff]
    %v4216 = vld [vmem:[#allocation11 + $0x758] sm:$0xff]
    %v4217 = vld [vmem:[#allocation11 + $0x760] sm:$0xff]
    %v4218 = vld [vmem:[#allocation11 + $0x768] sm:$0xff]
    %v4219 = vld [vmem:[#allocation11 + $0x770] sm:$0xff]
    %v4220 = vld [vmem:[#allocation11 + $0x778] sm:$0xff]
    %v4221 = vld [vmem:[#allocation11 + $0x780] sm:$0xff]
    %v4222 = vld [vmem:[#allocation11 + $0x788] sm:$0xff]
    %v4223 = vld [vmem:[#allocation11 + $0x790] sm:$0xff]
    %v4224 = vld [vmem:[#allocation11 + $0x798] sm:$0xff]
    %v4225 = vld [vmem:[#allocation11 + $0x7a0] sm:$0xff]
    %v4226 = vld [vmem:[#allocation11 + $0x7a8] sm:$0xff]
    %v4227 = vld [vmem:[#allocation11 + $0x7b0] sm:$0xff]
    %v4228 = vld [vmem:[#allocation11 + $0x7b8] sm:$0xff]
    %v4229 = vld [vmem:[#allocation11 + $0x7c0] sm:$0xff]
    %v4230 = vld [vmem:[#allocation11 + $0x7c8] sm:$0xff]
    %v4231 = vld [vmem:[#allocation11 + $0x7d0] sm:$0xff]
    %v4232 = vld [vmem:[#allocation11 + $0x7d8] sm:$0xff]
    %v4233 = vld [vmem:[#allocation11 + $0x7e0] sm:$0xff]
    %v4234 = vld [vmem:[#allocation11 + $0x7e8] sm:$0xff]
    %v4235 = vld [vmem:[#allocation11 + $0x7f0] sm:$0xff]
    %v4236 = vld [vmem:[#allocation11 + $0x7f8] sm:$0xff]
    %v4237 = vld [vmem:[%s8] sm:$0xff]
    %v4239 = vlaneseq
    %v4240 = vshrl.u32 %v4239, 7
    %v4241 = vsub.s32 0, %v4240
    %v4242 = vrot.slane %v4237, %v4241
    %v4243 = vlaneseq
    %v4244 = vshrl.u32 %v4243, 7
    %v4245 = vsub.s32 1, %v4244
    %v4246 = vrot.slane %v4237, %v4245
    %v4247 = vlaneseq
    %v4248 = vshrl.u32 %v4247, 7
    %v4249 = vsub.s32 2, %v4248
    %v4250 = vrot.slane %v4237, %v4249
    %v4251 = vlaneseq
    %v4252 = vshrl.u32 %v4251, 7
    %v4253 = vsub.s32 3, %v4252
    %v4254 = vrot.slane %v4237, %v4253
    %v4255 = vlaneseq
    %v4256 = vshrl.u32 %v4255, 7
    %v4257 = vsub.s32 4, %v4256
    %v4258 = vrot.slane %v4237, %v4257
    %v4259 = vlaneseq
    %v4260 = vshrl.u32 %v4259, 7
    %v4261 = vsub.s32 5, %v4260
    %v4262 = vrot.slane %v4237, %v4261
    %v4263 = vlaneseq
    %v4264 = vshrl.u32 %v4263, 7
    %v4265 = vsub.s32 6, %v4264
    %v4266 = vrot.slane %v4237, %v4265
    %v4267 = vlaneseq
    %v4268 = vshrl.u32 %v4267, 7
    %v4269 = vsub.s32 7, %v4268
    %v4270 = vrot.slane %v4237, %v4269
    %v4535 = vunpack.c.l.b16 %v3981
    %v4536 = vunpack.c.h.b16 %v3981
    %v4537 = vunpack.c.l.b16 %v3982
    %v4538 = vunpack.c.h.b16 %v3982
    %v4539 = vunpack.c.l.b16 %v3983
    %v4540 = vunpack.c.h.b16 %v3983
    %v4541 = vunpack.c.l.b16 %v3984
    %v4542 = vunpack.c.h.b16 %v3984
    %v4543 = vunpack.c.l.b16 %v3985
    %v4544 = vunpack.c.h.b16 %v3985
    %v4545 = vunpack.c.l.b16 %v3986
    %v4546 = vunpack.c.h.b16 %v3986
    %v4547 = vunpack.c.l.b16 %v3987
    %v4548 = vunpack.c.h.b16 %v3987
    %v4549 = vunpack.c.l.b16 %v3988
    %v4550 = vunpack.c.h.b16 %v3988
    %v4551 = vunpack.c.l.b16 %v3989
    %v4552 = vunpack.c.h.b16 %v3989
    %v4553 = vunpack.c.l.b16 %v3990
    %v4554 = vunpack.c.h.b16 %v3990
    %v4555 = vunpack.c.l.b16 %v3991
    %v4556 = vunpack.c.h.b16 %v3991
    %v4557 = vunpack.c.l.b16 %v3992
    %v4558 = vunpack.c.h.b16 %v3992
    %v4559 = vunpack.c.l.b16 %v3993
    %v4560 = vunpack.c.h.b16 %v3993
    %v4561 = vunpack.c.l.b16 %v3994
    %v4562 = vunpack.c.h.b16 %v3994
    %v4563 = vunpack.c.l.b16 %v3995
    %v4564 = vunpack.c.h.b16 %v3995
    %v4565 = vunpack.c.l.b16 %v3996
    %v4566 = vunpack.c.h.b16 %v3996
    %v4567 = vunpack.c.l.b16 %v3997
    %v4568 = vunpack.c.h.b16 %v3997
    %v4569 = vunpack.c.l.b16 %v3998
    %v4570 = vunpack.c.h.b16 %v3998
    %v4571 = vunpack.c.l.b16 %v3999
    %v4572 = vunpack.c.h.b16 %v3999
    %v4573 = vunpack.c.l.b16 %v4000
    %v4574 = vunpack.c.h.b16 %v4000
    %v4575 = vunpack.c.l.b16 %v4001
    %v4576 = vunpack.c.h.b16 %v4001
    %v4577 = vunpack.c.l.b16 %v4002
    %v4578 = vunpack.c.h.b16 %v4002
    %v4579 = vunpack.c.l.b16 %v4003
    %v4580 = vunpack.c.h.b16 %v4003
    %v4581 = vunpack.c.l.b16 %v4004
    %v4582 = vunpack.c.h.b16 %v4004
    %v4583 = vunpack.c.l.b16 %v4005
    %v4584 = vunpack.c.h.b16 %v4005
    %v4585 = vunpack.c.l.b16 %v4006
    %v4586 = vunpack.c.h.b16 %v4006
    %v4587 = vunpack.c.l.b16 %v4007
    %v4588 = vunpack.c.h.b16 %v4007
    %v4589 = vunpack.c.l.b16 %v4008
    %v4590 = vunpack.c.h.b16 %v4008
    %v4591 = vunpack.c.l.b16 %v4009
    %v4592 = vunpack.c.h.b16 %v4009
    %v4593 = vunpack.c.l.b16 %v4010
    %v4594 = vunpack.c.h.b16 %v4010
    %v4595 = vunpack.c.l.b16 %v4011
    %v4596 = vunpack.c.h.b16 %v4011
    %v4597 = vunpack.c.l.b16 %v4012
    %v4598 = vunpack.c.h.b16 %v4012
    %v4599 = vunpack.c.l.b16 %v4013
    %v4600 = vunpack.c.h.b16 %v4013
    %v4601 = vunpack.c.l.b16 %v4014
    %v4602 = vunpack.c.h.b16 %v4014
    %v4603 = vunpack.c.l.b16 %v4015
    %v4604 = vunpack.c.h.b16 %v4015
    %v4605 = vunpack.c.l.b16 %v4016
    %v4606 = vunpack.c.h.b16 %v4016
    %v4607 = vunpack.c.l.b16 %v4017
    %v4608 = vunpack.c.h.b16 %v4017
    %v4609 = vunpack.c.l.b16 %v4018
    %v4610 = vunpack.c.h.b16 %v4018
    %v4611 = vunpack.c.l.b16 %v4019
    %v4612 = vunpack.c.h.b16 %v4019
    %v4613 = vunpack.c.l.b16 %v4020
    %v4614 = vunpack.c.h.b16 %v4020
    %v4615 = vunpack.c.l.b16 %v4021
    %v4616 = vunpack.c.h.b16 %v4021
    %v4617 = vunpack.c.l.b16 %v4022
    %v4618 = vunpack.c.h.b16 %v4022
    %v4619 = vunpack.c.l.b16 %v4023
    %v4620 = vunpack.c.h.b16 %v4023
    %v4621 = vunpack.c.l.b16 %v4024
    %v4622 = vunpack.c.h.b16 %v4024
    %v4623 = vunpack.c.l.b16 %v4025
    %v4624 = vunpack.c.h.b16 %v4025
    %v4625 = vunpack.c.l.b16 %v4026
    %v4626 = vunpack.c.h.b16 %v4026
    %v4627 = vunpack.c.l.b16 %v4027
    %v4628 = vunpack.c.h.b16 %v4027
    %v4629 = vunpack.c.l.b16 %v4028
    %v4630 = vunpack.c.h.b16 %v4028
    %v4631 = vunpack.c.l.b16 %v4029
    %v4632 = vunpack.c.h.b16 %v4029
    %v4633 = vunpack.c.l.b16 %v4030
    %v4634 = vunpack.c.h.b16 %v4030
    %v4635 = vunpack.c.l.b16 %v4031
    %v4636 = vunpack.c.h.b16 %v4031
    %v4637 = vunpack.c.l.b16 %v4032
    %v4638 = vunpack.c.h.b16 %v4032
    %v4639 = vunpack.c.l.b16 %v4033
    %v4640 = vunpack.c.h.b16 %v4033
    %v4641 = vunpack.c.l.b16 %v4034
    %v4642 = vunpack.c.h.b16 %v4034
    %v4643 = vunpack.c.l.b16 %v4035
    %v4644 = vunpack.c.h.b16 %v4035
    %v4645 = vunpack.c.l.b16 %v4036
    %v4646 = vunpack.c.h.b16 %v4036
    %v4647 = vunpack.c.l.b16 %v4037
    %v4648 = vunpack.c.h.b16 %v4037
    %v4649 = vunpack.c.l.b16 %v4038
    %v4650 = vunpack.c.h.b16 %v4038
    %v4651 = vunpack.c.l.b16 %v4039
    %v4652 = vunpack.c.h.b16 %v4039
    %v4653 = vunpack.c.l.b16 %v4040
    %v4654 = vunpack.c.h.b16 %v4040
    %v4655 = vunpack.c.l.b16 %v4041
    %v4656 = vunpack.c.h.b16 %v4041
    %v4657 = vunpack.c.l.b16 %v4042
    %v4658 = vunpack.c.h.b16 %v4042
    %v4659 = vunpack.c.l.b16 %v4043
    %v4660 = vunpack.c.h.b16 %v4043
    %v4661 = vunpack.c.l.b16 %v4044
    %v4662 = vunpack.c.h.b16 %v4044
    %v4663 = vunpack.c.l.b16 %v4045
    %v4664 = vunpack.c.h.b16 %v4045
    %v4665 = vunpack.c.l.b16 %v4046
    %v4666 = vunpack.c.h.b16 %v4046
    %v4667 = vunpack.c.l.b16 %v4047
    %v4668 = vunpack.c.h.b16 %v4047
    %v4669 = vunpack.c.l.b16 %v4048
    %v4670 = vunpack.c.h.b16 %v4048
    %v4671 = vunpack.c.l.b16 %v4049
    %v4672 = vunpack.c.h.b16 %v4049
    %v4673 = vunpack.c.l.b16 %v4050
    %v4674 = vunpack.c.h.b16 %v4050
    %v4675 = vunpack.c.l.b16 %v4051
    %v4676 = vunpack.c.h.b16 %v4051
    %v4677 = vunpack.c.l.b16 %v4052
    %v4678 = vunpack.c.h.b16 %v4052
    %v4679 = vunpack.c.l.b16 %v4053
    %v4680 = vunpack.c.h.b16 %v4053
    %v4681 = vunpack.c.l.b16 %v4054
    %v4682 = vunpack.c.h.b16 %v4054
    %v4683 = vunpack.c.l.b16 %v4055
    %v4684 = vunpack.c.h.b16 %v4055
    %v4685 = vunpack.c.l.b16 %v4056
    %v4686 = vunpack.c.h.b16 %v4056
    %v4687 = vunpack.c.l.b16 %v4057
    %v4688 = vunpack.c.h.b16 %v4057
    %v4689 = vunpack.c.l.b16 %v4058
    %v4690 = vunpack.c.h.b16 %v4058
    %v4691 = vunpack.c.l.b16 %v4059
    %v4692 = vunpack.c.h.b16 %v4059
    %v4693 = vunpack.c.l.b16 %v4060
    %v4694 = vunpack.c.h.b16 %v4060
    %v4695 = vunpack.c.l.b16 %v4061
    %v4696 = vunpack.c.h.b16 %v4061
    %v4697 = vunpack.c.l.b16 %v4062
    %v4698 = vunpack.c.h.b16 %v4062
    %v4699 = vunpack.c.l.b16 %v4063
    %v4700 = vunpack.c.h.b16 %v4063
    %v4701 = vunpack.c.l.b16 %v4064
    %v4702 = vunpack.c.h.b16 %v4064
    %v4703 = vunpack.c.l.b16 %v4065
    %v4704 = vunpack.c.h.b16 %v4065
    %v4705 = vunpack.c.l.b16 %v4066
    %v4706 = vunpack.c.h.b16 %v4066
    %v4707 = vunpack.c.l.b16 %v4067
    %v4708 = vunpack.c.h.b16 %v4067
    %v4709 = vunpack.c.l.b16 %v4068
    %v4710 = vunpack.c.h.b16 %v4068
    %v4711 = vunpack.c.l.b16 %v4069
    %v4712 = vunpack.c.h.b16 %v4069
    %v4713 = vunpack.c.l.b16 %v4070
    %v4714 = vunpack.c.h.b16 %v4070
    %v4715 = vunpack.c.l.b16 %v4071
    %v4716 = vunpack.c.h.b16 %v4071
    %v4717 = vunpack.c.l.b16 %v4072
    %v4718 = vunpack.c.h.b16 %v4072
    %v4719 = vunpack.c.l.b16 %v4073
    %v4720 = vunpack.c.h.b16 %v4073
    %v4721 = vunpack.c.l.b16 %v4074
    %v4722 = vunpack.c.h.b16 %v4074
    %v4723 = vunpack.c.l.b16 %v4075
    %v4724 = vunpack.c.h.b16 %v4075
    %v4725 = vunpack.c.l.b16 %v4076
    %v4726 = vunpack.c.h.b16 %v4076
    %v4727 = vunpack.c.l.b16 %v4077
    %v4728 = vunpack.c.h.b16 %v4077
    %v4729 = vunpack.c.l.b16 %v4078
    %v4730 = vunpack.c.h.b16 %v4078
    %v4731 = vunpack.c.l.b16 %v4079
    %v4732 = vunpack.c.h.b16 %v4079
    %v4733 = vunpack.c.l.b16 %v4080
    %v4734 = vunpack.c.h.b16 %v4080
    %v4735 = vunpack.c.l.b16 %v4081
    %v4736 = vunpack.c.h.b16 %v4081
    %v4737 = vunpack.c.l.b16 %v4082
    %v4738 = vunpack.c.h.b16 %v4082
    %v4739 = vunpack.c.l.b16 %v4083
    %v4740 = vunpack.c.h.b16 %v4083
    %v4741 = vunpack.c.l.b16 %v4084
    %v4742 = vunpack.c.h.b16 %v4084
    %v4743 = vunpack.c.l.b16 %v4085
    %v4744 = vunpack.c.h.b16 %v4085
    %v4745 = vunpack.c.l.b16 %v4086
    %v4746 = vunpack.c.h.b16 %v4086
    %v4747 = vunpack.c.l.b16 %v4087
    %v4748 = vunpack.c.h.b16 %v4087
    %v4749 = vunpack.c.l.b16 %v4088
    %v4750 = vunpack.c.h.b16 %v4088
    %v4751 = vunpack.c.l.b16 %v4089
    %v4752 = vunpack.c.h.b16 %v4089
    %v4753 = vunpack.c.l.b16 %v4090
    %v4754 = vunpack.c.h.b16 %v4090
    %v4755 = vunpack.c.l.b16 %v4091
    %v4756 = vunpack.c.h.b16 %v4091
    %v4757 = vunpack.c.l.b16 %v4092
    %v4758 = vunpack.c.h.b16 %v4092
    %v4759 = vunpack.c.l.b16 %v4093
    %v4760 = vunpack.c.h.b16 %v4093
    %v4761 = vunpack.c.l.b16 %v4094
    %v4762 = vunpack.c.h.b16 %v4094
    %v4763 = vunpack.c.l.b16 %v4095
    %v4764 = vunpack.c.h.b16 %v4095
    %v4765 = vunpack.c.l.b16 %v4096
    %v4766 = vunpack.c.h.b16 %v4096
    %v4767 = vunpack.c.l.b16 %v4097
    %v4768 = vunpack.c.h.b16 %v4097
    %v4769 = vunpack.c.l.b16 %v4098
    %v4770 = vunpack.c.h.b16 %v4098
    %v4771 = vunpack.c.l.b16 %v4099
    %v4772 = vunpack.c.h.b16 %v4099
    %v4773 = vunpack.c.l.b16 %v4100
    %v4774 = vunpack.c.h.b16 %v4100
    %v4775 = vunpack.c.l.b16 %v4101
    %v4776 = vunpack.c.h.b16 %v4101
    %v4777 = vunpack.c.l.b16 %v4102
    %v4778 = vunpack.c.h.b16 %v4102
    %v4779 = vunpack.c.l.b16 %v4103
    %v4780 = vunpack.c.h.b16 %v4103
    %v4781 = vunpack.c.l.b16 %v4104
    %v4782 = vunpack.c.h.b16 %v4104
    %v4783 = vunpack.c.l.b16 %v4105
    %v4784 = vunpack.c.h.b16 %v4105
    %v4785 = vunpack.c.l.b16 %v4106
    %v4786 = vunpack.c.h.b16 %v4106
    %v4787 = vunpack.c.l.b16 %v4107
    %v4788 = vunpack.c.h.b16 %v4107
    %v4789 = vunpack.c.l.b16 %v4108
    %v4790 = vunpack.c.h.b16 %v4108
    %v4791 = vunpack.c.l.b16 %v4109
    %v4792 = vunpack.c.h.b16 %v4109
    %v4793 = vunpack.c.l.b16 %v4110
    %v4794 = vunpack.c.h.b16 %v4110
    %v4795 = vunpack.c.l.b16 %v4111
    %v4796 = vunpack.c.h.b16 %v4111
    %v4797 = vunpack.c.l.b16 %v4112
    %v4798 = vunpack.c.h.b16 %v4112
    %v4799 = vunpack.c.l.b16 %v4113
    %v4800 = vunpack.c.h.b16 %v4113
    %v4801 = vunpack.c.l.b16 %v4114
    %v4802 = vunpack.c.h.b16 %v4114
    %v4803 = vunpack.c.l.b16 %v4115
    %v4804 = vunpack.c.h.b16 %v4115
    %v4805 = vunpack.c.l.b16 %v4116
    %v4806 = vunpack.c.h.b16 %v4116
    %v4807 = vunpack.c.l.b16 %v4117
    %v4808 = vunpack.c.h.b16 %v4117
    %v4809 = vunpack.c.l.b16 %v4118
    %v4810 = vunpack.c.h.b16 %v4118
    %v4811 = vunpack.c.l.b16 %v4119
    %v4812 = vunpack.c.h.b16 %v4119
    %v4813 = vunpack.c.l.b16 %v4120
    %v4814 = vunpack.c.h.b16 %v4120
    %v4815 = vunpack.c.l.b16 %v4121
    %v4816 = vunpack.c.h.b16 %v4121
    %v4817 = vunpack.c.l.b16 %v4122
    %v4818 = vunpack.c.h.b16 %v4122
    %v4819 = vunpack.c.l.b16 %v4123
    %v4820 = vunpack.c.h.b16 %v4123
    %v4821 = vunpack.c.l.b16 %v4124
    %v4822 = vunpack.c.h.b16 %v4124
    %v4823 = vunpack.c.l.b16 %v4125
    %v4824 = vunpack.c.h.b16 %v4125
    %v4825 = vunpack.c.l.b16 %v4126
    %v4826 = vunpack.c.h.b16 %v4126
    %v4827 = vunpack.c.l.b16 %v4127
    %v4828 = vunpack.c.h.b16 %v4127
    %v4829 = vunpack.c.l.b16 %v4128
    %v4830 = vunpack.c.h.b16 %v4128
    %v4831 = vunpack.c.l.b16 %v4129
    %v4832 = vunpack.c.h.b16 %v4129
    %v4833 = vunpack.c.l.b16 %v4130
    %v4834 = vunpack.c.h.b16 %v4130
    %v4835 = vunpack.c.l.b16 %v4131
    %v4836 = vunpack.c.h.b16 %v4131
    %v4837 = vunpack.c.l.b16 %v4132
    %v4838 = vunpack.c.h.b16 %v4132
    %v4839 = vunpack.c.l.b16 %v4133
    %v4840 = vunpack.c.h.b16 %v4133
    %v4841 = vunpack.c.l.b16 %v4134
    %v4842 = vunpack.c.h.b16 %v4134
    %v4843 = vunpack.c.l.b16 %v4135
    %v4844 = vunpack.c.h.b16 %v4135
    %v4845 = vunpack.c.l.b16 %v4136
    %v4846 = vunpack.c.h.b16 %v4136
    %v4847 = vunpack.c.l.b16 %v4137
    %v4848 = vunpack.c.h.b16 %v4137
    %v4849 = vunpack.c.l.b16 %v4138
    %v4850 = vunpack.c.h.b16 %v4138
    %v4851 = vunpack.c.l.b16 %v4139
    %v4852 = vunpack.c.h.b16 %v4139
    %v4853 = vunpack.c.l.b16 %v4140
    %v4854 = vunpack.c.h.b16 %v4140
    %v4855 = vunpack.c.l.b16 %v4141
    %v4856 = vunpack.c.h.b16 %v4141
    %v4857 = vunpack.c.l.b16 %v4142
    %v4858 = vunpack.c.h.b16 %v4142
    %v4859 = vunpack.c.l.b16 %v4143
    %v4860 = vunpack.c.h.b16 %v4143
    %v4861 = vunpack.c.l.b16 %v4144
    %v4862 = vunpack.c.h.b16 %v4144
    %v4863 = vunpack.c.l.b16 %v4145
    %v4864 = vunpack.c.h.b16 %v4145
    %v4865 = vunpack.c.l.b16 %v4146
    %v4866 = vunpack.c.h.b16 %v4146
    %v4867 = vunpack.c.l.b16 %v4147
    %v4868 = vunpack.c.h.b16 %v4147
    %v4869 = vunpack.c.l.b16 %v4148
    %v4870 = vunpack.c.h.b16 %v4148
    %v4871 = vunpack.c.l.b16 %v4149
    %v4872 = vunpack.c.h.b16 %v4149
    %v4873 = vunpack.c.l.b16 %v4150
    %v4874 = vunpack.c.h.b16 %v4150
    %v4875 = vunpack.c.l.b16 %v4151
    %v4876 = vunpack.c.h.b16 %v4151
    %v4877 = vunpack.c.l.b16 %v4152
    %v4878 = vunpack.c.h.b16 %v4152
    %v4879 = vunpack.c.l.b16 %v4153
    %v4880 = vunpack.c.h.b16 %v4153
    %v4881 = vunpack.c.l.b16 %v4154
    %v4882 = vunpack.c.h.b16 %v4154
    %v4883 = vunpack.c.l.b16 %v4155
    %v4884 = vunpack.c.h.b16 %v4155
    %v4885 = vunpack.c.l.b16 %v4156
    %v4886 = vunpack.c.h.b16 %v4156
    %v4887 = vunpack.c.l.b16 %v4157
    %v4888 = vunpack.c.h.b16 %v4157
    %v4889 = vunpack.c.l.b16 %v4158
    %v4890 = vunpack.c.h.b16 %v4158
    %v4891 = vunpack.c.l.b16 %v4159
    %v4892 = vunpack.c.h.b16 %v4159
    %v4893 = vunpack.c.l.b16 %v4160
    %v4894 = vunpack.c.h.b16 %v4160
    %v4895 = vunpack.c.l.b16 %v4161
    %v4896 = vunpack.c.h.b16 %v4161
    %v4897 = vunpack.c.l.b16 %v4162
    %v4898 = vunpack.c.h.b16 %v4162
    %v4899 = vunpack.c.l.b16 %v4163
    %v4900 = vunpack.c.h.b16 %v4163
    %v4901 = vunpack.c.l.b16 %v4164
    %v4902 = vunpack.c.h.b16 %v4164
    %v4903 = vunpack.c.l.b16 %v4165
    %v4904 = vunpack.c.h.b16 %v4165
    %v4905 = vunpack.c.l.b16 %v4166
    %v4906 = vunpack.c.h.b16 %v4166
    %v4907 = vunpack.c.l.b16 %v4167
    %v4908 = vunpack.c.h.b16 %v4167
    %v4909 = vunpack.c.l.b16 %v4168
    %v4910 = vunpack.c.h.b16 %v4168
    %v4911 = vunpack.c.l.b16 %v4169
    %v4912 = vunpack.c.h.b16 %v4169
    %v4913 = vunpack.c.l.b16 %v4170
    %v4914 = vunpack.c.h.b16 %v4170
    %v4915 = vunpack.c.l.b16 %v4171
    %v4916 = vunpack.c.h.b16 %v4171
    %v4917 = vunpack.c.l.b16 %v4172
    %v4918 = vunpack.c.h.b16 %v4172
    %v4919 = vunpack.c.l.b16 %v4173
    %v4920 = vunpack.c.h.b16 %v4173
    %v4921 = vunpack.c.l.b16 %v4174
    %v4922 = vunpack.c.h.b16 %v4174
    %v4923 = vunpack.c.l.b16 %v4175
    %v4924 = vunpack.c.h.b16 %v4175
    %v4925 = vunpack.c.l.b16 %v4176
    %v4926 = vunpack.c.h.b16 %v4176
    %v4927 = vunpack.c.l.b16 %v4177
    %v4928 = vunpack.c.h.b16 %v4177
    %v4929 = vunpack.c.l.b16 %v4178
    %v4930 = vunpack.c.h.b16 %v4178
    %v4931 = vunpack.c.l.b16 %v4179
    %v4932 = vunpack.c.h.b16 %v4179
    %v4933 = vunpack.c.l.b16 %v4180
    %v4934 = vunpack.c.h.b16 %v4180
    %v4935 = vunpack.c.l.b16 %v4181
    %v4936 = vunpack.c.h.b16 %v4181
    %v4937 = vunpack.c.l.b16 %v4182
    %v4938 = vunpack.c.h.b16 %v4182
    %v4939 = vunpack.c.l.b16 %v4183
    %v4940 = vunpack.c.h.b16 %v4183
    %v4941 = vunpack.c.l.b16 %v4184
    %v4942 = vunpack.c.h.b16 %v4184
    %v4943 = vunpack.c.l.b16 %v4185
    %v4944 = vunpack.c.h.b16 %v4185
    %v4945 = vunpack.c.l.b16 %v4186
    %v4946 = vunpack.c.h.b16 %v4186
    %v4947 = vunpack.c.l.b16 %v4187
    %v4948 = vunpack.c.h.b16 %v4187
    %v4949 = vunpack.c.l.b16 %v4188
    %v4950 = vunpack.c.h.b16 %v4188
    %v4951 = vunpack.c.l.b16 %v4189
    %v4952 = vunpack.c.h.b16 %v4189
    %v4953 = vunpack.c.l.b16 %v4190
    %v4954 = vunpack.c.h.b16 %v4190
    %v4955 = vunpack.c.l.b16 %v4191
    %v4956 = vunpack.c.h.b16 %v4191
    %v4957 = vunpack.c.l.b16 %v4192
    %v4958 = vunpack.c.h.b16 %v4192
    %v4959 = vunpack.c.l.b16 %v4193
    %v4960 = vunpack.c.h.b16 %v4193
    %v4961 = vunpack.c.l.b16 %v4194
    %v4962 = vunpack.c.h.b16 %v4194
    %v4963 = vunpack.c.l.b16 %v4195
    %v4964 = vunpack.c.h.b16 %v4195
    %v4965 = vunpack.c.l.b16 %v4196
    %v4966 = vunpack.c.h.b16 %v4196
    %v4967 = vunpack.c.l.b16 %v4197
    %v4968 = vunpack.c.h.b16 %v4197
    %v4969 = vunpack.c.l.b16 %v4198
    %v4970 = vunpack.c.h.b16 %v4198
    %v4971 = vunpack.c.l.b16 %v4199
    %v4972 = vunpack.c.h.b16 %v4199
    %v4973 = vunpack.c.l.b16 %v4200
    %v4974 = vunpack.c.h.b16 %v4200
    %v4975 = vunpack.c.l.b16 %v4201
    %v4976 = vunpack.c.h.b16 %v4201
    %v4977 = vunpack.c.l.b16 %v4202
    %v4978 = vunpack.c.h.b16 %v4202
    %v4979 = vunpack.c.l.b16 %v4203
    %v4980 = vunpack.c.h.b16 %v4203
    %v4981 = vunpack.c.l.b16 %v4204
    %v4982 = vunpack.c.h.b16 %v4204
    %v4983 = vunpack.c.l.b16 %v4205
    %v4984 = vunpack.c.h.b16 %v4205
    %v4985 = vunpack.c.l.b16 %v4206
    %v4986 = vunpack.c.h.b16 %v4206
    %v4987 = vunpack.c.l.b16 %v4207
    %v4988 = vunpack.c.h.b16 %v4207
    %v4989 = vunpack.c.l.b16 %v4208
    %v4990 = vunpack.c.h.b16 %v4208
    %v4991 = vunpack.c.l.b16 %v4209
    %v4992 = vunpack.c.h.b16 %v4209
    %v4993 = vunpack.c.l.b16 %v4210
    %v4994 = vunpack.c.h.b16 %v4210
    %v4995 = vunpack.c.l.b16 %v4211
    %v4996 = vunpack.c.h.b16 %v4211
    %v4997 = vunpack.c.l.b16 %v4212
    %v4998 = vunpack.c.h.b16 %v4212
    %v4999 = vunpack.c.l.b16 %v4213
    %v5000 = vunpack.c.h.b16 %v4213
    %v5001 = vunpack.c.l.b16 %v4214
    %v5002 = vunpack.c.h.b16 %v4214
    %v5003 = vunpack.c.l.b16 %v4215
    %v5004 = vunpack.c.h.b16 %v4215
    %v5005 = vunpack.c.l.b16 %v4216
    %v5006 = vunpack.c.h.b16 %v4216
    %v5007 = vunpack.c.l.b16 %v4217
    %v5008 = vunpack.c.h.b16 %v4217
    %v5009 = vunpack.c.l.b16 %v4218
    %v5010 = vunpack.c.h.b16 %v4218
    %v5011 = vunpack.c.l.b16 %v4219
    %v5012 = vunpack.c.h.b16 %v4219
    %v5013 = vunpack.c.l.b16 %v4220
    %v5014 = vunpack.c.h.b16 %v4220
    %v5015 = vunpack.c.l.b16 %v4221
    %v5016 = vunpack.c.h.b16 %v4221
    %v5017 = vunpack.c.l.b16 %v4222
    %v5018 = vunpack.c.h.b16 %v4222
    %v5019 = vunpack.c.l.b16 %v4223
    %v5020 = vunpack.c.h.b16 %v4223
    %v5021 = vunpack.c.l.b16 %v4224
    %v5022 = vunpack.c.h.b16 %v4224
    %v5023 = vunpack.c.l.b16 %v4225
    %v5024 = vunpack.c.h.b16 %v4225
    %v5025 = vunpack.c.l.b16 %v4226
    %v5026 = vunpack.c.h.b16 %v4226
    %v5027 = vunpack.c.l.b16 %v4227
    %v5028 = vunpack.c.h.b16 %v4227
    %v5029 = vunpack.c.l.b16 %v4228
    %v5030 = vunpack.c.h.b16 %v4228
    %v5031 = vunpack.c.l.b16 %v4229
    %v5032 = vunpack.c.h.b16 %v4229
    %v5033 = vunpack.c.l.b16 %v4230
    %v5034 = vunpack.c.h.b16 %v4230
    %v5035 = vunpack.c.l.b16 %v4231
    %v5036 = vunpack.c.h.b16 %v4231
    %v5037 = vunpack.c.l.b16 %v4232
    %v5038 = vunpack.c.h.b16 %v4232
    %v5039 = vunpack.c.l.b16 %v4233
    %v5040 = vunpack.c.h.b16 %v4233
    %v5041 = vunpack.c.l.b16 %v4234
    %v5042 = vunpack.c.h.b16 %v4234
    %v5043 = vunpack.c.l.b16 %v4235
    %v5044 = vunpack.c.h.b16 %v4235
    %v5045 = vunpack.c.l.b16 %v4236
    %v5046 = vunpack.c.h.b16 %v4236
    %v5047 = vpack.c.b16 %v4543, %v4535
    %v5048 = vpack.c.b16 %v4544, %v4536
    %v5049 = vpack.c.b16 %v4545, %v4537
    %v5050 = vpack.c.b16 %v4546, %v4538
    %v5051 = vpack.c.b16 %v4547, %v4539
    %v5052 = vpack.c.b16 %v4548, %v4540
    %v5053 = vpack.c.b16 %v4549, %v4541
    %v5054 = vpack.c.b16 %v4550, %v4542
    %v5055 = vpack.c.b16 %v4559, %v4551
    %v5056 = vpack.c.b16 %v4560, %v4552
    %v5057 = vpack.c.b16 %v4561, %v4553
    %v5058 = vpack.c.b16 %v4562, %v4554
    %v5059 = vpack.c.b16 %v4563, %v4555
    %v5060 = vpack.c.b16 %v4564, %v4556
    %v5061 = vpack.c.b16 %v4565, %v4557
    %v5062 = vpack.c.b16 %v4566, %v4558
    %v5063 = vpack.c.b16 %v4575, %v4567
    %v5064 = vpack.c.b16 %v4576, %v4568
    %v5065 = vpack.c.b16 %v4577, %v4569
    %v5066 = vpack.c.b16 %v4578, %v4570
    %v5067 = vpack.c.b16 %v4579, %v4571
    %v5068 = vpack.c.b16 %v4580, %v4572
    %v5069 = vpack.c.b16 %v4581, %v4573
    %v5070 = vpack.c.b16 %v4582, %v4574
    %v5071 = vpack.c.b16 %v4591, %v4583
    %v5072 = vpack.c.b16 %v4592, %v4584
    %v5073 = vpack.c.b16 %v4593, %v4585
    %v5074 = vpack.c.b16 %v4594, %v4586
    %v5075 = vpack.c.b16 %v4595, %v4587
    %v5076 = vpack.c.b16 %v4596, %v4588
    %v5077 = vpack.c.b16 %v4597, %v4589
    %v5078 = vpack.c.b16 %v4598, %v4590
    %v5079 = vpack.c.b16 %v4607, %v4599
    %v5080 = vpack.c.b16 %v4608, %v4600
    %v5081 = vpack.c.b16 %v4609, %v4601
    %v5082 = vpack.c.b16 %v4610, %v4602
    %v5083 = vpack.c.b16 %v4611, %v4603
    %v5084 = vpack.c.b16 %v4612, %v4604
    %v5085 = vpack.c.b16 %v4613, %v4605
    %v5086 = vpack.c.b16 %v4614, %v4606
    %v5087 = vpack.c.b16 %v4623, %v4615
    %v5088 = vpack.c.b16 %v4624, %v4616
    %v5089 = vpack.c.b16 %v4625, %v4617
    %v5090 = vpack.c.b16 %v4626, %v4618
    %v5091 = vpack.c.b16 %v4627, %v4619
    %v5092 = vpack.c.b16 %v4628, %v4620
    %v5093 = vpack.c.b16 %v4629, %v4621
    %v5094 = vpack.c.b16 %v4630, %v4622
    %v5095 = vpack.c.b16 %v4639, %v4631
    %v5096 = vpack.c.b16 %v4640, %v4632
    %v5097 = vpack.c.b16 %v4641, %v4633
    %v5098 = vpack.c.b16 %v4642, %v4634
    %v5099 = vpack.c.b16 %v4643, %v4635
    %v5100 = vpack.c.b16 %v4644, %v4636
    %v5101 = vpack.c.b16 %v4645, %v4637
    %v5102 = vpack.c.b16 %v4646, %v4638
    %v5103 = vpack.c.b16 %v4655, %v4647
    %v5104 = vpack.c.b16 %v4656, %v4648
    %v5105 = vpack.c.b16 %v4657, %v4649
    %v5106 = vpack.c.b16 %v4658, %v4650
    %v5107 = vpack.c.b16 %v4659, %v4651
    %v5108 = vpack.c.b16 %v4660, %v4652
    %v5109 = vpack.c.b16 %v4661, %v4653
    %v5110 = vpack.c.b16 %v4662, %v4654
    %v5111 = vpack.c.b16 %v4671, %v4663
    %v5112 = vpack.c.b16 %v4672, %v4664
    %v5113 = vpack.c.b16 %v4673, %v4665
    %v5114 = vpack.c.b16 %v4674, %v4666
    %v5115 = vpack.c.b16 %v4675, %v4667
    %v5116 = vpack.c.b16 %v4676, %v4668
    %v5117 = vpack.c.b16 %v4677, %v4669
    %v5118 = vpack.c.b16 %v4678, %v4670
    %v5119 = vpack.c.b16 %v4687, %v4679
    %v5120 = vpack.c.b16 %v4688, %v4680
    %v5121 = vpack.c.b16 %v4689, %v4681
    %v5122 = vpack.c.b16 %v4690, %v4682
    %v5123 = vpack.c.b16 %v4691, %v4683
    %v5124 = vpack.c.b16 %v4692, %v4684
    %v5125 = vpack.c.b16 %v4693, %v4685
    %v5126 = vpack.c.b16 %v4694, %v4686
    %v5127 = vpack.c.b16 %v4703, %v4695
    %v5128 = vpack.c.b16 %v4704, %v4696
    %v5129 = vpack.c.b16 %v4705, %v4697
    %v5130 = vpack.c.b16 %v4706, %v4698
    %v5131 = vpack.c.b16 %v4707, %v4699
    %v5132 = vpack.c.b16 %v4708, %v4700
    %v5133 = vpack.c.b16 %v4709, %v4701
    %v5134 = vpack.c.b16 %v4710, %v4702
    %v5135 = vpack.c.b16 %v4719, %v4711
    %v5136 = vpack.c.b16 %v4720, %v4712
    %v5137 = vpack.c.b16 %v4721, %v4713
    %v5138 = vpack.c.b16 %v4722, %v4714
    %v5139 = vpack.c.b16 %v4723, %v4715
    %v5140 = vpack.c.b16 %v4724, %v4716
    %v5141 = vpack.c.b16 %v4725, %v4717
    %v5142 = vpack.c.b16 %v4726, %v4718
    %v5143 = vpack.c.b16 %v4735, %v4727
    %v5144 = vpack.c.b16 %v4736, %v4728
    %v5145 = vpack.c.b16 %v4737, %v4729
    %v5146 = vpack.c.b16 %v4738, %v4730
    %v5147 = vpack.c.b16 %v4739, %v4731
    %v5148 = vpack.c.b16 %v4740, %v4732
    %v5149 = vpack.c.b16 %v4741, %v4733
    %v5150 = vpack.c.b16 %v4742, %v4734
    %v5151 = vpack.c.b16 %v4751, %v4743
    %v5152 = vpack.c.b16 %v4752, %v4744
    %v5153 = vpack.c.b16 %v4753, %v4745
    %v5154 = vpack.c.b16 %v4754, %v4746
    %v5155 = vpack.c.b16 %v4755, %v4747
    %v5156 = vpack.c.b16 %v4756, %v4748
    %v5157 = vpack.c.b16 %v4757, %v4749
    %v5158 = vpack.c.b16 %v4758, %v4750
    %v5159 = vpack.c.b16 %v4767, %v4759
    %v5160 = vpack.c.b16 %v4768, %v4760
    %v5161 = vpack.c.b16 %v4769, %v4761
    %v5162 = vpack.c.b16 %v4770, %v4762
    %v5163 = vpack.c.b16 %v4771, %v4763
    %v5164 = vpack.c.b16 %v4772, %v4764
    %v5165 = vpack.c.b16 %v4773, %v4765
    %v5166 = vpack.c.b16 %v4774, %v4766
    %v5167 = vpack.c.b16 %v4783, %v4775
    %v5168 = vpack.c.b16 %v4784, %v4776
    %v5169 = vpack.c.b16 %v4785, %v4777
    %v5170 = vpack.c.b16 %v4786, %v4778
    %v5171 = vpack.c.b16 %v4787, %v4779
    %v5172 = vpack.c.b16 %v4788, %v4780
    %v5173 = vpack.c.b16 %v4789, %v4781
    %v5174 = vpack.c.b16 %v4790, %v4782
    %v5175 = vpack.c.b16 %v4799, %v4791
    %v5176 = vpack.c.b16 %v4800, %v4792
    %v5177 = vpack.c.b16 %v4801, %v4793
    %v5178 = vpack.c.b16 %v4802, %v4794
    %v5179 = vpack.c.b16 %v4803, %v4795
    %v5180 = vpack.c.b16 %v4804, %v4796
    %v5181 = vpack.c.b16 %v4805, %v4797
    %v5182 = vpack.c.b16 %v4806, %v4798
    %v5183 = vpack.c.b16 %v4815, %v4807
    %v5184 = vpack.c.b16 %v4816, %v4808
    %v5185 = vpack.c.b16 %v4817, %v4809
    %v5186 = vpack.c.b16 %v4818, %v4810
    %v5187 = vpack.c.b16 %v4819, %v4811
    %v5188 = vpack.c.b16 %v4820, %v4812
    %v5189 = vpack.c.b16 %v4821, %v4813
    %v5190 = vpack.c.b16 %v4822, %v4814
    %v5191 = vpack.c.b16 %v4831, %v4823
    %v5192 = vpack.c.b16 %v4832, %v4824
    %v5193 = vpack.c.b16 %v4833, %v4825
    %v5194 = vpack.c.b16 %v4834, %v4826
    %v5195 = vpack.c.b16 %v4835, %v4827
    %v5196 = vpack.c.b16 %v4836, %v4828
    %v5197 = vpack.c.b16 %v4837, %v4829
    %v5198 = vpack.c.b16 %v4838, %v4830
    %v5199 = vpack.c.b16 %v4847, %v4839
    %v5200 = vpack.c.b16 %v4848, %v4840
    %v5201 = vpack.c.b16 %v4849, %v4841
    %v5202 = vpack.c.b16 %v4850, %v4842
    %v5203 = vpack.c.b16 %v4851, %v4843
    %v5204 = vpack.c.b16 %v4852, %v4844
    %v5205 = vpack.c.b16 %v4853, %v4845
    %v5206 = vpack.c.b16 %v4854, %v4846
    %v5207 = vpack.c.b16 %v4863, %v4855
    %v5208 = vpack.c.b16 %v4864, %v4856
    %v5209 = vpack.c.b16 %v4865, %v4857
    %v5210 = vpack.c.b16 %v4866, %v4858
    %v5211 = vpack.c.b16 %v4867, %v4859
    %v5212 = vpack.c.b16 %v4868, %v4860
    %v5213 = vpack.c.b16 %v4869, %v4861
    %v5214 = vpack.c.b16 %v4870, %v4862
    %v5215 = vpack.c.b16 %v4879, %v4871
    %v5216 = vpack.c.b16 %v4880, %v4872
    %v5217 = vpack.c.b16 %v4881, %v4873
    %v5218 = vpack.c.b16 %v4882, %v4874
    %v5219 = vpack.c.b16 %v4883, %v4875
    %v5220 = vpack.c.b16 %v4884, %v4876
    %v5221 = vpack.c.b16 %v4885, %v4877
    %v5222 = vpack.c.b16 %v4886, %v4878
    %v5223 = vpack.c.b16 %v4895, %v4887
    %v5224 = vpack.c.b16 %v4896, %v4888
    %v5225 = vpack.c.b16 %v4897, %v4889
    %v5226 = vpack.c.b16 %v4898, %v4890
    %v5227 = vpack.c.b16 %v4899, %v4891
    %v5228 = vpack.c.b16 %v4900, %v4892
    %v5229 = vpack.c.b16 %v4901, %v4893
    %v5230 = vpack.c.b16 %v4902, %v4894
    %v5231 = vpack.c.b16 %v4911, %v4903
    %v5232 = vpack.c.b16 %v4912, %v4904
    %v5233 = vpack.c.b16 %v4913, %v4905
    %v5234 = vpack.c.b16 %v4914, %v4906
    %v5235 = vpack.c.b16 %v4915, %v4907
    %v5236 = vpack.c.b16 %v4916, %v4908
    %v5237 = vpack.c.b16 %v4917, %v4909
    %v5238 = vpack.c.b16 %v4918, %v4910
    %v5239 = vpack.c.b16 %v4927, %v4919
    %v5240 = vpack.c.b16 %v4928, %v4920
    %v5241 = vpack.c.b16 %v4929, %v4921
    %v5242 = vpack.c.b16 %v4930, %v4922
    %v5243 = vpack.c.b16 %v4931, %v4923
    %v5244 = vpack.c.b16 %v4932, %v4924
    %v5245 = vpack.c.b16 %v4933, %v4925
    %v5246 = vpack.c.b16 %v4934, %v4926
    %v5247 = vpack.c.b16 %v4943, %v4935
    %v5248 = vpack.c.b16 %v4944, %v4936
    %v5249 = vpack.c.b16 %v4945, %v4937
    %v5250 = vpack.c.b16 %v4946, %v4938
    %v5251 = vpack.c.b16 %v4947, %v4939
    %v5252 = vpack.c.b16 %v4948, %v4940
    %v5253 = vpack.c.b16 %v4949, %v4941
    %v5254 = vpack.c.b16 %v4950, %v4942
    %v5255 = vpack.c.b16 %v4959, %v4951
    %v5256 = vpack.c.b16 %v4960, %v4952
    %v5257 = vpack.c.b16 %v4961, %v4953
    %v5258 = vpack.c.b16 %v4962, %v4954
    %v5259 = vpack.c.b16 %v4963, %v4955
    %v5260 = vpack.c.b16 %v4964, %v4956
    %v5261 = vpack.c.b16 %v4965, %v4957
    %v5262 = vpack.c.b16 %v4966, %v4958
    %v5263 = vpack.c.b16 %v4975, %v4967
    %v5264 = vpack.c.b16 %v4976, %v4968
    %v5265 = vpack.c.b16 %v4977, %v4969
    %v5266 = vpack.c.b16 %v4978, %v4970
    %v5267 = vpack.c.b16 %v4979, %v4971
    %v5268 = vpack.c.b16 %v4980, %v4972
    %v5269 = vpack.c.b16 %v4981, %v4973
    %v5270 = vpack.c.b16 %v4982, %v4974
    %v5271 = vpack.c.b16 %v4991, %v4983
    %v5272 = vpack.c.b16 %v4992, %v4984
    %v5273 = vpack.c.b16 %v4993, %v4985
    %v5274 = vpack.c.b16 %v4994, %v4986
    %v5275 = vpack.c.b16 %v4995, %v4987
    %v5276 = vpack.c.b16 %v4996, %v4988
    %v5277 = vpack.c.b16 %v4997, %v4989
    %v5278 = vpack.c.b16 %v4998, %v4990
    %v5279 = vpack.c.b16 %v5007, %v4999
    %v5280 = vpack.c.b16 %v5008, %v5000
    %v5281 = vpack.c.b16 %v5009, %v5001
    %v5282 = vpack.c.b16 %v5010, %v5002
    %v5283 = vpack.c.b16 %v5011, %v5003
    %v5284 = vpack.c.b16 %v5012, %v5004
    %v5285 = vpack.c.b16 %v5013, %v5005
    %v5286 = vpack.c.b16 %v5014, %v5006
    %v5287 = vpack.c.b16 %v5023, %v5015
    %v5288 = vpack.c.b16 %v5024, %v5016
    %v5289 = vpack.c.b16 %v5025, %v5017
    %v5290 = vpack.c.b16 %v5026, %v5018
    %v5291 = vpack.c.b16 %v5027, %v5019
    %v5292 = vpack.c.b16 %v5028, %v5020
    %v5293 = vpack.c.b16 %v5029, %v5021
    %v5294 = vpack.c.b16 %v5030, %v5022
    %v5295 = vpack.c.b16 %v5039, %v5031
    %v5296 = vpack.c.b16 %v5040, %v5032
    %v5297 = vpack.c.b16 %v5041, %v5033
    %v5298 = vpack.c.b16 %v5042, %v5034
    %v5299 = vpack.c.b16 %v5043, %v5035
    %v5300 = vpack.c.b16 %v5044, %v5036
    %v5301 = vpack.c.b16 %v5045, %v5037
    %v5302 = vpack.c.b16 %v5046, %v5038
    %5559 = vmatprep.subr.bf16.mxu0 %v5048
    %5560 = vmatpush1.bf16.msra.mxu0 %v5047
    %5561 = vmatprep.subr.bf16.mxu0 %v5056
    %5562 = vmatpush1.bf16.msra.mxu0 %v5055
    %5563 = vmatprep.subr.bf16.mxu0 %v5064
    %5564 = vmatpush1.bf16.msra.mxu0 %v5063
    %5565 = vmatprep.subr.bf16.mxu0 %v5072
    %5566 = vmatpush1.bf16.msra.mxu0 %v5071
    %5567 = vmatprep.subr.bf16.mxu0 %v5080
    %5568 = vmatpush1.bf16.msra.mxu0 %v5079
    %5569 = vmatprep.subr.bf16.mxu0 %v5088
    %5570 = vmatpush1.bf16.msra.mxu0 %v5087
    %5571 = vmatprep.subr.bf16.mxu0 %v5096
    %5572 = vmatpush1.bf16.msra.mxu0 %v5095
    %5573 = vmatprep.subr.bf16.mxu0 %v5104
    %5574 = vmatpush1.bf16.msra.mxu0 %v5103
    %5575 = vmatprep.subr.bf16.mxu0 %v5112
    %5576 = vmatpush1.bf16.msra.mxu0 %v5111
    %5577 = vmatprep.subr.bf16.mxu0 %v5120
    %5578 = vmatpush1.bf16.msra.mxu0 %v5119
    %5579 = vmatprep.subr.bf16.mxu0 %v5128
    %5580 = vmatpush1.bf16.msra.mxu0 %v5127
    %5581 = vmatprep.subr.bf16.mxu0 %v5136
    %5582 = vmatpush1.bf16.msra.mxu0 %v5135
    %5583 = vmatprep.subr.bf16.mxu0 %v5144
    %5584 = vmatpush1.bf16.msra.mxu0 %v5143
    %5585 = vmatprep.subr.bf16.mxu0 %v5152
    %5586 = vmatpush1.bf16.msra.mxu0 %v5151
    %5587 = vmatprep.subr.bf16.mxu0 %v5160
    %5588 = vmatpush1.bf16.msra.mxu0 %v5159
    %5589 = vmatprep.subr.bf16.mxu0 %v5168
    %5590 = vmatpush1.bf16.msra.mxu0 %v5167
    %5591 = vmatprep.mubr.bf16.mxu0 %v3978
    %5592 = vmatmul.mubr.bf16.gmra.mrb[0].mxu0 %v3977
    %v5593 = vpop.f32.mrb[0].mxu0
    %v5594 = vadd.f32 %v4242, %v5593
    %v5595 = vpop.f32.mrb[0].mxu0
    %v5596 = vadd.f32 %v4246, %v5595
    %v5597 = vpop.f32.mrb[0].mxu0
    %v5598 = vpop.f32.mrb[0].mxu0
    %5599 = vdwg.mxu0
    %5600 = vmatprep.subr.bf16.mxu0 %v5176
    %5601 = vmatpush1.bf16.msra.mxu0 %v5175
    %5602 = vmatprep.subr.bf16.mxu0 %v5184
    %5603 = vmatpush1.bf16.msra.mxu0 %v5183
    %5604 = vmatprep.subr.bf16.mxu0 %v5192
    %5605 = vmatpush1.bf16.msra.mxu0 %v5191
    %5606 = vmatprep.subr.bf16.mxu0 %v5200
    %5607 = vmatpush1.bf16.msra.mxu0 %v5199
    %5608 = vmatprep.subr.bf16.mxu0 %v5208
    %5609 = vmatpush1.bf16.msra.mxu0 %v5207
    %5610 = vmatprep.subr.bf16.mxu0 %v5216
    %5611 = vmatpush1.bf16.msra.mxu0 %v5215
    %5612 = vmatprep.subr.bf16.mxu0 %v5224
    %5613 = vmatpush1.bf16.msra.mxu0 %v5223
    %5614 = vmatprep.subr.bf16.mxu0 %v5232
    %5615 = vmatpush1.bf16.msra.mxu0 %v5231
    %5616 = vmatprep.subr.bf16.mxu0 %v5240
    %5617 = vmatpush1.bf16.msra.mxu0 %v5239
    %5618 = vmatprep.subr.bf16.mxu0 %v5248
    %5619 = vmatpush1.bf16.msra.mxu0 %v5247
    %5620 = vmatprep.subr.bf16.mxu0 %v5256
    %5621 = vmatpush1.bf16.msra.mxu0 %v5255
    %5622 = vmatprep.subr.bf16.mxu0 %v5264
    %5623 = vmatpush1.bf16.msra.mxu0 %v5263
    %5624 = vmatprep.subr.bf16.mxu0 %v5272
    %5625 = vmatpush1.bf16.msra.mxu0 %v5271
    %5626 = vmatprep.subr.bf16.mxu0 %v5280
    %5627 = vmatpush1.bf16.msra.mxu0 %v5279
    %5628 = vmatprep.subr.bf16.mxu0 %v5288
    %5629 = vmatpush1.bf16.msra.mxu0 %v5287
    %5630 = vmatprep.subr.bf16.mxu0 %v5296
    %5631 = vmatpush1.bf16.msra.mxu0 %v5295
    %5632 = vmatprep.mubr.bf16.mxu0 %v3980
    %5633 = vmatmul.mubr.bf16.gmra.mrb[0].mxu0 %v3979
    %v5634 = vpop.f32.mrb[0].mxu0
    %v5635 = vadd.f32 %v5594, %v5634
    %v5636 = vpop.f32.mrb[0].mxu0
    %v5637 = vadd.f32 %v5596, %v5636
    %v5638 = vpop.f32.mrb[0].mxu0
    %v5639 = vpop.f32.mrb[0].mxu0
    %5640 = vdwg.mxu0
    %5641 = vmatprep.subr.bf16.mxu0 %v5050
    %5642 = vmatpush1.bf16.msra.mxu0 %v5049
    %5643 = vmatprep.subr.bf16.mxu0 %v5058
    %5644 = vmatpush1.bf16.msra.mxu0 %v5057
    %5645 = vmatprep.subr.bf16.mxu0 %v5066
    %5646 = vmatpush1.bf16.msra.mxu0 %v5065
    %5647 = vmatprep.subr.bf16.mxu0 %v5074
    %5648 = vmatpush1.bf16.msra.mxu0 %v5073
    %5649 = vmatprep.subr.bf16.mxu0 %v5082
    %5650 = vmatpush1.bf16.msra.mxu0 %v5081
    %5651 = vmatprep.subr.bf16.mxu0 %v5090
    %5652 = vmatpush1.bf16.msra.mxu0 %v5089
    %5653 = vmatprep.subr.bf16.mxu0 %v5098
    %5654 = vmatpush1.bf16.msra.mxu0 %v5097
    %5655 = vmatprep.subr.bf16.mxu0 %v5106
    %5656 = vmatpush1.bf16.msra.mxu0 %v5105
    %5657 = vmatprep.subr.bf16.mxu0 %v5114
    %5658 = vmatpush1.bf16.msra.mxu0 %v5113
    %5659 = vmatprep.subr.bf16.mxu0 %v5122
    %5660 = vmatpush1.bf16.msra.mxu0 %v5121
    %5661 = vmatprep.subr.bf16.mxu0 %v5130
    %5662 = vmatpush1.bf16.msra.mxu0 %v5129
    %5663 = vmatprep.subr.bf16.mxu0 %v5138
    %5664 = vmatpush1.bf16.msra.mxu0 %v5137
    %5665 = vmatprep.subr.bf16.mxu0 %v5146
    %5666 = vmatpush1.bf16.msra.mxu0 %v5145
    %5667 = vmatprep.subr.bf16.mxu0 %v5154
    %5668 = vmatpush1.bf16.msra.mxu0 %v5153
    %5669 = vmatprep.subr.bf16.mxu0 %v5162
    %5670 = vmatpush1.bf16.msra.mxu0 %v5161
    %5671 = vmatprep.subr.bf16.mxu0 %v5170
    %5672 = vmatpush1.bf16.msra.mxu0 %v5169
    %5673 = vmatprep.mubr.bf16.mxu0 %v3978
    %5674 = vmatmul.mubr.bf16.gmra.mrb[0].mxu0 %v3977
    %v5675 = vpop.f32.mrb[0].mxu0
    %v5676 = vadd.f32 %v4250, %v5675
    %v5677 = vpop.f32.mrb[0].mxu0
    %v5678 = vadd.f32 %v4254, %v5677
    %v5679 = vpop.f32.mrb[0].mxu0
    %v5680 = vpop.f32.mrb[0].mxu0
    %5681 = vdwg.mxu0
    %5682 = vmatprep.subr.bf16.mxu0 %v5178
    %5683 = vmatpush1.bf16.msra.mxu0 %v5177
    %5684 = vmatprep.subr.bf16.mxu0 %v5186
    %5685 = vmatpush1.bf16.msra.mxu0 %v5185
    %5686 = vmatprep.subr.bf16.mxu0 %v5194
    %5687 = vmatpush1.bf16.msra.mxu0 %v5193
    %5688 = vmatprep.subr.bf16.mxu0 %v5202
    %5689 = vmatpush1.bf16.msra.mxu0 %v5201
    %5690 = vmatprep.subr.bf16.mxu0 %v5210
    %5691 = vmatpush1.bf16.msra.mxu0 %v5209
    %5692 = vmatprep.subr.bf16.mxu0 %v5218
    %5693 = vmatpush1.bf16.msra.mxu0 %v5217
    %5694 = vmatprep.subr.bf16.mxu0 %v5226
    %5695 = vmatpush1.bf16.msra.mxu0 %v5225
    %5696 = vmatprep.subr.bf16.mxu0 %v5234
    %5697 = vmatpush1.bf16.msra.mxu0 %v5233
    %5698 = vmatprep.subr.bf16.mxu0 %v5242
    %5699 = vmatpush1.bf16.msra.mxu0 %v5241
    %5700 = vmatprep.subr.bf16.mxu0 %v5250
    %5701 = vmatpush1.bf16.msra.mxu0 %v5249
    %5702 = vmatprep.subr.bf16.mxu0 %v5258
    %5703 = vmatpush1.bf16.msra.mxu0 %v5257
    %5704 = vmatprep.subr.bf16.mxu0 %v5266
    %5705 = vmatpush1.bf16.msra.mxu0 %v5265
    %5706 = vmatprep.subr.bf16.mxu0 %v5274
    %5707 = vmatpush1.bf16.msra.mxu0 %v5273
    %5708 = vmatprep.subr.bf16.mxu0 %v5282
    %5709 = vmatpush1.bf16.msra.mxu0 %v5281
    %5710 = vmatprep.subr.bf16.mxu0 %v5290
    %5711 = vmatpush1.bf16.msra.mxu0 %v5289
    %5712 = vmatprep.subr.bf16.mxu0 %v5298
    %5713 = vmatpush1.bf16.msra.mxu0 %v5297
    %5714 = vmatprep.mubr.bf16.mxu0 %v3980
    %5715 = vmatmul.mubr.bf16.gmra.mrb[0].mxu0 %v3979
    %v5716 = vpop.f32.mrb[0].mxu0
    %v5717 = vadd.f32 %v5676, %v5716
    %v5718 = vpop.f32.mrb[0].mxu0
    %v5719 = vadd.f32 %v5678, %v5718
    %v5720 = vpop.f32.mrb[0].mxu0
    %v5721 = vpop.f32.mrb[0].mxu0
    %5722 = vdwg.mxu0
    %5723 = vmatprep.subr.bf16.mxu0 %v5052
    %5724 = vmatpush1.bf16.msra.mxu0 %v5051
    %5725 = vmatprep.subr.bf16.mxu0 %v5060
    %5726 = vmatpush1.bf16.msra.mxu0 %v5059
    %5727 = vmatprep.subr.bf16.mxu0 %v5068
    %5728 = vmatpush1.bf16.msra.mxu0 %v5067
    %5729 = vmatprep.subr.bf16.mxu0 %v5076
    %5730 = vmatpush1.bf16.msra.mxu0 %v5075
    %5731 = vmatprep.subr.bf16.mxu0 %v5084
    %5732 = vmatpush1.bf16.msra.mxu0 %v5083
    %5733 = vmatprep.subr.bf16.mxu0 %v5092
    %5734 = vmatpush1.bf16.msra.mxu0 %v5091
    %5735 = vmatprep.subr.bf16.mxu0 %v5100
    %5736 = vmatpush1.bf16.msra.mxu0 %v5099
    %5737 = vmatprep.subr.bf16.mxu0 %v5108
    %5738 = vmatpush1.bf16.msra.mxu0 %v5107
    %5739 = vmatprep.subr.bf16.mxu0 %v5116
    %5740 = vmatpush1.bf16.msra.mxu0 %v5115
    %5741 = vmatprep.subr.bf16.mxu0 %v5124
    %5742 = vmatpush1.bf16.msra.mxu0 %v5123
    %5743 = vmatprep.subr.bf16.mxu0 %v5132
    %5744 = vmatpush1.bf16.msra.mxu0 %v5131
    %5745 = vmatprep.subr.bf16.mxu0 %v5140
    %5746 = vmatpush1.bf16.msra.mxu0 %v5139
    %5747 = vmatprep.subr.bf16.mxu0 %v5148
    %5748 = vmatpush1.bf16.msra.mxu0 %v5147
    %5749 = vmatprep.subr.bf16.mxu0 %v5156
    %5750 = vmatpush1.bf16.msra.mxu0 %v5155
    %5751 = vmatprep.subr.bf16.mxu0 %v5164
    %5752 = vmatpush1.bf16.msra.mxu0 %v5163
    %5753 = vmatprep.subr.bf16.mxu0 %v5172
    %5754 = vmatpush1.bf16.msra.mxu0 %v5171
    %5755 = vmatprep.mubr.bf16.mxu0 %v3978
    %5756 = vmatmul.mubr.bf16.gmra.mrb[0].mxu0 %v3977
    %v5757 = vpop.f32.mrb[0].mxu0
    %v5758 = vadd.f32 %v4258, %v5757
    %v5759 = vpop.f32.mrb[0].mxu0
    %v5760 = vadd.f32 %v4262, %v5759
    %v5761 = vpop.f32.mrb[0].mxu0
    %v5762 = vpop.f32.mrb[0].mxu0
    %5763 = vdwg.mxu0
    %5764 = vmatprep.subr.bf16.mxu0 %v5180
    %5765 = vmatpush1.bf16.msra.mxu0 %v5179
    %5766 = vmatprep.subr.bf16.mxu0 %v5188
    %5767 = vmatpush1.bf16.msra.mxu0 %v5187
    %5768 = vmatprep.subr.bf16.mxu0 %v5196
    %5769 = vmatpush1.bf16.msra.mxu0 %v5195
    %5770 = vmatprep.subr.bf16.mxu0 %v5204
    %5771 = vmatpush1.bf16.msra.mxu0 %v5203
    %5772 = vmatprep.subr.bf16.mxu0 %v5212
    %5773 = vmatpush1.bf16.msra.mxu0 %v5211
    %5774 = vmatprep.subr.bf16.mxu0 %v5220
    %5775 = vmatpush1.bf16.msra.mxu0 %v5219
    %5776 = vmatprep.subr.bf16.mxu0 %v5228
    %5777 = vmatpush1.bf16.msra.mxu0 %v5227
    %5778 = vmatprep.subr.bf16.mxu0 %v5236
    %5779 = vmatpush1.bf16.msra.mxu0 %v5235
    %5780 = vmatprep.subr.bf16.mxu0 %v5244
    %5781 = vmatpush1.bf16.msra.mxu0 %v5243
    %5782 = vmatprep.subr.bf16.mxu0 %v5252
    %5783 = vmatpush1.bf16.msra.mxu0 %v5251
    %5784 = vmatprep.subr.bf16.mxu0 %v5260
    %5785 = vmatpush1.bf16.msra.mxu0 %v5259
    %5786 = vmatprep.subr.bf16.mxu0 %v5268
    %5787 = vmatpush1.bf16.msra.mxu0 %v5267
    %5788 = vmatprep.subr.bf16.mxu0 %v5276
    %5789 = vmatpush1.bf16.msra.mxu0 %v5275
    %5790 = vmatprep.subr.bf16.mxu0 %v5284
    %5791 = vmatpush1.bf16.msra.mxu0 %v5283
    %5792 = vmatprep.subr.bf16.mxu0 %v5292
    %5793 = vmatpush1.bf16.msra.mxu0 %v5291
    %5794 = vmatprep.subr.bf16.mxu0 %v5300
    %5795 = vmatpush1.bf16.msra.mxu0 %v5299
    %5796 = vmatprep.mubr.bf16.mxu0 %v3980
    %5797 = vmatmul.mubr.bf16.gmra.mrb[0].mxu0 %v3979
    %v5798 = vpop.f32.mrb[0].mxu0
    %v5799 = vadd.f32 %v5758, %v5798
    %v5800 = vpop.f32.mrb[0].mxu0
    %v5801 = vadd.f32 %v5760, %v5800
    %v5802 = vpop.f32.mrb[0].mxu0
    %v5803 = vpop.f32.mrb[0].mxu0
    %5804 = vdwg.mxu0
    %5805 = vmatprep.subr.bf16.mxu0 %v5054
    %5806 = vmatpush1.bf16.msra.mxu0 %v5053
    %5807 = vmatprep.subr.bf16.mxu0 %v5062
    %5808 = vmatpush1.bf16.msra.mxu0 %v5061
    %5809 = vmatprep.subr.bf16.mxu0 %v5070
    %5810 = vmatpush1.bf16.msra.mxu0 %v5069
    %5811 = vmatprep.subr.bf16.mxu0 %v5078
    %5812 = vmatpush1.bf16.msra.mxu0 %v5077
    %5813 = vmatprep.subr.bf16.mxu0 %v5086
    %5814 = vmatpush1.bf16.msra.mxu0 %v5085
    %5815 = vmatprep.subr.bf16.mxu0 %v5094
    %5816 = vmatpush1.bf16.msra.mxu0 %v5093
    %5817 = vmatprep.subr.bf16.mxu0 %v5102
    %5818 = vmatpush1.bf16.msra.mxu0 %v5101
    %5819 = vmatprep.subr.bf16.mxu0 %v5110
    %5820 = vmatpush1.bf16.msra.mxu0 %v5109
    %5821 = vmatprep.subr.bf16.mxu0 %v5118
    %5822 = vmatpush1.bf16.msra.mxu0 %v5117
    %5823 = vmatprep.subr.bf16.mxu0 %v5126
    %5824 = vmatpush1.bf16.msra.mxu0 %v5125
    %5825 = vmatprep.subr.bf16.mxu0 %v5134
    %5826 = vmatpush1.bf16.msra.mxu0 %v5133
    %5827 = vmatprep.subr.bf16.mxu0 %v5142
    %5828 = vmatpush1.bf16.msra.mxu0 %v5141
    %5829 = vmatprep.subr.bf16.mxu0 %v5150
    %5830 = vmatpush1.bf16.msra.mxu0 %v5149
    %5831 = vmatprep.subr.bf16.mxu0 %v5158
    %5832 = vmatpush1.bf16.msra.mxu0 %v5157
    %5833 = vmatprep.subr.bf16.mxu0 %v5166
    %5834 = vmatpush1.bf16.msra.mxu0 %v5165
    %5835 = vmatprep.subr.bf16.mxu0 %v5174
    %5836 = vmatpush1.bf16.msra.mxu0 %v5173
    %5837 = vmatprep.mubr.bf16.mxu0 %v3978
    %5838 = vmatmul.mubr.bf16.gmra.mrb[0].mxu0 %v3977
    %v5839 = vpop.f32.mrb[0].mxu0
    %v5840 = vadd.f32 %v4266, %v5839
    %v5841 = vpop.f32.mrb[0].mxu0
    %v5842 = vadd.f32 %v4270, %v5841
    %v5843 = vpop.f32.mrb[0].mxu0
    %v5844 = vpop.f32.mrb[0].mxu0
    %5845 = vdwg.mxu0
    %5846 = vmatprep.subr.bf16.mxu0 %v5182
    %5847 = vmatpush1.bf16.msra.mxu0 %v5181
    %5848 = vmatprep.subr.bf16.mxu0 %v5190
    %5849 = vmatpush1.bf16.msra.mxu0 %v5189
    %5850 = vmatprep.subr.bf16.mxu0 %v5198
    %5851 = vmatpush1.bf16.msra.mxu0 %v5197
    %5852 = vmatprep.subr.bf16.mxu0 %v5206
    %5853 = vmatpush1.bf16.msra.mxu0 %v5205
    %5854 = vmatprep.subr.bf16.mxu0 %v5214
    %5855 = vmatpush1.bf16.msra.mxu0 %v5213
    %5856 = vmatprep.subr.bf16.mxu0 %v5222
    %5857 = vmatpush1.bf16.msra.mxu0 %v5221
    %5858 = vmatprep.subr.bf16.mxu0 %v5230
    %5859 = vmatpush1.bf16.msra.mxu0 %v5229
    %5860 = vmatprep.subr.bf16.mxu0 %v5238
    %5861 = vmatpush1.bf16.msra.mxu0 %v5237
    %5862 = vmatprep.subr.bf16.mxu0 %v5246
    %5863 = vmatpush1.bf16.msra.mxu0 %v5245
    %5864 = vmatprep.subr.bf16.mxu0 %v5254
    %5865 = vmatpush1.bf16.msra.mxu0 %v5253
    %5866 = vmatprep.subr.bf16.mxu0 %v5262
    %5867 = vmatpush1.bf16.msra.mxu0 %v5261
    %5868 = vmatprep.subr.bf16.mxu0 %v5270
    %5869 = vmatpush1.bf16.msra.mxu0 %v5269
    %5870 = vmatprep.subr.bf16.mxu0 %v5278
    %5871 = vmatpush1.bf16.msra.mxu0 %v5277
    %5872 = vmatprep.subr.bf16.mxu0 %v5286
    %5873 = vmatpush1.bf16.msra.mxu0 %v5285
    %5874 = vmatprep.subr.bf16.mxu0 %v5294
    %5875 = vmatpush1.bf16.msra.mxu0 %v5293
    %5876 = vmatprep.subr.bf16.mxu0 %v5302
    %5877 = vmatpush1.bf16.msra.mxu0 %v5301
    %5878 = vmatprep.mubr.bf16.mxu0 %v3980
    %5879 = vmatmul.mubr.bf16.gmra.mrb[0].mxu0 %v3979
    %v5880 = vpop.f32.mrb[0].mxu0
    %v5881 = vadd.f32 %v5840, %v5880
    %v5882 = vpop.f32.mrb[0].mxu0
    %v5883 = vadd.f32 %v5842, %v5882
    %v5884 = vpop.f32.mrb[0].mxu0
    %v5885 = vpop.f32.mrb[0].mxu0
    %5886 = vdwg.mxu0
    %v5887 = vmax.f32 %v5635, 0.0
    %v5888 = vmax.f32 %v5637, 0.0
    %v5889 = vmax.f32 %v5717, 0.0
    %v5890 = vmax.f32 %v5719, 0.0
    %v5891 = vmax.f32 %v5799, 0.0
    %v5892 = vmax.f32 %v5801, 0.0
    %v5893 = vmax.f32 %v5881, 0.0
    %v5894 = vmax.f32 %v5883, 0.0
    %v5895 = vpack.c.bf16 %v5887, %v5887
    %v5896 = vpack.c.bf16 %v5888, %v5888
    %v5897 = vpack.c.bf16 %v5889, %v5889
    %v5898 = vpack.c.bf16 %v5890, %v5890
    %v5899 = vpack.c.bf16 %v5891, %v5891
    %v5900 = vpack.c.bf16 %v5892, %v5892
    %v5901 = vpack.c.bf16 %v5893, %v5893
    %v5902 = vpack.c.bf16 %v5894, %v5894
    %v5903 = vld [vmem:[#allocation13] sm:$0xf]
    %v5904 = vld [vmem:[#allocation13 + $0x4] sm:$0xf]
    %v5905 = vld [vmem:[#allocation13 + $0x8] sm:$0xf]
    %v5906 = vld [vmem:[#allocation13 + $0xc] sm:$0xf]
    %v5907 = vld [vmem:[#allocation13 + $0x10] sm:$0xf]
    %v5908 = vld [vmem:[#allocation13 + $0x14] sm:$0xf]
    %v5909 = vld [vmem:[#allocation13 + $0x18] sm:$0xf]
    %v5910 = vld [vmem:[#allocation13 + $0x1c] sm:$0xf]
    %v5911 = vld [vmem:[#allocation13 + $0x20] sm:$0xf]
    %v5912 = vld [vmem:[#allocation13 + $0x24] sm:$0xf]
    %v5913 = vld [vmem:[#allocation13 + $0x28] sm:$0xf]
    %v5914 = vld [vmem:[#allocation13 + $0x2c] sm:$0xf]
    %v5915 = vld [vmem:[#allocation13 + $0x30] sm:$0xf]
    %v5916 = vld [vmem:[#allocation13 + $0x34] sm:$0xf]
    %v5917 = vld [vmem:[#allocation13 + $0x38] sm:$0xf]
    %v5918 = vld [vmem:[#allocation13 + $0x3c] sm:$0xf]
    %v5919 = vld [vmem:[#allocation13 + $0x40] sm:$0xf]
    %v5920 = vld [vmem:[#allocation13 + $0x44] sm:$0xf]
    %v5921 = vld [vmem:[#allocation13 + $0x48] sm:$0xf]
    %v5922 = vld [vmem:[#allocation13 + $0x4c] sm:$0xf]
    %v5923 = vld [vmem:[#allocation13 + $0x50] sm:$0xf]
    %v5924 = vld [vmem:[#allocation13 + $0x54] sm:$0xf]
    %v5925 = vld [vmem:[#allocation13 + $0x58] sm:$0xf]
    %v5926 = vld [vmem:[#allocation13 + $0x5c] sm:$0xf]
    %v5927 = vld [vmem:[#allocation13 + $0x60] sm:$0xf]
    %v5928 = vld [vmem:[#allocation13 + $0x64] sm:$0xf]
    %v5929 = vld [vmem:[#allocation13 + $0x68] sm:$0xf]
    %v5930 = vld [vmem:[#allocation13 + $0x6c] sm:$0xf]
    %v5931 = vld [vmem:[#allocation13 + $0x70] sm:$0xf]
    %v5932 = vld [vmem:[#allocation13 + $0x74] sm:$0xf]
    %v5933 = vld [vmem:[#allocation13 + $0x78] sm:$0xf]
    %v5934 = vld [vmem:[#allocation13 + $0x7c] sm:$0xf]
    %v5935 = vld [vmem:[#allocation13 + $0x80] sm:$0xf]
    %v5936 = vld [vmem:[#allocation13 + $0x84] sm:$0xf]
    %v5937 = vld [vmem:[#allocation13 + $0x88] sm:$0xf]
    %v5938 = vld [vmem:[#allocation13 + $0x8c] sm:$0xf]
    %v5939 = vld [vmem:[#allocation13 + $0x90] sm:$0xf]
    %v5940 = vld [vmem:[#allocation13 + $0x94] sm:$0xf]
    %v5941 = vld [vmem:[#allocation13 + $0x98] sm:$0xf]
    %v5942 = vld [vmem:[#allocation13 + $0x9c] sm:$0xf]
    %v5943 = vld [vmem:[#allocation13 + $0xa0] sm:$0xf]
    %v5944 = vld [vmem:[#allocation13 + $0xa4] sm:$0xf]
    %v5945 = vld [vmem:[#allocation13 + $0xa8] sm:$0xf]
    %v5946 = vld [vmem:[#allocation13 + $0xac] sm:$0xf]
    %v5947 = vld [vmem:[#allocation13 + $0xb0] sm:$0xf]
    %v5948 = vld [vmem:[#allocation13 + $0xb4] sm:$0xf]
    %v5949 = vld [vmem:[#allocation13 + $0xb8] sm:$0xf]
    %v5950 = vld [vmem:[#allocation13 + $0xbc] sm:$0xf]
    %v5951 = vld [vmem:[#allocation13 + $0xc0] sm:$0xf]
    %v5952 = vld [vmem:[#allocation13 + $0xc4] sm:$0xf]
    %v5953 = vld [vmem:[#allocation13 + $0xc8] sm:$0xf]
    %v5954 = vld [vmem:[#allocation13 + $0xcc] sm:$0xf]
    %v5955 = vld [vmem:[#allocation13 + $0xd0] sm:$0xf]
    %v5956 = vld [vmem:[#allocation13 + $0xd4] sm:$0xf]
    %v5957 = vld [vmem:[#allocation13 + $0xd8] sm:$0xf]
    %v5958 = vld [vmem:[#allocation13 + $0xdc] sm:$0xf]
    %v5959 = vld [vmem:[#allocation13 + $0xe0] sm:$0xf]
    %v5960 = vld [vmem:[#allocation13 + $0xe4] sm:$0xf]
    %v5961 = vld [vmem:[#allocation13 + $0xe8] sm:$0xf]
    %v5962 = vld [vmem:[#allocation13 + $0xec] sm:$0xf]
    %v5963 = vld [vmem:[#allocation13 + $0xf0] sm:$0xf]
    %v5964 = vld [vmem:[#allocation13 + $0xf4] sm:$0xf]
    %v5965 = vld [vmem:[#allocation13 + $0xf8] sm:$0xf]
    %v5966 = vld [vmem:[#allocation13 + $0xfc] sm:$0xf]
    %v5967 = vld [vmem:[#allocation13 + $0x100] sm:$0xf]
    %v5968 = vld [vmem:[#allocation13 + $0x104] sm:$0xf]
    %v5969 = vld [vmem:[#allocation13 + $0x108] sm:$0xf]
    %v5970 = vld [vmem:[#allocation13 + $0x10c] sm:$0xf]
    %v5971 = vld [vmem:[#allocation13 + $0x110] sm:$0xf]
    %v5972 = vld [vmem:[#allocation13 + $0x114] sm:$0xf]
    %v5973 = vld [vmem:[#allocation13 + $0x118] sm:$0xf]
    %v5974 = vld [vmem:[#allocation13 + $0x11c] sm:$0xf]
    %v5975 = vld [vmem:[#allocation13 + $0x120] sm:$0xf]
    %v5976 = vld [vmem:[#allocation13 + $0x124] sm:$0xf]
    %v5977 = vld [vmem:[#allocation13 + $0x128] sm:$0xf]
    %v5978 = vld [vmem:[#allocation13 + $0x12c] sm:$0xf]
    %v5979 = vld [vmem:[#allocation13 + $0x130] sm:$0xf]
    %v5980 = vld [vmem:[#allocation13 + $0x134] sm:$0xf]
    %v5981 = vld [vmem:[#allocation13 + $0x138] sm:$0xf]
    %v5982 = vld [vmem:[#allocation13 + $0x13c] sm:$0xf]
    %v5983 = vld [vmem:[#allocation13 + $0x140] sm:$0xf]
    %v5984 = vld [vmem:[#allocation13 + $0x144] sm:$0xf]
    %v5985 = vld [vmem:[#allocation13 + $0x148] sm:$0xf]
    %v5986 = vld [vmem:[#allocation13 + $0x14c] sm:$0xf]
    %v5987 = vld [vmem:[#allocation13 + $0x150] sm:$0xf]
    %v5988 = vld [vmem:[#allocation13 + $0x154] sm:$0xf]
    %v5989 = vld [vmem:[#allocation13 + $0x158] sm:$0xf]
    %v5990 = vld [vmem:[#allocation13 + $0x15c] sm:$0xf]
    %v5991 = vld [vmem:[#allocation13 + $0x160] sm:$0xf]
    %v5992 = vld [vmem:[#allocation13 + $0x164] sm:$0xf]
    %v5993 = vld [vmem:[#allocation13 + $0x168] sm:$0xf]
    %v5994 = vld [vmem:[#allocation13 + $0x16c] sm:$0xf]
    %v5995 = vld [vmem:[#allocation13 + $0x170] sm:$0xf]
    %v5996 = vld [vmem:[#allocation13 + $0x174] sm:$0xf]
    %v5997 = vld [vmem:[#allocation13 + $0x178] sm:$0xf]
    %v5998 = vld [vmem:[#allocation13 + $0x17c] sm:$0xf]
    %v5999 = vld [vmem:[#allocation13 + $0x180] sm:$0xf]
    %v6000 = vld [vmem:[#allocation13 + $0x184] sm:$0xf]
    %v6001 = vld [vmem:[#allocation13 + $0x188] sm:$0xf]
    %v6002 = vld [vmem:[#allocation13 + $0x18c] sm:$0xf]
    %v6003 = vld [vmem:[#allocation13 + $0x190] sm:$0xf]
    %v6004 = vld [vmem:[#allocation13 + $0x194] sm:$0xf]
    %v6005 = vld [vmem:[#allocation13 + $0x198] sm:$0xf]
    %v6006 = vld [vmem:[#allocation13 + $0x19c] sm:$0xf]
    %v6007 = vld [vmem:[#allocation13 + $0x1a0] sm:$0xf]
    %v6008 = vld [vmem:[#allocation13 + $0x1a4] sm:$0xf]
    %v6009 = vld [vmem:[#allocation13 + $0x1a8] sm:$0xf]
    %v6010 = vld [vmem:[#allocation13 + $0x1ac] sm:$0xf]
    %v6011 = vld [vmem:[#allocation13 + $0x1b0] sm:$0xf]
    %v6012 = vld [vmem:[#allocation13 + $0x1b4] sm:$0xf]
    %v6013 = vld [vmem:[#allocation13 + $0x1b8] sm:$0xf]
    %v6014 = vld [vmem:[#allocation13 + $0x1bc] sm:$0xf]
    %v6015 = vld [vmem:[#allocation13 + $0x1c0] sm:$0xf]
    %v6016 = vld [vmem:[#allocation13 + $0x1c4] sm:$0xf]
    %v6017 = vld [vmem:[#allocation13 + $0x1c8] sm:$0xf]
    %v6018 = vld [vmem:[#allocation13 + $0x1cc] sm:$0xf]
    %v6019 = vld [vmem:[#allocation13 + $0x1d0] sm:$0xf]
    %v6020 = vld [vmem:[#allocation13 + $0x1d4] sm:$0xf]
    %v6021 = vld [vmem:[#allocation13 + $0x1d8] sm:$0xf]
    %v6022 = vld [vmem:[#allocation13 + $0x1dc] sm:$0xf]
    %v6023 = vld [vmem:[#allocation13 + $0x1e0] sm:$0xf]
    %v6024 = vld [vmem:[#allocation13 + $0x1e4] sm:$0xf]
    %v6025 = vld [vmem:[#allocation13 + $0x1e8] sm:$0xf]
    %v6026 = vld [vmem:[#allocation13 + $0x1ec] sm:$0xf]
    %v6027 = vld [vmem:[#allocation13 + $0x1f0] sm:$0xf]
    %v6028 = vld [vmem:[#allocation13 + $0x1f4] sm:$0xf]
    %v6029 = vld [vmem:[#allocation13 + $0x1f8] sm:$0xf]
    %v6030 = vld [vmem:[#allocation13 + $0x1fc] sm:$0xf]
    %v6031 = vld [vmem:[%s10] sm:$0x1]
    %v6033 = vlaneseq
    %v6034 = vshrl.u32 %v6033, 7
    %v6035 = vsub.s32 0, %v6034
    %v6036 = vrot.slane %v6031, %v6035
    %v6166 = vunpack.c.l.b16 %v5903
    %v6167 = vunpack.c.l.b16 %v5904
    %v6168 = vunpack.c.l.b16 %v5905
    %v6169 = vunpack.c.l.b16 %v5906
    %v6170 = vunpack.c.l.b16 %v5907
    %v6171 = vunpack.c.l.b16 %v5908
    %v6172 = vunpack.c.l.b16 %v5909
    %v6173 = vunpack.c.l.b16 %v5910
    %v6174 = vunpack.c.l.b16 %v5911
    %v6175 = vunpack.c.l.b16 %v5912
    %v6176 = vunpack.c.l.b16 %v5913
    %v6177 = vunpack.c.l.b16 %v5914
    %v6178 = vunpack.c.l.b16 %v5915
    %v6179 = vunpack.c.l.b16 %v5916
    %v6180 = vunpack.c.l.b16 %v5917
    %v6181 = vunpack.c.l.b16 %v5918
    %v6182 = vunpack.c.l.b16 %v5919
    %v6183 = vunpack.c.l.b16 %v5920
    %v6184 = vunpack.c.l.b16 %v5921
    %v6185 = vunpack.c.l.b16 %v5922
    %v6186 = vunpack.c.l.b16 %v5923
    %v6187 = vunpack.c.l.b16 %v5924
    %v6188 = vunpack.c.l.b16 %v5925
    %v6189 = vunpack.c.l.b16 %v5926
    %v6190 = vunpack.c.l.b16 %v5927
    %v6191 = vunpack.c.l.b16 %v5928
    %v6192 = vunpack.c.l.b16 %v5929
    %v6193 = vunpack.c.l.b16 %v5930
    %v6194 = vunpack.c.l.b16 %v5931
    %v6195 = vunpack.c.l.b16 %v5932
    %v6196 = vunpack.c.l.b16 %v5933
    %v6197 = vunpack.c.l.b16 %v5934
    %v6198 = vunpack.c.l.b16 %v5935
    %v6199 = vunpack.c.l.b16 %v5936
    %v6200 = vunpack.c.l.b16 %v5937
    %v6201 = vunpack.c.l.b16 %v5938
    %v6202 = vunpack.c.l.b16 %v5939
    %v6203 = vunpack.c.l.b16 %v5940
    %v6204 = vunpack.c.l.b16 %v5941
    %v6205 = vunpack.c.l.b16 %v5942
    %v6206 = vunpack.c.l.b16 %v5943
    %v6207 = vunpack.c.l.b16 %v5944
    %v6208 = vunpack.c.l.b16 %v5945
    %v6209 = vunpack.c.l.b16 %v5946
    %v6210 = vunpack.c.l.b16 %v5947
    %v6211 = vunpack.c.l.b16 %v5948
    %v6212 = vunpack.c.l.b16 %v5949
    %v6213 = vunpack.c.l.b16 %v5950
    %v6214 = vunpack.c.l.b16 %v5951
    %v6215 = vunpack.c.l.b16 %v5952
    %v6216 = vunpack.c.l.b16 %v5953
    %v6217 = vunpack.c.l.b16 %v5954
    %v6218 = vunpack.c.l.b16 %v5955
    %v6219 = vunpack.c.l.b16 %v5956
    %v6220 = vunpack.c.l.b16 %v5957
    %v6221 = vunpack.c.l.b16 %v5958
    %v6222 = vunpack.c.l.b16 %v5959
    %v6223 = vunpack.c.l.b16 %v5960
    %v6224 = vunpack.c.l.b16 %v5961
    %v6225 = vunpack.c.l.b16 %v5962
    %v6226 = vunpack.c.l.b16 %v5963
    %v6227 = vunpack.c.l.b16 %v5964
    %v6228 = vunpack.c.l.b16 %v5965
    %v6229 = vunpack.c.l.b16 %v5966
    %v6230 = vunpack.c.l.b16 %v5967
    %v6231 = vunpack.c.l.b16 %v5968
    %v6232 = vunpack.c.l.b16 %v5969
    %v6233 = vunpack.c.l.b16 %v5970
    %v6234 = vunpack.c.l.b16 %v5971
    %v6235 = vunpack.c.l.b16 %v5972
    %v6236 = vunpack.c.l.b16 %v5973
    %v6237 = vunpack.c.l.b16 %v5974
    %v6238 = vunpack.c.l.b16 %v5975
    %v6239 = vunpack.c.l.b16 %v5976
    %v6240 = vunpack.c.l.b16 %v5977
    %v6241 = vunpack.c.l.b16 %v5978
    %v6242 = vunpack.c.l.b16 %v5979
    %v6243 = vunpack.c.l.b16 %v5980
    %v6244 = vunpack.c.l.b16 %v5981
    %v6245 = vunpack.c.l.b16 %v5982
    %v6246 = vunpack.c.l.b16 %v5983
    %v6247 = vunpack.c.l.b16 %v5984
    %v6248 = vunpack.c.l.b16 %v5985
    %v6249 = vunpack.c.l.b16 %v5986
    %v6250 = vunpack.c.l.b16 %v5987
    %v6251 = vunpack.c.l.b16 %v5988
    %v6252 = vunpack.c.l.b16 %v5989
    %v6253 = vunpack.c.l.b16 %v5990
    %v6254 = vunpack.c.l.b16 %v5991
    %v6255 = vunpack.c.l.b16 %v5992
    %v6256 = vunpack.c.l.b16 %v5993
    %v6257 = vunpack.c.l.b16 %v5994
    %v6258 = vunpack.c.l.b16 %v5995
    %v6259 = vunpack.c.l.b16 %v5996
    %v6260 = vunpack.c.l.b16 %v5997
    %v6261 = vunpack.c.l.b16 %v5998
    %v6262 = vunpack.c.l.b16 %v5999
    %v6263 = vunpack.c.l.b16 %v6000
    %v6264 = vunpack.c.l.b16 %v6001
    %v6265 = vunpack.c.l.b16 %v6002
    %v6266 = vunpack.c.l.b16 %v6003
    %v6267 = vunpack.c.l.b16 %v6004
    %v6268 = vunpack.c.l.b16 %v6005
    %v6269 = vunpack.c.l.b16 %v6006
    %v6270 = vunpack.c.l.b16 %v6007
    %v6271 = vunpack.c.l.b16 %v6008
    %v6272 = vunpack.c.l.b16 %v6009
    %v6273 = vunpack.c.l.b16 %v6010
    %v6274 = vunpack.c.l.b16 %v6011
    %v6275 = vunpack.c.l.b16 %v6012
    %v6276 = vunpack.c.l.b16 %v6013
    %v6277 = vunpack.c.l.b16 %v6014
    %v6278 = vunpack.c.l.b16 %v6015
    %v6279 = vunpack.c.l.b16 %v6016
    %v6280 = vunpack.c.l.b16 %v6017
    %v6281 = vunpack.c.l.b16 %v6018
    %v6282 = vunpack.c.l.b16 %v6019
    %v6283 = vunpack.c.l.b16 %v6020
    %v6284 = vunpack.c.l.b16 %v6021
    %v6285 = vunpack.c.l.b16 %v6022
    %v6286 = vunpack.c.l.b16 %v6023
    %v6287 = vunpack.c.l.b16 %v6024
    %v6288 = vunpack.c.l.b16 %v6025
    %v6289 = vunpack.c.l.b16 %v6026
    %v6290 = vunpack.c.l.b16 %v6027
    %v6291 = vunpack.c.l.b16 %v6028
    %v6292 = vunpack.c.l.b16 %v6029
    %v6293 = vunpack.c.l.b16 %v6030
    %v6294 = vpack.c.b16 %v6167, %v6166
    %v6295 = vpack.c.b16 %v6169, %v6168
    %v6296 = vpack.c.b16 %v6171, %v6170
    %v6297 = vpack.c.b16 %v6173, %v6172
    %v6298 = vpack.c.b16 %v6175, %v6174
    %v6299 = vpack.c.b16 %v6177, %v6176
    %v6300 = vpack.c.b16 %v6179, %v6178
    %v6301 = vpack.c.b16 %v6181, %v6180
    %v6302 = vpack.c.b16 %v6183, %v6182
    %v6303 = vpack.c.b16 %v6185, %v6184
    %v6304 = vpack.c.b16 %v6187, %v6186
    %v6305 = vpack.c.b16 %v6189, %v6188
    %v6306 = vpack.c.b16 %v6191, %v6190
    %v6307 = vpack.c.b16 %v6193, %v6192
    %v6308 = vpack.c.b16 %v6195, %v6194
    %v6309 = vpack.c.b16 %v6197, %v6196
    %v6310 = vpack.c.b16 %v6199, %v6198
    %v6311 = vpack.c.b16 %v6201, %v6200
    %v6312 = vpack.c.b16 %v6203, %v6202
    %v6313 = vpack.c.b16 %v6205, %v6204
    %v6314 = vpack.c.b16 %v6207, %v6206
    %v6315 = vpack.c.b16 %v6209, %v6208
    %v6316 = vpack.c.b16 %v6211, %v6210
    %v6317 = vpack.c.b16 %v6213, %v6212
    %v6318 = vpack.c.b16 %v6215, %v6214
    %v6319 = vpack.c.b16 %v6217, %v6216
    %v6320 = vpack.c.b16 %v6219, %v6218
    %v6321 = vpack.c.b16 %v6221, %v6220
    %v6322 = vpack.c.b16 %v6223, %v6222
    %v6323 = vpack.c.b16 %v6225, %v6224
    %v6324 = vpack.c.b16 %v6227, %v6226
    %v6325 = vpack.c.b16 %v6229, %v6228
    %v6326 = vpack.c.b16 %v6231, %v6230
    %v6327 = vpack.c.b16 %v6233, %v6232
    %v6328 = vpack.c.b16 %v6235, %v6234
    %v6329 = vpack.c.b16 %v6237, %v6236
    %v6330 = vpack.c.b16 %v6239, %v6238
    %v6331 = vpack.c.b16 %v6241, %v6240
    %v6332 = vpack.c.b16 %v6243, %v6242
    %v6333 = vpack.c.b16 %v6245, %v6244
    %v6334 = vpack.c.b16 %v6247, %v6246
    %v6335 = vpack.c.b16 %v6249, %v6248
    %v6336 = vpack.c.b16 %v6251, %v6250
    %v6337 = vpack.c.b16 %v6253, %v6252
    %v6338 = vpack.c.b16 %v6255, %v6254
    %v6339 = vpack.c.b16 %v6257, %v6256
    %v6340 = vpack.c.b16 %v6259, %v6258
    %v6341 = vpack.c.b16 %v6261, %v6260
    %v6342 = vpack.c.b16 %v6263, %v6262
    %v6343 = vpack.c.b16 %v6265, %v6264
    %v6344 = vpack.c.b16 %v6267, %v6266
    %v6345 = vpack.c.b16 %v6269, %v6268
    %v6346 = vpack.c.b16 %v6271, %v6270
    %v6347 = vpack.c.b16 %v6273, %v6272
    %v6348 = vpack.c.b16 %v6275, %v6274
    %v6349 = vpack.c.b16 %v6277, %v6276
    %v6350 = vpack.c.b16 %v6279, %v6278
    %v6351 = vpack.c.b16 %v6281, %v6280
    %v6352 = vpack.c.b16 %v6283, %v6282
    %v6353 = vpack.c.b16 %v6285, %v6284
    %v6354 = vpack.c.b16 %v6287, %v6286
    %v6355 = vpack.c.b16 %v6289, %v6288
    %v6356 = vpack.c.b16 %v6291, %v6290
    %v6357 = vpack.c.b16 %v6293, %v6292
    %6422 = vmatprep.subr.bf16.mxu0 0
    %6423 = vmatpush1.bf16.msra.mxu0 %v6294
    %6424 = vmatprep.subr.bf16.mxu0 0
    %6425 = vmatpush1.bf16.msra.mxu0 %v6295
    %6426 = vmatprep.subr.bf16.mxu0 0
    %6427 = vmatpush1.bf16.msra.mxu0 %v6296
    %6428 = vmatprep.subr.bf16.mxu0 0
    %6429 = vmatpush1.bf16.msra.mxu0 %v6297
    %6430 = vmatprep.subr.bf16.mxu0 0
    %6431 = vmatpush1.bf16.msra.mxu0 %v6298
    %6432 = vmatprep.subr.bf16.mxu0 0
    %6433 = vmatpush1.bf16.msra.mxu0 %v6299
    %6434 = vmatprep.subr.bf16.mxu0 0
    %6435 = vmatpush1.bf16.msra.mxu0 %v6300
    %6436 = vmatprep.subr.bf16.mxu0 0
    %6437 = vmatpush1.bf16.msra.mxu0 %v6301
    %6438 = vmatprep.subr.bf16.mxu0 0
    %6439 = vmatpush1.bf16.msra.mxu0 %v6302
    %6440 = vmatprep.subr.bf16.mxu0 0
    %6441 = vmatpush1.bf16.msra.mxu0 %v6303
    %6442 = vmatprep.subr.bf16.mxu0 0
    %6443 = vmatpush1.bf16.msra.mxu0 %v6304
    %6444 = vmatprep.subr.bf16.mxu0 0
    %6445 = vmatpush1.bf16.msra.mxu0 %v6305
    %6446 = vmatprep.subr.bf16.mxu0 0
    %6447 = vmatpush1.bf16.msra.mxu0 %v6306
    %6448 = vmatprep.subr.bf16.mxu0 0
    %6449 = vmatpush1.bf16.msra.mxu0 %v6307
    %6450 = vmatprep.subr.bf16.mxu0 0
    %6451 = vmatpush1.bf16.msra.mxu0 %v6308
    %6452 = vmatprep.subr.bf16.mxu0 0
    %6453 = vmatpush1.bf16.msra.mxu0 %v6309
    %6454 = vmatprep.mubr.bf16.mxu0 %v5896
    %6455 = vmatmul.mubr.bf16.gmra.mrb[0].mxu0 %v5895
    %v6456 = vpop.f32.mrb[0].mxu0
    %v6457 = vadd.f32 %v6036, %v6456
    %v6458 = vpop.f32.mrb[0].mxu0
    %v6459 = vpop.f32.mrb[0].mxu0
    %v6460 = vpop.f32.mrb[0].mxu0
    %6461 = vdwg.mxu0
    %6462 = vmatprep.subr.bf16.mxu0 0
    %6463 = vmatpush1.bf16.msra.mxu0 %v6310
    %6464 = vmatprep.subr.bf16.mxu0 0
    %6465 = vmatpush1.bf16.msra.mxu0 %v6311
    %6466 = vmatprep.subr.bf16.mxu0 0
    %6467 = vmatpush1.bf16.msra.mxu0 %v6312
    %6468 = vmatprep.subr.bf16.mxu0 0
    %6469 = vmatpush1.bf16.msra.mxu0 %v6313
    %6470 = vmatprep.subr.bf16.mxu0 0
    %6471 = vmatpush1.bf16.msra.mxu0 %v6314
    %6472 = vmatprep.subr.bf16.mxu0 0
    %6473 = vmatpush1.bf16.msra.mxu0 %v6315
    %6474 = vmatprep.subr.bf16.mxu0 0
    %6475 = vmatpush1.bf16.msra.mxu0 %v6316
    %6476 = vmatprep.subr.bf16.mxu0 0
    %6477 = vmatpush1.bf16.msra.mxu0 %v6317
    %6478 = vmatprep.subr.bf16.mxu0 0
    %6479 = vmatpush1.bf16.msra.mxu0 %v6318
    %6480 = vmatprep.subr.bf16.mxu0 0
    %6481 = vmatpush1.bf16.msra.mxu0 %v6319
    %6482 = vmatprep.subr.bf16.mxu0 0
    %6483 = vmatpush1.bf16.msra.mxu0 %v6320
    %6484 = vmatprep.subr.bf16.mxu0 0
    %6485 = vmatpush1.bf16.msra.mxu0 %v6321
    %6486 = vmatprep.subr.bf16.mxu0 0
    %6487 = vmatpush1.bf16.msra.mxu0 %v6322
    %6488 = vmatprep.subr.bf16.mxu0 0
    %6489 = vmatpush1.bf16.msra.mxu0 %v6323
    %6490 = vmatprep.subr.bf16.mxu0 0
    %6491 = vmatpush1.bf16.msra.mxu0 %v6324
    %6492 = vmatprep.subr.bf16.mxu0 0
    %6493 = vmatpush1.bf16.msra.mxu0 %v6325
    %6494 = vmatprep.mubr.bf16.mxu0 %v5898
    %6495 = vmatmul.mubr.bf16.gmra.mrb[0].mxu0 %v5897
    %v6496 = vpop.f32.mrb[0].mxu0
    %v6497 = vadd.f32 %v6457, %v6496
    %v6498 = vpop.f32.mrb[0].mxu0
    %v6499 = vpop.f32.mrb[0].mxu0
    %v6500 = vpop.f32.mrb[0].mxu0
    %6501 = vdwg.mxu0
    %6502 = vmatprep.subr.bf16.mxu0 0
    %6503 = vmatpush1.bf16.msra.mxu0 %v6326
    %6504 = vmatprep.subr.bf16.mxu0 0
    %6505 = vmatpush1.bf16.msra.mxu0 %v6327
    %6506 = vmatprep.subr.bf16.mxu0 0
    %6507 = vmatpush1.bf16.msra.mxu0 %v6328
    %6508 = vmatprep.subr.bf16.mxu0 0
    %6509 = vmatpush1.bf16.msra.mxu0 %v6329
    %6510 = vmatprep.subr.bf16.mxu0 0
    %6511 = vmatpush1.bf16.msra.mxu0 %v6330
    %6512 = vmatprep.subr.bf16.mxu0 0
    %6513 = vmatpush1.bf16.msra.mxu0 %v6331
    %6514 = vmatprep.subr.bf16.mxu0 0
    %6515 = vmatpush1.bf16.msra.mxu0 %v6332
    %6516 = vmatprep.subr.bf16.mxu0 0
    %6517 = vmatpush1.bf16.msra.mxu0 %v6333
    %6518 = vmatprep.subr.bf16.mxu0 0
    %6519 = vmatpush1.bf16.msra.mxu0 %v6334
    %6520 = vmatprep.subr.bf16.mxu0 0
    %6521 = vmatpush1.bf16.msra.mxu0 %v6335
    %6522 = vmatprep.subr.bf16.mxu0 0
    %6523 = vmatpush1.bf16.msra.mxu0 %v6336
    %6524 = vmatprep.subr.bf16.mxu0 0
    %6525 = vmatpush1.bf16.msra.mxu0 %v6337
    %6526 = vmatprep.subr.bf16.mxu0 0
    %6527 = vmatpush1.bf16.msra.mxu0 %v6338
    %6528 = vmatprep.subr.bf16.mxu0 0
    %6529 = vmatpush1.bf16.msra.mxu0 %v6339
    %6530 = vmatprep.subr.bf16.mxu0 0
    %6531 = vmatpush1.bf16.msra.mxu0 %v6340
    %6532 = vmatprep.subr.bf16.mxu0 0
    %6533 = vmatpush1.bf16.msra.mxu0 %v6341
    %6534 = vmatprep.mubr.bf16.mxu0 %v5900
    %6535 = vmatmul.mubr.bf16.gmra.mrb[0].mxu0 %v5899
    %v6536 = vpop.f32.mrb[0].mxu0
    %v6537 = vadd.f32 %v6497, %v6536
    %v6538 = vpop.f32.mrb[0].mxu0
    %v6539 = vpop.f32.mrb[0].mxu0
    %v6540 = vpop.f32.mrb[0].mxu0
    %6541 = vdwg.mxu0
    %6542 = vmatprep.subr.bf16.mxu0 0
    %6543 = vmatpush1.bf16.msra.mxu0 %v6342
    %6544 = vmatprep.subr.bf16.mxu0 0
    %6545 = vmatpush1.bf16.msra.mxu0 %v6343
    %6546 = vmatprep.subr.bf16.mxu0 0
    %6547 = vmatpush1.bf16.msra.mxu0 %v6344
    %6548 = vmatprep.subr.bf16.mxu0 0
    %6549 = vmatpush1.bf16.msra.mxu0 %v6345
    %6550 = vmatprep.subr.bf16.mxu0 0
    %6551 = vmatpush1.bf16.msra.mxu0 %v6346
    %6552 = vmatprep.subr.bf16.mxu0 0
    %6553 = vmatpush1.bf16.msra.mxu0 %v6347
    %6554 = vmatprep.subr.bf16.mxu0 0
    %6555 = vmatpush1.bf16.msra.mxu0 %v6348
    %6556 = vmatprep.subr.bf16.mxu0 0
    %6557 = vmatpush1.bf16.msra.mxu0 %v6349
    %6558 = vmatprep.subr.bf16.mxu0 0
    %6559 = vmatpush1.bf16.msra.mxu0 %v6350
    %6560 = vmatprep.subr.bf16.mxu0 0
    %6561 = vmatpush1.bf16.msra.mxu0 %v6351
    %6562 = vmatprep.subr.bf16.mxu0 0
    %6563 = vmatpush1.bf16.msra.mxu0 %v6352
    %6564 = vmatprep.subr.bf16.mxu0 0
    %6565 = vmatpush1.bf16.msra.mxu0 %v6353
    %6566 = vmatprep.subr.bf16.mxu0 0
    %6567 = vmatpush1.bf16.msra.mxu0 %v6354
    %6568 = vmatprep.subr.bf16.mxu0 0
    %6569 = vmatpush1.bf16.msra.mxu0 %v6355
    %6570 = vmatprep.subr.bf16.mxu0 0
    %6571 = vmatpush1.bf16.msra.mxu0 %v6356
    %6572 = vmatprep.subr.bf16.mxu0 0
    %6573 = vmatpush1.bf16.msra.mxu0 %v6357
    %6574 = vmatprep.mubr.bf16.mxu0 %v5902
    %6575 = vmatmul.mubr.bf16.gmra.mrb[0].mxu0 %v5901
    %v6576 = vpop.f32.mrb[0].mxu0
    %v6577 = vadd.f32 %v6537, %v6576
    %v6578 = vpop.f32.mrb[0].mxu0
    %v6579 = vpop.f32.mrb[0].mxu0
    %v6580 = vpop.f32.mrb[0].mxu0
    %6581 = vdwg.mxu0
    %6582 = vst [vmem:[#allocation14] sm:$0xff] %v6577
    // Predicated region
    $region74: #{tpu_custom_call.1} parent=1 // pred_check
      _
    $region75: #{tpu_custom_call.1} parent=1 // pred_check_branch
      %6584 = sbr.rel (0) target = $region77
    $region76: #{tpu_custom_call.1} parent=1 // pred_region
      %s6586 = ssub.s32 128, 128
      %6587 = vsyncadd [#allocation4], %s6586
      %s6589 = sshll.u32 [#allocation14], 4
      %s6590 = int_to_ptr.vmem [resolvable:$true] %s6589
      %6592 = dma.vmem_to_hbm [thread:$0]  %s6590, 128, %s11, [#allocation4]
    $region77: #{tpu_custom_call.1} parent=1 // pred_fallthru
      _
    // Predicated region
    $region78: #{tpu_custom_call.1} parent=1 // pred_check
      _
    $region79: #{tpu_custom_call.1} parent=1 // pred_check_branch
      %6594 = sbr.rel (0) target = $region81
    $region80: #{tpu_custom_call.1} parent=1 // pred_region
      %6595 = dma.done [#allocation4], 128
    $region81: #{tpu_custom_call.1} parent=1 // pred_fallthru
      _
    %6596 = vsyncpa [#allocation3], 1
    %6597 = vsyncpa [#allocation6], 1
    %6598 = vsyncpa [#allocation9], 1
    %6599 = vsyncpa [#allocation12], 1
    %6600 = vsyncpa [#allocation4], 1

</llo_original>
